<compile_context>
chip_gen: v7x
topology: tpu7x:2x2x1
jax: 0.10.0
libtpu: 0.0.40
codegen_flags: <defaults>
</compile_context>

<pallas_src>
import functools
import math
from typing import NamedTuple

import numpy as np
import jax
import jax.numpy as jnp
from jax.experimental import pallas as pl
from jax.experimental.pallas import tpu as pltpu

LANES = 128                        # vreg lane width: feature dims padded to this
NEG_SLOPE = 0.1                    # LeakyReLU slope used by GCN3.forward
VMEM_LIMIT = 32 * 1024 * 1024      # within scoped/physical VMEM on v5e/v6e/v7x
H_RESIDENT_BYTES = 8 * 1024 * 1024  # budget for keeping h fully VMEM-resident
                                    # (double-buffered -> ~16 MiB of the 32 MiB cap)


def _round_up(v, m):
    return -(-v // m) * m


def _pad2d(x, rows, cols):
    r, c = x.shape
    return jnp.pad(x, ((0, rows - r), (0, cols - c)))


def _itemsize(dtype):
    return np.dtype(dtype).itemsize


def _plan(n, block_m, block_k):
    """Cap block sizes at the padded node count and derive the padded N."""
    assert block_m % LANES == 0 and block_k % LANES == 0, \
        "block sizes must be multiples of 128"
    n128 = _round_up(n, LANES)
    bm = min(block_m, n128)
    bk = min(block_k, n128)
    np_ = _round_up(n, math.lcm(bm, bk))
    return np_, bm, bk


class Graph(NamedTuple):
    adj: jax.Array    # (np_, np_) padded adjacency in compute_dtype
    kmap: jax.Array   # (nm*nk,) int32: compacted nonzero k-tile ids per row block
    kcnt: jax.Array   # (nm,)   int32: number of nonzero k-tiles per row block


def prepare_graph(adj, *, block_m, block_k, compute_dtype):
    """One-time graph preprocessing, hoisted out of the per-forward path:
    pad + cast the adjacency and build the tile-level sparsity schedule."""
    n = adj.shape[0]
    np_, bm, bk = _plan(n, block_m, block_k)
    # 0/1 adjacency is exact in bf16 -> halves the dominant N^2 HBM stream.
    adj_p = _pad2d(adj, np_, np_).astype(compute_dtype)

    nm, nk = np_ // bm, np_ // bk
    nz = jnp.any(adj_p.reshape(nm, bm, nk, bk) != 0, axis=(1, 3))   # (nm, nk)
    kcnt = nz.sum(axis=1).astype(jnp.int32)

    # Compact the nonzero k-tile indices to the front (in order); pad by
    # repeating the last valid index so redundant iterations re-use the same
    # block (their DMA is elided and the dot is skipped via pl.when).
    j = jnp.arange(nk, dtype=jnp.int32)[None, :]
    keys = jnp.where(nz, j, j + nk)
    order = jnp.argsort(keys, axis=1).astype(jnp.int32)             # nonzero first
    safe_j = jnp.minimum(jnp.arange(nk, dtype=jnp.int32)[None, :],
                         jnp.maximum(kcnt - 1, 0)[:, None])
    kmap = jnp.take_along_axis(order, safe_j, axis=1).astype(jnp.int32).reshape(-1)
    return Graph(adj=adj_p, kmap=kmap, kcnt=kcnt)


# ------------------------------- kernel ---------------------------------------

def _make_agg_kernel(*, has_w, has_w_post, apply_act, h_resident, bk, nk):
    """out[i] = [act]( (sum_{k in nz(i)} A[i,k] @ h[k]) [@ W] + b ) [@ W_post]"""

    def kernel(kmap_ref, kcnt_ref, *refs):
        idx = 0
        adj_ref = refs[idx]; idx += 1
        h_ref = refs[idx]; idx += 1
        w_ref = refs[idx] if has_w else None
        idx += int(has_w)
        b_ref = refs[idx]; idx += 1
        w_post_ref = refs[idx] if has_w_post else None
        idx += int(has_w_post)
        out_ref = refs[idx]; idx += 1
        acc_ref = refs[idx]

        i = pl.program_id(0)
        k = pl.program_id(1)

        @pl.when(k == 0)
        def _():
            acc_ref[...] = jnp.zeros_like(acc_ref)

        # Message passing over nonzero adjacency tiles only (f32 accumulation).
        @pl.when(k < kcnt_ref[i])
        def _():
            if h_resident:
                tile = kmap_ref[i * nk + k]
                start = pl.multiple_of(tile * bk, bk)
                h_blk = h_ref[pl.ds(start, bk), :]
            else:
                h_blk = h_ref[...]
            acc_ref[...] += jnp.dot(adj_ref[...], h_blk,
                                    preferred_element_type=jnp.float32)

        @pl.when(k == pl.num_programs(1) - 1)
        def _():
            z = acc_ref[...]
            if has_w:
                # cast acc to the (pre-cast) weight dtype: native bf16 MXU path
                z = jnp.dot(z.astype(w_ref.dtype), w_ref[...],
                            preferred_element_type=jnp.float32)
            z = z + b_ref[...]
            if apply_act:
                z = jnp.where(z > 0, z, NEG_SLOPE * z)
            if has_w_post:
                # fused next-layer feature transform (reassociated layer 3)
                z = jnp.dot(z.astype(w_post_ref.dtype), w_post_ref[...],
                            preferred_element_type=jnp.float32)
            out_ref[...] = z.astype(out_ref.dtype)

    return kernel


# -------------------------- pallas_call wrapper --------------------------------

def _aggregate(graph, h, b, *, w=None, w_post=None, apply_act, out_dtype,
               bm, bk, h_resident_bytes):
    adj, kmap, kcnt = graph
    np_ = adj.shape[0]
    fi = h.shape[1]
    nm, nk = np_ // bm, np_ // bk

    h_resident = np_ * fi * _itemsize(h.dtype) <= h_resident_bytes

    fo = w.shape[1] if w is not None else fi
    out_w = w_post.shape[1] if w_post is not None else fo

    adj_spec = pl.BlockSpec((bm, bk), lambda i, k, km, kc: (i, km[i * nk + k]))
    if h_resident:
        # whole h fetched once and reused across the grid
        h_spec = pl.BlockSpec((np_, fi), lambda i, k, km, kc: (0, 0))
    else:
        h_spec = pl.BlockSpec((bk, fi), lambda i, k, km, kc: (km[i * nk + k], 0))

    in_specs = [adj_spec, h_spec]
    args = [adj, h]
    if w is not None:
        in_specs.append(pl.BlockSpec((fi, fo), lambda i, k, km, kc: (0, 0)))
        args.append(w)
    in_specs.append(pl.BlockSpec((1, fo), lambda i, k, km, kc: (0, 0)))
    args.append(b)
    if w_post is not None:
        in_specs.append(pl.BlockSpec((fo, out_w), lambda i, k, km, kc: (0, 0)))
        args.append(w_post)

    kernel = _make_agg_kernel(has_w=w is not None, has_w_post=w_post is not None,
                              apply_act=apply_act, h_resident=h_resident,
                              bk=bk, nk=nk)

    flops = 2 * np_ * np_ * fi
    if w is not None:
        flops += 2 * np_ * fi * fo
    if w_post is not None:
        flops += 2 * np_ * fo * out_w
    bytes_accessed = (np_ * np_ * _itemsize(adj.dtype)
                      + (np_ if h_resident else nm * np_) * fi * _itemsize(h.dtype)
                      + np_ * out_w * _itemsize(out_dtype))

    return pl.pallas_call(
        kernel,
        out_shape=jax.ShapeDtypeStruct((np_, out_w), out_dtype),
        grid_spec=pltpu.PrefetchScalarGridSpec(
            num_scalar_prefetch=2,
            grid=(nm, nk),
            in_specs=in_specs,
            out_specs=pl.BlockSpec((bm, out_w), lambda i, k, km, kc: (i, 0)),
            scratch_shapes=[pltpu.VMEM((bm, fi), jnp.float32)],
        ),
        compiler_params=pltpu.CompilerParams(
            dimension_semantics=("parallel", "arbitrary"),
            vmem_limit_bytes=VMEM_LIMIT,
        ),
        cost_estimate=pl.CostEstimate(
            flops=flops, transcendentals=0, bytes_accessed=bytes_accessed),
    )(kmap, kcnt, *args)


# -------------------------------- forward --------------------------------------

def gcn3_forward(graph, x, params, *, block_m=1024, block_k=512,
                 compute_dtype=jnp.bfloat16, h_resident_bytes=H_RESIDENT_BYTES):
    """3-layer GCN forward.

    graph  : Graph from prepare_graph (same block_m/block_k/compute_dtype)
    x      : (N, in_feats)
    params : ((w1, b1), (w2, b2), (w3, b3)) with torch-style W of shape (out, in)
    """
    (w1, b1), (w2, b2), (w3, b3) = params
    n, f_in = x.shape
    f_hid = w1.shape[0]
    f_out = w3.shape[0]

    np_, bm, bk = _plan(n, block_m, block_k)
    assert graph.adj.shape[0] == np_, "graph prepared with different block sizes"

    fi_p = _round_up(f_in, LANES)
    fh_p = _round_up(f_hid, LANES)
    fo_p = _round_up(f_out, LANES)

    # Activations stream in compute_dtype; accumulation stays f32 in-kernel.
    h0 = _pad2d(x, np_, fi_p).astype(compute_dtype)

    # torch-style (out, in) -> (in, out), zero-padded, pre-cast to compute dtype.
    w1p = _pad2d(w1.T, fi_p, fh_p).astype(compute_dtype)
    w2p = _pad2d(w2.T, fh_p, fh_p).astype(compute_dtype)
    w3p = _pad2d(w3.T, fh_p, fo_p).astype(compute_dtype)
    b1p = _pad2d(b1.reshape(1, -1).astype(jnp.float32), 1, fh_p)
    b2p = _pad2d(b2.reshape(1, -1).astype(jnp.float32), 1, fh_p)
    b3p = _pad2d(b3.reshape(1, -1).astype(jnp.float32), 1, fo_p)

    agg = functools.partial(_aggregate, graph, bm=bm, bk=bk,
                            h_resident_bytes=h_resident_bytes)

    # Layer 1: h1 = leaky_relu((A @ h0) @ W1 + b1)
    h1 = agg(h0, b1p, w=w1p, apply_act=True, out_dtype=compute_dtype)

    if fo_p < fh_p:
        # Layers 2+3, reassociated + fused: the layer-3 feature transform runs
        # in layer 2's epilogue so the final N^2 matmul contracts over the
        # narrower width and h2 never round-trips HBM.
        #   hw3 = leaky_relu((A @ h1) @ W2 + b2) @ W3
        #   out = A @ hw3 + b3
        hw3 = agg(h1, b2p, w=w2p, w_post=w3p, apply_act=True,
                  out_dtype=compute_dtype)
        out = agg(hw3, b3p, w=None, apply_act=False, out_dtype=jnp.float32)
    else:
        h2 = agg(h1, b2p, w=w2p, apply_act=True, out_dtype=compute_dtype)
        out = agg(h2, b3p, w=w3p, apply_act=False, out_dtype=jnp.float32)

    return out[:n, :f_out]


# ------------------------------ test harness -----------------------------------

def init_params(key, in_feats, h_feats, out_feats):
    """torch.nn.Linear-style init: U(-1/sqrt(fan_in), 1/sqrt(fan_in))."""
    params = []
    for fin, fout in [(in_feats, h_feats), (h_feats, h_feats), (h_feats, out_feats)]:
        key, kw, kb = jax.random.split(key, 3)
        bound = 1.0 / (fin ** 0.5)
        w = jax.random.uniform(kw, (fout, fin), jnp.float32, -bound, bound)
        b = jax.random.uniform(kb, (fout,), jnp.float32, -bound, bound)
        params.append((w, b))
    return tuple(params)


def reference_forward(adj, x, params):
    """Pure-JAX f32 reference."""
    (w1, b1), (w2, b2), (w3, b3) = params
    act = lambda z: jnp.where(z > 0, z, 0.1 * z)
    h = act((adj @ x) @ w1.T + b1)
    h = act((adj @ h) @ w2.T + b2)
    return (adj @ h) @ w3.T + b3


if __name__ == "__main__":
    key = jax.random.PRNGKey(0)
    k_adj, k_x, k_p = jax.random.split(key, 3)

    # Small synthetic graph; feature dims 8 -> 160 -> 4 exercise both the
    # fused/reassociated and the plain layer orders after lane padding.
    n_nodes, in_feats, h_feats, out_feats = 200, 8, 160, 4

    adj = jax.random.bernoulli(k_adj, 0.15, (n_nodes, n_nodes)).astype(jnp.float32)
    # Structured sparsity: source nodes >= 128 have no outgoing edges, so with
    # 128-wide column tiles the second k-tile is all-zero and gets skipped.
    col_mask = (jnp.arange(n_nodes) < 128).astype(jnp.float32)
    adj = adj * col_mask[None, :]

    x = jax.random.normal(k_x, (n_nodes, in_feats), jnp.float32)
    params = init_params(k_p, in_feats, h_feats, out_feats)

    ref = reference_forward(adj, x, params)

    # 1) f32 compute, 128 tiles, streamed h (resident budget 0): tight structural
    #    check of tiling / accumulation / bias / activation that also exercises
    #    the sparsity skip (empty k-tile) and the streamed-h code path.
    g32 = prepare_graph(adj, block_m=128, block_k=128, compute_dtype=jnp.float32)
    fwd_f32 = jax.jit(functools.partial(gcn3_forward, block_m=128, block_k=128,
                                        compute_dtype=jnp.float32,
                                        h_resident_bytes=0))
    out_f32 = jax.block_until_ready(fwd_f32(g32, x, params))
    assert out_f32.shape == (n_nodes, out_feats)
    assert jnp.allclose(out_f32, ref, rtol=1e-3, atol=1e-2), "f32 path mismatch"

    # 2) default bf16-MXU path: large tiles, VMEM-resident h, fused layer-2/3.
    #    bf16 input rounding (f32 accumulation) is the only difference from the
    #    f32 reference, so bound the relative error.
    gbf = prepare_graph(adj, block_m=1024, block_k=512,
                        compute_dtype=jnp.bfloat16)
    fwd = jax.jit(functools.partial(gcn3_forward, block_m=1024, block_k=512,
                                    compute_dtype=jnp.bfloat16))
    out = jax.block_until_ready(fwd(gbf, x, params))
    assert out.shape == (n_nodes, out_feats)
    rel_err = jnp.max(jnp.abs(out - ref)) / jnp.max(jnp.abs(ref))
    assert rel_err < 5e-2, f"bf16 path relative error too large: {rel_err}"

    print("KERNEL_OK")
</pallas_src>

<mosaic_0001>
module attributes {stable_mosaic.version = 11 : i64} {
  func.func @kernel(%arg0: i32, %arg1: i32, %arg2: memref<4xi32, #tpu.memory_space<smem>>, %arg3: memref<2xi32, #tpu.memory_space<smem>>, %arg4: memref<128x128xf32, #tpu.memory_space<vmem>>, %arg5: memref<128x128xf32, #tpu.memory_space<vmem>>, %arg6: memref<128x256xf32, #tpu.memory_space<vmem>>, %arg7: memref<1x256xf32, #tpu.memory_space<vmem>>, %arg8: memref<128x256xf32, #tpu.memory_space<vmem>>, %arg9: memref<128x128xf32, #tpu.memory_space<vmem>>) attributes {dimension_semantics = [#tpu.dimension_semantics<parallel>, #tpu.dimension_semantics<arbitrary>], iteration_bounds = array<i64: 2, 2>, scalar_prefetch = 2 : i64, scratch_operands = 1 : i64, tpu.core_type = #tpu.core_type<tc>, window_params = [{transform_indices = @transform_0, window_bounds = array<i64: 128, 128>}, {transform_indices = @transform_1, window_bounds = array<i64: 128, 128>}, {pipeline_mode = #tpu.pipeline_mode<synchronous>, transform_indices = @transform_2, window_bounds = array<i64: 128, 256>}, {pipeline_mode = #tpu.pipeline_mode<synchronous>, transform_indices = @transform_3, window_bounds = array<i64: 1, 256>}, {transform_indices = @transform_4, window_bounds = array<i64: 128, 256>}]} {
    %c0_i32 = arith.constant 0 : i32
    %0 = arith.cmpi eq, %arg1, %c0_i32 : i32
    %1 = arith.extui %0 : i1 to i32
    %c0_i32_0 = arith.constant 0 : i32
    %2 = arith.cmpi ne, %1, %c0_i32_0 : i32
    scf.if %2 {
      %cst = arith.constant 0.000000e+00 : f32
      %11 = vector.broadcast %cst : f32 to vector<128x128xf32>
      %c0 = arith.constant 0 : index
      %c0_3 = arith.constant 0 : index
      %12 = vector.load %arg9[%c0, %c0_3] : memref<128x128xf32, #tpu.memory_space<vmem>>, vector<128x128xf32>
      tpu.vector_store %arg9[%c0, %c0_3], %11 {strides = array<i32>} : memref<128x128xf32, #tpu.memory_space<vmem>>, vector<128x128xf32>,
    } else {
    }
    %3 = arith.index_cast %arg0 : i32 to index
    %4 = memref.load %arg3[%3] : memref<2xi32, #tpu.memory_space<smem>>
    %5 = arith.cmpi slt, %arg1, %4 : i32
    %6 = arith.extui %5 : i1 to i32
    %c0_i32_1 = arith.constant 0 : i32
    %7 = arith.cmpi ne, %6, %c0_i32_1 : i32
    scf.if %7 {
      %c0 = arith.constant 0 : index
      %c0_3 = arith.constant 0 : index
      %11 = vector.load %arg5[%c0, %c0_3] : memref<128x128xf32, #tpu.memory_space<vmem>>, vector<128x128xf32>
      %c0_4 = arith.constant 0 : index
      %c0_5 = arith.constant 0 : index
      %12 = vector.load %arg9[%c0_4, %c0_5] : memref<128x128xf32, #tpu.memory_space<vmem>>, vector<128x128xf32>
      %c0_6 = arith.constant 0 : index
      %c0_7 = arith.constant 0 : index
      %13 = vector.load %arg4[%c0_6, %c0_7] : memref<128x128xf32, #tpu.memory_space<vmem>>, vector<128x128xf32>
      %cst = arith.constant dense<0.000000e+00> : vector<128x128xf32>
      %14 = tpu.matmul %13, %11, %cst {dimension_numbers = #tpu.dot_dimension_numbers<[1], [0], [0], [1], [0, 0, 1, 1], [], []>} : vector<128x128xf32>, vector<128x128xf32>, vector<128x128xf32> -> vector<128x128xf32>
      %15 = arith.addf %12, %14 : vector<128x128xf32>
      %c0_8 = arith.constant 0 : index
      %c0_9 = arith.constant 0 : index
      %16 = vector.load %arg9[%c0_8, %c0_9] : memref<128x128xf32, #tpu.memory_space<vmem>>, vector<128x128xf32>
      tpu.vector_store %arg9[%c0_8, %c0_9], %15 {strides = array<i32>} : memref<128x128xf32, #tpu.memory_space<vmem>>, vector<128x128xf32>,
    } else {
    }
    %c1_i32 = arith.constant 1 : i32
    %8 = arith.cmpi eq, %arg1, %c1_i32 : i32
    %9 = arith.extui %8 : i1 to i32
    %c0_i32_2 = arith.constant 0 : i32
    %10 = arith.cmpi ne, %9, %c0_i32_2 : i32
    scf.if %10 {
      %c0 = arith.constant 0 : index
      %c0_3 = arith.constant 0 : index
      %11 = vector.load %arg9[%c0, %c0_3] : memref<128x128xf32, #tpu.memory_space<vmem>>, vector<128x128xf32>
      %c0_4 = arith.constant 0 : index
      %c0_5 = arith.constant 0 : index
      %12 = vector.load %arg6[%c0_4, %c0_5] : memref<128x256xf32, #tpu.memory_space<vmem>>, vector<128x256xf32>
      %cst = arith.constant dense<0.000000e+00> : vector<128x256xf32>
      %13 = tpu.matmul %11, %12, %cst {dimension_numbers = #tpu.dot_dimension_numbers<[1], [0], [0], [1], [0, 0, 1, 1], [], []>} : vector<128x128xf32>, vector<128x256xf32>, vector<128x256xf32> -> vector<128x256xf32>
      %c0_6 = arith.constant 0 : index
      %c0_7 = arith.constant 0 : index
      %14 = vector.load %arg7[%c0_6, %c0_7] : memref<1x256xf32, #tpu.memory_space<vmem>>, vector<1x256xf32>
      %15 = vector.broadcast %14 : vector<1x256xf32> to vector<128x256xf32>
      %16 = arith.addf %13, %15 : vector<128x256xf32>
      %cst_8 = arith.constant 0.000000e+00 : f32
      %17 = vector.broadcast %cst_8 : f32 to vector<128x256xf32>
      %18 = arith.cmpf ogt, %16, %17 : vector<128x256xf32>
      %cst_9 = arith.constant 1.000000e-01 : f32
      %19 = vector.broadcast %cst_9 : f32 to vector<128x256xf32>
      %20 = arith.mulf %19, %16 : vector<128x256xf32>
      %21 = arith.select %18, %16, %20 : vector<128x256xi1>, vector<128x256xf32>
      %c0_10 = arith.constant 0 : index
      %c0_11 = arith.constant 0 : index
      %22 = vector.load %arg8[%c0_10, %c0_11] : memref<128x256xf32, #tpu.memory_space<vmem>>, vector<128x256xf32>
      tpu.vector_store %arg8[%c0_10, %c0_11], %21 {strides = array<i32>} : memref<128x256xf32, #tpu.memory_space<vmem>>, vector<128x256xf32>,
    } else {
    }
    return
  }
  func.func @transform_0(%arg0: i32, %arg1: i32, %arg2: memref<4xi32, #tpu.memory_space<smem>>, %arg3: memref<2xi32, #tpu.memory_space<smem>>) -> (i32, i32) {
    %c2_i32 = arith.constant 2 : i32
    %0 = arith.muli %arg0, %c2_i32 : i32
    %1 = arith.addi %0, %arg1 : i32
    %2 = arith.index_cast %1 : i32 to index
    %3 = memref.load %arg2[%2] : memref<4xi32, #tpu.memory_space<smem>>
    %c0_i32 = arith.constant 0 : i32
    return %arg0, %3 : i32, i32
  }
  func.func @transform_1(%arg0: i32, %arg1: i32, %arg2: memref<4xi32, #tpu.memory_space<smem>>, %arg3: memref<2xi32, #tpu.memory_space<smem>>) -> (i32, i32) {
    %c2_i32 = arith.constant 2 : i32
    %0 = arith.muli %arg0, %c2_i32 : i32
    %1 = arith.addi %0, %arg1 : i32
    %2 = arith.index_cast %1 : i32 to index
    %3 = memref.load %arg2[%2] : memref<4xi32, #tpu.memory_space<smem>>
    %c0_i32 = arith.constant 0 : i32
    %c0_i32_0 = arith.constant 0 : i32
    return %3, %c0_i32 : i32, i32
  }
  func.func @transform_2(%arg0: i32, %arg1: i32, %arg2: memref<4xi32, #tpu.memory_space<smem>>, %arg3: memref<2xi32, #tpu.memory_space<smem>>) -> (i32, i32) {
    %c0_i32 = arith.constant 0 : i32
    %c0_i32_0 = arith.constant 0 : i32
    %c0_i32_1 = arith.constant 0 : i32
    return %c0_i32, %c0_i32_0 : i32, i32
  }
  func.func @transform_3(%arg0: i32, %arg1: i32, %arg2: memref<4xi32, #tpu.memory_space<smem>>, %arg3: memref<2xi32, #tpu.memory_space<smem>>) -> (i32, i32) {
    %c0_i32 = arith.constant 0 : i32
    %c0_i32_0 = arith.constant 0 : i32
    %c0_i32_1 = arith.constant 0 : i32
    return %c0_i32, %c0_i32_0 : i32, i32
  }
  func.func @transform_4(%arg0: i32, %arg1: i32, %arg2: memref<4xi32, #tpu.memory_space<smem>>, %arg3: memref<2xi32, #tpu.memory_space<smem>>) -> (i32, i32) {
    %c0_i32 = arith.constant 0 : i32
    %c0_i32_0 = arith.constant 0 : i32
    return %arg0, %c0_i32 : i32, i32
  }
}

module attributes {stable_mosaic.version = 11 : i64} {
  func.func @kernel(%arg0: i32, %arg1: i32, %arg2: memref<4xi32, #tpu.memory_space<smem>>, %arg3: memref<2xi32, #tpu.memory_space<smem>>, %arg4: memref<128x128xf32, #tpu.memory_space<vmem>>, %arg5: memref<128x256xf32, #tpu.memory_space<vmem>>, %arg6: memref<256x256xf32, #tpu.memory_space<vmem>>, %arg7: memref<1x256xf32, #tpu.memory_space<vmem>>, %arg8: memref<256x128xf32, #tpu.memory_space<vmem>>, %arg9: memref<128x128xf32, #tpu.memory_space<vmem>>, %arg10: memref<128x256xf32, #tpu.memory_space<vmem>>) attributes {dimension_semantics = [#tpu.dimension_semantics<parallel>, #tpu.dimension_semantics<arbitrary>], iteration_bounds = array<i64: 2, 2>, scalar_prefetch = 2 : i64, scratch_operands = 1 : i64, tpu.core_type = #tpu.core_type<tc>, window_params = [{transform_indices = @transform_0, window_bounds = array<i64: 128, 128>}, {transform_indices = @transform_1, window_bounds = array<i64: 128, 256>}, {pipeline_mode = #tpu.pipeline_mode<synchronous>, transform_indices = @transform_2, window_bounds = array<i64: 256, 256>}, {pipeline_mode = #tpu.pipeline_mode<synchronous>, transform_indices = @transform_3, window_bounds = array<i64: 1, 256>}, {pipeline_mode = #tpu.pipeline_mode<synchronous>, transform_indices = @transform_4, window_bounds = array<i64: 256, 128>}, {transform_indices = @transform_5, window_bounds = array<i64: 128, 128>}]} {
    %c0_i32 = arith.constant 0 : i32
    %0 = arith.cmpi eq, %arg1, %c0_i32 : i32
    %1 = arith.extui %0 : i1 to i32
    %c0_i32_0 = arith.constant 0 : i32
    %2 = arith.cmpi ne, %1, %c0_i32_0 : i32
    scf.if %2 {
      %cst = arith.constant 0.000000e+00 : f32
      %11 = vector.broadcast %cst : f32 to vector<128x256xf32>
      %c0 = arith.constant 0 : index
      %c0_3 = arith.constant 0 : index
      %12 = vector.load %arg10[%c0, %c0_3] : memref<128x256xf32, #tpu.memory_space<vmem>>, vector<128x256xf32>
      tpu.vector_store %arg10[%c0, %c0_3], %11 {strides = array<i32>} : memref<128x256xf32, #tpu.memory_space<vmem>>, vector<128x256xf32>,
    } else {
    }
    %3 = arith.index_cast %arg0 : i32 to index
    %4 = memref.load %arg3[%3] : memref<2xi32, #tpu.memory_space<smem>>
    %5 = arith.cmpi slt, %arg1, %4 : i32
    %6 = arith.extui %5 : i1 to i32
    %c0_i32_1 = arith.constant 0 : i32
    %7 = arith.cmpi ne, %6, %c0_i32_1 : i32
    scf.if %7 {
      %c0 = arith.constant 0 : index
      %c0_3 = arith.constant 0 : index
      %11 = vector.load %arg5[%c0, %c0_3] : memref<128x256xf32, #tpu.memory_space<vmem>>, vector<128x256xf32>
      %c0_4 = arith.constant 0 : index
      %c0_5 = arith.constant 0 : index
      %12 = vector.load %arg10[%c0_4, %c0_5] : memref<128x256xf32, #tpu.memory_space<vmem>>, vector<128x256xf32>
      %c0_6 = arith.constant 0 : index
      %c0_7 = arith.constant 0 : index
      %13 = vector.load %arg4[%c0_6, %c0_7] : memref<128x128xf32, #tpu.memory_space<vmem>>, vector<128x128xf32>
      %cst = arith.constant dense<0.000000e+00> : vector<128x256xf32>
      %14 = tpu.matmul %13, %11, %cst {dimension_numbers = #tpu.dot_dimension_numbers<[1], [0], [0], [1], [0, 0, 1, 1], [], []>} : vector<128x128xf32>, vector<128x256xf32>, vector<128x256xf32> -> vector<128x256xf32>
      %15 = arith.addf %12, %14 : vector<128x256xf32>
      %c0_8 = arith.constant 0 : index
      %c0_9 = arith.constant 0 : index
      %16 = vector.load %arg10[%c0_8, %c0_9] : memref<128x256xf32, #tpu.memory_space<vmem>>, vector<128x256xf32>
      tpu.vector_store %arg10[%c0_8, %c0_9], %15 {strides = array<i32>} : memref<128x256xf32, #tpu.memory_space<vmem>>, vector<128x256xf32>,
    } else {
    }
    %c1_i32 = arith.constant 1 : i32
    %8 = arith.cmpi eq, %arg1, %c1_i32 : i32
    %9 = arith.extui %8 : i1 to i32
    %c0_i32_2 = arith.constant 0 : i32
    %10 = arith.cmpi ne, %9, %c0_i32_2 : i32
    scf.if %10 {
      %c0 = arith.constant 0 : index
      %c0_3 = arith.constant 0 : index
      %11 = vector.load %arg10[%c0, %c0_3] : memref<128x256xf32, #tpu.memory_space<vmem>>, vector<128x256xf32>
      %c0_4 = arith.constant 0 : index
      %c0_5 = arith.constant 0 : index
      %12 = vector.load %arg6[%c0_4, %c0_5] : memref<256x256xf32, #tpu.memory_space<vmem>>, vector<256x256xf32>
      %cst = arith.constant dense<0.000000e+00> : vector<128x256xf32>
      %13 = tpu.matmul %11, %12, %cst {dimension_numbers = #tpu.dot_dimension_numbers<[1], [0], [0], [1], [0, 0, 1, 1], [], []>} : vector<128x256xf32>, vector<256x256xf32>, vector<128x256xf32> -> vector<128x256xf32>
      %c0_6 = arith.constant 0 : index
      %c0_7 = arith.constant 0 : index
      %14 = vector.load %arg7[%c0_6, %c0_7] : memref<1x256xf32, #tpu.memory_space<vmem>>, vector<1x256xf32>
      %15 = vector.broadcast %14 : vector<1x256xf32> to vector<128x256xf32>
      %16 = arith.addf %13, %15 : vector<128x256xf32>
      %cst_8 = arith.constant 0.000000e+00 : f32
      %17 = vector.broadcast %cst_8 : f32 to vector<128x256xf32>
      %18 = arith.cmpf ogt, %16, %17 : vector<128x256xf32>
      %cst_9 = arith.constant 1.000000e-01 : f32
      %19 = vector.broadcast %cst_9 : f32 to vector<128x256xf32>
      %20 = arith.mulf %19, %16 : vector<128x256xf32>
      %21 = arith.select %18, %16, %20 : vector<128x256xi1>, vector<128x256xf32>
      %c0_10 = arith.constant 0 : index
      %c0_11 = arith.constant 0 : index
      %22 = vector.load %arg8[%c0_10, %c0_11] : memref<256x128xf32, #tpu.memory_space<vmem>>, vector<256x128xf32>
      %cst_12 = arith.constant dense<0.000000e+00> : vector<128x128xf32>
      %23 = tpu.matmul %21, %22, %cst_12 {dimension_numbers = #tpu.dot_dimension_numbers<[1], [0], [0], [1], [0, 0, 1, 1], [], []>} : vector<128x256xf32>, vector<256x128xf32>, vector<128x128xf32> -> vector<128x128xf32>
      %c0_13 = arith.constant 0 : index
      %c0_14 = arith.constant 0 : index
      %24 = vector.load %arg9[%c0_13, %c0_14] : memref<128x128xf32, #tpu.memory_space<vmem>>, vector<128x128xf32>
      tpu.vector_store %arg9[%c0_13, %c0_14], %23 {strides = array<i32>} : memref<128x128xf32, #tpu.memory_space<vmem>>, vector<128x128xf32>,
    } else {
    }
    return
  }
  func.func @transform_0(%arg0: i32, %arg1: i32, %arg2: memref<4xi32, #tpu.memory_space<smem>>, %arg3: memref<2xi32, #tpu.memory_space<smem>>) -> (i32, i32) {
    %c2_i32 = arith.constant 2 : i32
    %0 = arith.muli %arg0, %c2_i32 : i32
    %1 = arith.addi %0, %arg1 : i32
    %2 = arith.index_cast %1 : i32 to index
    %3 = memref.load %arg2[%2] : memref<4xi32, #tpu.memory_space<smem>>
    %c0_i32 = arith.constant 0 : i32
    return %arg0, %3 : i32, i32
  }
  func.func @transform_1(%arg0: i32, %arg1: i32, %arg2: memref<4xi32, #tpu.memory_space<smem>>, %arg3: memref<2xi32, #tpu.memory_space<smem>>) -> (i32, i32) {
    %c2_i32 = arith.constant 2 : i32
    %0 = arith.muli %arg0, %c2_i32 : i32
    %1 = arith.addi %0, %arg1 : i32
    %2 = arith.index_cast %1 : i32 to index
    %3 = memref.load %arg2[%2] : memref<4xi32, #tpu.memory_space<smem>>
    %c0_i32 = arith.constant 0 : i32
    %c0_i32_0 = arith.constant 0 : i32
    return %3, %c0_i32 : i32, i32
  }
  func.func @transform_2(%arg0: i32, %arg1: i32, %arg2: memref<4xi32, #tpu.memory_space<smem>>, %arg3: memref<2xi32, #tpu.memory_space<smem>>) -> (i32, i32) {
    %c0_i32 = arith.constant 0 : i32
    %c0_i32_0 = arith.constant 0 : i32
    %c0_i32_1 = arith.constant 0 : i32
    return %c0_i32, %c0_i32_0 : i32, i32
  }
  func.func @transform_3(%arg0: i32, %arg1: i32, %arg2: memref<4xi32, #tpu.memory_space<smem>>, %arg3: memref<2xi32, #tpu.memory_space<smem>>) -> (i32, i32) {
    %c0_i32 = arith.constant 0 : i32
    %c0_i32_0 = arith.constant 0 : i32
    %c0_i32_1 = arith.constant 0 : i32
    return %c0_i32, %c0_i32_0 : i32, i32
  }
  func.func @transform_4(%arg0: i32, %arg1: i32, %arg2: memref<4xi32, #tpu.memory_space<smem>>, %arg3: memref<2xi32, #tpu.memory_space<smem>>) -> (i32, i32) {
    %c0_i32 = arith.constant 0 : i32
    %c0_i32_0 = arith.constant 0 : i32
    %c0_i32_1 = arith.constant 0 : i32
    return %c0_i32, %c0_i32_0 : i32, i32
  }
  func.func @transform_5(%arg0: i32, %arg1: i32, %arg2: memref<4xi32, #tpu.memory_space<smem>>, %arg3: memref<2xi32, #tpu.memory_space<smem>>) -> (i32, i32) {
    %c0_i32 = arith.constant 0 : i32
    %c0_i32_0 = arith.constant 0 : i32
    return %arg0, %c0_i32 : i32, i32
  }
}

module attributes {stable_mosaic.version = 11 : i64} {
  func.func @kernel(%arg0: i32, %arg1: i32, %arg2: memref<4xi32, #tpu.memory_space<smem>>, %arg3: memref<2xi32, #tpu.memory_space<smem>>, %arg4: memref<128x128xf32, #tpu.memory_space<vmem>>, %arg5: memref<128x128xf32, #tpu.memory_space<vmem>>, %arg6: memref<1x128xf32, #tpu.memory_space<vmem>>, %arg7: memref<128x128xf32, #tpu.memory_space<vmem>>, %arg8: memref<128x128xf32, #tpu.memory_space<vmem>>) attributes {dimension_semantics = [#tpu.dimension_semantics<parallel>, #tpu.dimension_semantics<arbitrary>], iteration_bounds = array<i64: 2, 2>, scalar_prefetch = 2 : i64, scratch_operands = 1 : i64, tpu.core_type = #tpu.core_type<tc>, window_params = [{transform_indices = @transform_0, window_bounds = array<i64: 128, 128>}, {transform_indices = @transform_1, window_bounds = array<i64: 128, 128>}, {pipeline_mode = #tpu.pipeline_mode<synchronous>, transform_indices = @transform_2, window_bounds = array<i64: 1, 128>}, {transform_indices = @transform_3, window_bounds = array<i64: 128, 128>}]} {
    %c0_i32 = arith.constant 0 : i32
    %0 = arith.cmpi eq, %arg1, %c0_i32 : i32
    %1 = arith.extui %0 : i1 to i32
    %c0_i32_0 = arith.constant 0 : i32
    %2 = arith.cmpi ne, %1, %c0_i32_0 : i32
    scf.if %2 {
      %cst = arith.constant 0.000000e+00 : f32
      %11 = vector.broadcast %cst : f32 to vector<128x128xf32>
      %c0 = arith.constant 0 : index
      %c0_3 = arith.constant 0 : index
      %12 = vector.load %arg8[%c0, %c0_3] : memref<128x128xf32, #tpu.memory_space<vmem>>, vector<128x128xf32>
      tpu.vector_store %arg8[%c0, %c0_3], %11 {strides = array<i32>} : memref<128x128xf32, #tpu.memory_space<vmem>>, vector<128x128xf32>,
    } else {
    }
    %3 = arith.index_cast %arg0 : i32 to index
    %4 = memref.load %arg3[%3] : memref<2xi32, #tpu.memory_space<smem>>
    %5 = arith.cmpi slt, %arg1, %4 : i32
    %6 = arith.extui %5 : i1 to i32
    %c0_i32_1 = arith.constant 0 : i32
    %7 = arith.cmpi ne, %6, %c0_i32_1 : i32
    scf.if %7 {
      %c0 = arith.constant 0 : index
      %c0_3 = arith.constant 0 : index
      %11 = vector.load %arg5[%c0, %c0_3] : memref<128x128xf32, #tpu.memory_space<vmem>>, vector<128x128xf32>
      %c0_4 = arith.constant 0 : index
      %c0_5 = arith.constant 0 : index
      %12 = vector.load %arg8[%c0_4, %c0_5] : memref<128x128xf32, #tpu.memory_space<vmem>>, vector<128x128xf32>
      %c0_6 = arith.constant 0 : index
      %c0_7 = arith.constant 0 : index
      %13 = vector.load %arg4[%c0_6, %c0_7] : memref<128x128xf32, #tpu.memory_space<vmem>>, vector<128x128xf32>
      %cst = arith.constant dense<0.000000e+00> : vector<128x128xf32>
      %14 = tpu.matmul %13, %11, %cst {dimension_numbers = #tpu.dot_dimension_numbers<[1], [0], [0], [1], [0, 0, 1, 1], [], []>} : vector<128x128xf32>, vector<128x128xf32>, vector<128x128xf32> -> vector<128x128xf32>
      %15 = arith.addf %12, %14 : vector<128x128xf32>
      %c0_8 = arith.constant 0 : index
      %c0_9 = arith.constant 0 : index
      %16 = vector.load %arg8[%c0_8, %c0_9] : memref<128x128xf32, #tpu.memory_space<vmem>>, vector<128x128xf32>
      tpu.vector_store %arg8[%c0_8, %c0_9], %15 {strides = array<i32>} : memref<128x128xf32, #tpu.memory_space<vmem>>, vector<128x128xf32>,
    } else {
    }
    %c1_i32 = arith.constant 1 : i32
    %8 = arith.cmpi eq, %arg1, %c1_i32 : i32
    %9 = arith.extui %8 : i1 to i32
    %c0_i32_2 = arith.constant 0 : i32
    %10 = arith.cmpi ne, %9, %c0_i32_2 : i32
    scf.if %10 {
      %c0 = arith.constant 0 : index
      %c0_3 = arith.constant 0 : index
      %11 = vector.load %arg8[%c0, %c0_3] : memref<128x128xf32, #tpu.memory_space<vmem>>, vector<128x128xf32>
      %c0_4 = arith.constant 0 : index
      %c0_5 = arith.constant 0 : index
      %12 = vector.load %arg6[%c0_4, %c0_5] : memref<1x128xf32, #tpu.memory_space<vmem>>, vector<1x128xf32>
      %13 = vector.broadcast %12 : vector<1x128xf32> to vector<128x128xf32>
      %14 = arith.addf %11, %13 : vector<128x128xf32>
      %c0_6 = arith.constant 0 : index
      %c0_7 = arith.constant 0 : index
      %15 = vector.load %arg7[%c0_6, %c0_7] : memref<128x128xf32, #tpu.memory_space<vmem>>, vector<128x128xf32>
      tpu.vector_store %arg7[%c0_6, %c0_7], %14 {strides = array<i32>} : memref<128x128xf32, #tpu.memory_space<vmem>>, vector<128x128xf32>,
    } else {
    }
    return
  }
  func.func @transform_0(%arg0: i32, %arg1: i32, %arg2: memref<4xi32, #tpu.memory_space<smem>>, %arg3: memref<2xi32, #tpu.memory_space<smem>>) -> (i32, i32) {
    %c2_i32 = arith.constant 2 : i32
    %0 = arith.muli %arg0, %c2_i32 : i32
    %1 = arith.addi %0, %arg1 : i32
    %2 = arith.index_cast %1 : i32 to index
    %3 = memref.load %arg2[%2] : memref<4xi32, #tpu.memory_space<smem>>
    %c0_i32 = arith.constant 0 : i32
    return %arg0, %3 : i32, i32
  }
  func.func @transform_1(%arg0: i32, %arg1: i32, %arg2: memref<4xi32, #tpu.memory_space<smem>>, %arg3: memref<2xi32, #tpu.memory_space<smem>>) -> (i32, i32) {
    %c2_i32 = arith.constant 2 : i32
    %0 = arith.muli %arg0, %c2_i32 : i32
    %1 = arith.addi %0, %arg1 : i32
    %2 = arith.index_cast %1 : i32 to index
    %3 = memref.load %arg2[%2] : memref<4xi32, #tpu.memory_space<smem>>
    %c0_i32 = arith.constant 0 : i32
    %c0_i32_0 = arith.constant 0 : i32
    return %3, %c0_i32 : i32, i32
  }
  func.func @transform_2(%arg0: i32, %arg1: i32, %arg2: memref<4xi32, #tpu.memory_space<smem>>, %arg3: memref<2xi32, #tpu.memory_space<smem>>) -> (i32, i32) {
    %c0_i32 = arith.constant 0 : i32
    %c0_i32_0 = arith.constant 0 : i32
    %c0_i32_1 = arith.constant 0 : i32
    return %c0_i32, %c0_i32_0 : i32, i32
  }
  func.func @transform_3(%arg0: i32, %arg1: i32, %arg2: memref<4xi32, #tpu.memory_space<smem>>, %arg3: memref<2xi32, #tpu.memory_space<smem>>) -> (i32, i32) {
    %c0_i32 = arith.constant 0 : i32
    %c0_i32_0 = arith.constant 0 : i32
    return %arg0, %c0_i32 : i32, i32
  }
}

</mosaic_0001>

<llo_original>
// kernel: gcn3_forward.3
$region0: #{gcn3_forward.3}
  #allocation0 [shape = 'u32[]', space=smem, size = 0x4, offset = 0x4, fixed_abs, tag = 'smem constant byte address 0x4 - core index']
  #allocation1 [shape = 'u32[144,128]{1,0:T(1,128)}', space=vmem, size = 0x12000, scoped, tag = 'internal scratch']
  #allocation2 [shape = 'f32[128,128]{1,0:T(8,128)}', space=vmem, size = 0x10000, scoped, tag = 'scratch operand']
  #allocation3 [shape = 's32[1]{0}', space=sflag, size = 0x4, scoped, tag = 'scoped memory for gcn3_forward.3']
  #allocation4 [shape = 'u8[512]{0}', space=smem, size = 0x200, scoped, tag = 'prefetched SMEM operand 0']
  #allocation5 [shape = 'u8[512]{0}', space=smem, size = 0x200, scoped, tag = 'prefetched SMEM operand 1']
  %s0 = inlined_call_operand.vmem [shape: s32[4], index: 0, kind: input, shape index: {}]
  %s1 = inlined_call_operand.vmem [shape: s32[2], index: 1, kind: input, shape index: {}]
  %s2 = inlined_call_operand.vmem [shape: f32[256,256], index: 2, kind: input, shape index: {}]
  %s3 = inlined_call_operand.vmem [shape: f32[256,128], index: 3, kind: input, shape index: {}]
  %s4 = inlined_call_operand.vmem [shape: f32[128,256], index: 4, kind: input, shape index: {}]
  %s5 = inlined_call_operand.vmem [shape: f32[1,256], index: 5, kind: input, shape index: {}]
  %s6 = inlined_call_operand.vmem [shape: f32[256,256], index: 6, kind: output, shape index: {}]
  %s7 = sld [smem:[#allocation0]]
  $region99: #{gcn3_forward.3} parent=0
    _
  %s9 = ssub.s32 1, %s7
  %s10 = scalar_select 0, %s9, %s7
  %s11 = sshll.u32 %s0, 4
  %s12 = int_to_ptr.vmem [resolvable:$true] %s11
  %14 = dma.vmem_to_smem %s12, 16, [#allocation4], [#allocation3]
  %s15 = sshll.u32 %s1, 4
  %s16 = int_to_ptr.vmem [resolvable:$true] %s15
  %18 = dma.vmem_to_smem %s16, 16, [#allocation5], [#allocation3]
  %19 = dma.done [#allocation3], 32
  %20 = sfence
  $region1: #{gcn3_forward.3} parent=0
    #allocation6 [shape = 'u8[131072]{0}', space=vmem, size = 0x20000, scoped, tag = 'input window, operand 2']
    loop: start=0, step=1, limit=6
    $region2: #{gcn3_forward.3} parent=1 // loop_pre_header
      _
    $region3: #{gcn3_forward.3} parent=1 // loop_header
      %s22 = sphi 0, %s26
      %p23 = scmp.ge.s32.totalorder %s22, 6
      %s29 = sphi 0, %s41
      %s30 = sphi 0, %s37
      %s31 = sphi 0, %s29
      %s32 = sphi 0, %s30
      %s33 = sphi 0, %s31
      %s34 = sphi 0, %s32
      %s52 = sphi 0, %s54
      %s55 = sphi 0, %s52
      %s56 = sphi 0, %s55
      %s72 = sphi 0, %s56
      %s84 = sphi 0, %s86
      %s87 = sphi 0, %s84
      %s88 = sphi 0, %s87
      %s104 = sphi 0, %s88
      %s108 = sphi 0, %s108
      %s110 = sphi 0, %s108
      %s111 = sphi 0, %s110
      %s125 = sphi 0, %s111
      %s129 = sphi 0, %s129
      %s131 = sphi 0, %s129
      %s132 = sphi 0, %s131
      %s146 = sphi 0, %s132
      %s152 = sphi 0, %s154
      %s155 = sphi 0, %s152
      %s156 = sphi 0, %s155
      %s172 = sphi 0, %s156
    $region4: #{gcn3_forward.3} parent=1 // loop_header_branch
      %25 = sbr.rel (%p23) target = $region8
    $region5: #{gcn3_forward.3} parent=1 // loop_body
      %s27 = ssub.s32 %s22, 1
      %s28 = ssub.s32 %s22, 2
      %s35 = sadd.s32 1, %s30
      %p36 = scmp.ge.s32.totalorder %s35, 2
      %s37 = scalar_select %p36, 0, %s35
      %s38 = sadd.s32 1, %s29
      %s39 = scalar_select %p36, %s38, %s29
      %p40 = scmp.ge.s32.totalorder %s39, 2
      %s41 = scalar_select %p40, 0, %s39
      %s42 = smul.u32 %s29, 2
      %s43 = sadd.s32 %s42, %s30
      %s44 = sld [smem:[#allocation4 + %s43]]
      %s45 = smul.u32 %s41, 2
      %s46 = sadd.s32 %s45, %s37
      %s47 = sld [smem:[#allocation4 + %s46]]
      %s48 = ssub.s32 %s29, %s41
      %s49 = ssub.s32 %s44, %s47
      %s50 = sor.u32 %s48, %s49
      %p51 = scmp.eq.s32.totalorder %s50, 0
      %s53 = sadd.s32 %s52, 1
      %s54 = scalar_select %p51, %s52, %s53
      %p57 = pneg %p51
      %p58 = scmp.eq.s32.totalorder %s22, 3
      %p59 = por %p57, %p58
      %p60 = scmp.ne.s32.totalorder %s52, %s55
      %p61 = scmp.eq.s32.totalorder %s22, 0
      %p62 = por %p60, %p61
      %p63 = scmp.ne.s32.totalorder %s52, %s55
      %p64 = scmp.eq.s32.totalorder %s27, 3
      %p65 = por %p63, %p64
      %p66 = scmp.ne.s32.totalorder %s55, %s56
      %p67 = scmp.eq.s32.totalorder %s27, 0
      %p68 = por %p66, %p67
      %p69 = scmp.ne.s32.totalorder %s55, %s56
      %p70 = scmp.eq.s32.totalorder %s28, 3
      %p71 = por %p69, %p70
      %p73 = scmp.ne.s32.totalorder %s56, %s72
      %p74 = scmp.eq.s32.totalorder %s28, 0
      %p75 = por %p73, %p74
      %s76 = smul.u32 %s29, 2
      %s77 = sadd.s32 %s76, %s30
      %s78 = sld [smem:[#allocation4 + %s77]]
      %s79 = smul.u32 %s41, 2
      %s80 = sadd.s32 %s79, %s37
      %s81 = sld [smem:[#allocation4 + %s80]]
      %s82 = ssub.s32 %s78, %s81
      %p83 = scmp.eq.s32.totalorder %s82, 0
      %s85 = sadd.s32 %s84, 1
      %s86 = scalar_select %p83, %s84, %s85
      %p89 = pneg %p83
      %p90 = scmp.eq.s32.totalorder %s22, 3
      %p91 = por %p89, %p90
      %p92 = scmp.ne.s32.totalorder %s84, %s87
      %p93 = scmp.eq.s32.totalorder %s22, 0
      %p94 = por %p92, %p93
      %p95 = scmp.ne.s32.totalorder %s84, %s87
      %p96 = scmp.eq.s32.totalorder %s27, 3
      %p97 = por %p95, %p96
      %p98 = scmp.ne.s32.totalorder %s87, %s88
      %p99 = scmp.eq.s32.totalorder %s27, 0
      %p100 = por %p98, %p99
      %p101 = scmp.ne.s32.totalorder %s87, %s88
      %p102 = scmp.eq.s32.totalorder %s28, 3
      %p103 = por %p101, %p102
      %p105 = scmp.ne.s32.totalorder %s88, %s104
      %p106 = scmp.eq.s32.totalorder %s28, 0
      %p107 = por %p105, %p106
      %s109 = sadd.s32 %s108, 1
      %p112 = scmp.eq.s32.totalorder %s22, 3
      %p113 = scmp.ne.s32.totalorder %s108, %s110
      %p114 = scmp.eq.s32.totalorder %s22, 0
      %p115 = por %p113, %p114
      %p116 = scmp.ne.s32.totalorder %s108, %s110
      %p117 = scmp.eq.s32.totalorder %s27, 3
      %p118 = por %p116, %p117
      %p119 = scmp.ne.s32.totalorder %s110, %s111
      %p120 = scmp.eq.s32.totalorder %s27, 0
      %p121 = por %p119, %p120
      %p122 = scmp.ne.s32.totalorder %s110, %s111
      %p123 = scmp.eq.s32.totalorder %s28, 3
      %p124 = por %p122, %p123
      %p126 = scmp.ne.s32.totalorder %s111, %s125
      %p127 = scmp.eq.s32.totalorder %s28, 0
      %p128 = por %p126, %p127
      %s130 = sadd.s32 %s129, 1
      %p133 = scmp.eq.s32.totalorder %s22, 3
      %p134 = scmp.ne.s32.totalorder %s129, %s131
      %p135 = scmp.eq.s32.totalorder %s22, 0
      %p136 = por %p134, %p135
      %p137 = scmp.ne.s32.totalorder %s129, %s131
      %p138 = scmp.eq.s32.totalorder %s27, 3
      %p139 = por %p137, %p138
      %p140 = scmp.ne.s32.totalorder %s131, %s132
      %p141 = scmp.eq.s32.totalorder %s27, 0
      %p142 = por %p140, %p141
      %p143 = scmp.ne.s32.totalorder %s131, %s132
      %p144 = scmp.eq.s32.totalorder %s28, 3
      %p145 = por %p143, %p144
      %p147 = scmp.ne.s32.totalorder %s132, %s146
      %p148 = scmp.eq.s32.totalorder %s28, 0
      %p149 = por %p147, %p148
      %s150 = ssub.s32 %s29, %s41
      %p151 = scmp.eq.s32.totalorder %s150, 0
      %s153 = sadd.s32 %s152, 1
      %s154 = scalar_select %p151, %s152, %s153
      %p157 = pneg %p151
      %p158 = scmp.eq.s32.totalorder %s22, 3
      %p159 = por %p157, %p158
      %p160 = scmp.ne.s32.totalorder %s152, %s155
      %p161 = scmp.eq.s32.totalorder %s22, 0
      %p162 = por %p160, %p161
      %p163 = scmp.ne.s32.totalorder %s152, %s155
      %p164 = scmp.eq.s32.totalorder %s27, 3
      %p165 = por %p163, %p164
      %p166 = scmp.ne.s32.totalorder %s155, %s156
      %p167 = scmp.eq.s32.totalorder %s27, 0
      %p168 = por %p166, %p167
      %p169 = scmp.ne.s32.totalorder %s155, %s156
      %p170 = scmp.eq.s32.totalorder %s28, 3
      %p171 = por %p169, %p170
      %p173 = scmp.ne.s32.totalorder %s156, %s172
      %p174 = scmp.eq.s32.totalorder %s28, 0
      %p175 = por %p173, %p174
      %p176 = scmp.le.s32.totalorder 1, %s22
      %p177 = scmp.lt.s32.totalorder %s22, 5
      %p178 = pnand %p176, %p177
      %p179 = pneg %p178
      // Predicated region
      $region9: #{gcn3_forward.3} parent=5 // pred_check
        _
      $region10: #{gcn3_forward.3} parent=5 // pred_check_branch
        %181 = sbr.rel (%p178) target = $region12
      $region11: #{gcn3_forward.3} parent=5 // pred_region
        %s182 = ssub.s32 %s22, 1
        // Predicated region
        $region13: #{gcn3_forward.3} parent=11 // pred_check
          %p183 = pneg %p121
        $region14: #{gcn3_forward.3} parent=11 // pred_check_branch
          %185 = sbr.rel (%p183) target = $region16
        $region15: #{gcn3_forward.3} parent=11 // pred_region
          _
        $region16: #{gcn3_forward.3} parent=11 // pred_fallthru
          _
        // Predicated region
        $region17: #{gcn3_forward.3} parent=11 // pred_check
          %p186 = pneg %p142
        $region18: #{gcn3_forward.3} parent=11 // pred_check_branch
          %188 = sbr.rel (%p186) target = $region20
        $region19: #{gcn3_forward.3} parent=11 // pred_region
          _
        $region20: #{gcn3_forward.3} parent=11 // pred_fallthru
          _
      $region12: #{gcn3_forward.3} parent=5 // pred_fallthru
        _
      %p189 = scmp.lt.s32.totalorder %s22, 4
      // Predicated region
      $region21: #{gcn3_forward.3} parent=5 // pred_check
        %p190 = pneg %p189
      $region22: #{gcn3_forward.3} parent=5 // pred_check_branch
        %192 = sbr.rel (%p190) target = $region24
      $region23: #{gcn3_forward.3} parent=5 // pred_region
        // Predicated region
        $region25: #{gcn3_forward.3} parent=23 // pred_check
          %p193 = pneg %p62
        $region26: #{gcn3_forward.3} parent=23 // pred_check_branch
          %195 = sbr.rel (%p193) target = $region28
        $region27: #{gcn3_forward.3} parent=23 // pred_region
          %s196 = sand.u32 %s52, 1
          %s197 = sand.u32 %s52, 1
          %s198 = smul.addr %s197, 128
          %s199 = scalar_lea.vmem [#allocation6], %s198
          %s200 = smul.u32 %s29, 2
          %s201 = sadd.s32 %s200, %s30
          %s202 = sld [smem:[#allocation4 + %s201]]
          %s203 = smul.u32 16, %s29
          %s204 = smul.addr %s203, 2
          %s205 = sadd.s32 %s202, %s204
          %s206 = smul.addr %s205, 8
          %s207 = scalar_lea.vmem %s2, %s206
          // Predicated region
          $region29: #{gcn3_forward.3} parent=27 // pred_check
            _
          $region30: #{gcn3_forward.3} parent=27 // pred_check_branch
            %209 = sbr.rel (0) target = $region32
          $region31: #{gcn3_forward.3} parent=27 // pred_region
            // Predicated region
            $region33: #{gcn3_forward.3} parent=31 // pred_check
              _
            $region34: #{gcn3_forward.3} parent=31 // pred_check_branch
              %211 = sbr.rel (0) target = $region36
            $region35: #{gcn3_forward.3} parent=31 // pred_region
              // Predicated region
              $region48: #{gcn3_forward.3} parent=35 // pred_check
                _
              $region49: #{gcn3_forward.3} parent=35 // pred_check_branch
                %256 = sbr.rel (0) target = $region51
              $region50: #{gcn3_forward.3} parent=35 // pred_region
                loop: start=0, step=1, limit=1
                $region52: #{gcn3_forward.3} parent=50 // loop_pre_header
                  _
                $region53: #{gcn3_forward.3} parent=50 // loop_header
                  %s258 = sphi 0, %s262
                  %p259 = scmp.ge.s32.totalorder %s258, 1
                  %s263 = sphi %s207, %s207
                  %s264 = sphi %s199, %s199
                $region54: #{gcn3_forward.3} parent=50 // loop_header_branch
                  %261 = sbr.rel (%p259) target = $region58
                $region55: #{gcn3_forward.3} parent=50 // loop_body
                  %v265 = vld [vmem:[%s263] sm:$0xff]
                  %266 = vst [vmem:[%s264] sm:$0xff] %v265
                  %v267 = vld [vmem:[%s263 + $0x10] sm:$0xff]
                  %268 = vst [vmem:[%s264 + $0x8] sm:$0xff] %v267
                  %v269 = vld [vmem:[%s263 + $0x20] sm:$0xff]
                  %270 = vst [vmem:[%s264 + $0x10] sm:$0xff] %v269
                  %v271 = vld [vmem:[%s263 + $0x30] sm:$0xff]
                  %272 = vst [vmem:[%s264 + $0x18] sm:$0xff] %v271
                  %v273 = vld [vmem:[%s263 + $0x40] sm:$0xff]
                  %274 = vst [vmem:[%s264 + $0x20] sm:$0xff] %v273
                  %v275 = vld [vmem:[%s263 + $0x50] sm:$0xff]
                  %276 = vst [vmem:[%s264 + $0x28] sm:$0xff] %v275
                  %v277 = vld [vmem:[%s263 + $0x60] sm:$0xff]
                  %278 = vst [vmem:[%s264 + $0x30] sm:$0xff] %v277
                  %v279 = vld [vmem:[%s263 + $0x70] sm:$0xff]
                  %280 = vst [vmem:[%s264 + $0x38] sm:$0xff] %v279
                  %v281 = vld [vmem:[%s263 + $0x80] sm:$0xff]
                  %282 = vst [vmem:[%s264 + $0x40] sm:$0xff] %v281
                  %v283 = vld [vmem:[%s263 + $0x90] sm:$0xff]
                  %284 = vst [vmem:[%s264 + $0x48] sm:$0xff] %v283
                  %v285 = vld [vmem:[%s263 + $0xa0] sm:$0xff]
                  %286 = vst [vmem:[%s264 + $0x50] sm:$0xff] %v285
                  %v287 = vld [vmem:[%s263 + $0xb0] sm:$0xff]
                  %288 = vst [vmem:[%s264 + $0x58] sm:$0xff] %v287
                  %v289 = vld [vmem:[%s263 + $0xc0] sm:$0xff]
                  %290 = vst [vmem:[%s264 + $0x60] sm:$0xff] %v289
                  %v291 = vld [vmem:[%s263 + $0xd0] sm:$0xff]
                  %292 = vst [vmem:[%s264 + $0x68] sm:$0xff] %v291
                  %v293 = vld [vmem:[%s263 + $0xe0] sm:$0xff]
                  %294 = vst [vmem:[%s264 + $0x70] sm:$0xff] %v293
                  %v295 = vld [vmem:[%s263 + $0xf0] sm:$0xff]
                  %296 = vst [vmem:[%s264 + $0x78] sm:$0xff] %v295
                $region56: #{gcn3_forward.3} parent=50 // loop_footer
                  %s262 = sadd.s32 1, %s258
                $region57: #{gcn3_forward.3} parent=50 // loop_footer_branch
                  %257 = sbr.rel target = $region53
                $region58: #{gcn3_forward.3} parent=50 // loop_exit
                  _
              $region51: #{gcn3_forward.3} parent=35 // pred_fallthru
                _
              // Predicated region
              $region59: #{gcn3_forward.3} parent=35 // pred_check
                _
              $region60: #{gcn3_forward.3} parent=35 // pred_check_branch
                %298 = sbr.rel target = $region62
              $region61: #{gcn3_forward.3} parent=35 // pred_region
                _
              $region62: #{gcn3_forward.3} parent=35 // pred_fallthru
                _
            $region36: #{gcn3_forward.3} parent=31 // pred_fallthru
              _
            // Predicated region
            $region37: #{gcn3_forward.3} parent=31 // pred_check
              _
            $region38: #{gcn3_forward.3} parent=31 // pred_check_branch
              %213 = sbr.rel target = $region40
            $region39: #{gcn3_forward.3} parent=31 // pred_region
              loop: start=0, step=1, limit=1
              $region41: #{gcn3_forward.3} parent=39 // loop_pre_header
                _
              $region42: #{gcn3_forward.3} parent=39 // loop_header
                %s216 = sphi 0, %s220
                %p217 = scmp.ge.s32.totalorder %s216, 1
                %s221 = sphi %s207, %s207
                %s222 = sphi %s199, %s199
              $region43: #{gcn3_forward.3} parent=39 // loop_header_branch
                %219 = sbr.rel (%p217) target = $region47
              $region44: #{gcn3_forward.3} parent=39 // loop_body
                %v223 = vld [vmem:[%s221] sm:$0xff]
                %224 = vst [vmem:[%s222] sm:$0xff] %v223
                %v225 = vld [vmem:[%s221 + $0x10] sm:$0xff]
                %226 = vst [vmem:[%s222 + $0x8] sm:$0xff] %v225
                %v227 = vld [vmem:[%s221 + $0x20] sm:$0xff]
                %228 = vst [vmem:[%s222 + $0x10] sm:$0xff] %v227
                %v229 = vld [vmem:[%s221 + $0x30] sm:$0xff]
                %230 = vst [vmem:[%s222 + $0x18] sm:$0xff] %v229
                %v231 = vld [vmem:[%s221 + $0x40] sm:$0xff]
                %232 = vst [vmem:[%s222 + $0x20] sm:$0xff] %v231
                %v233 = vld [vmem:[%s221 + $0x50] sm:$0xff]
                %234 = vst [vmem:[%s222 + $0x28] sm:$0xff] %v233
                %v235 = vld [vmem:[%s221 + $0x60] sm:$0xff]
                %236 = vst [vmem:[%s222 + $0x30] sm:$0xff] %v235
                %v237 = vld [vmem:[%s221 + $0x70] sm:$0xff]
                %238 = vst [vmem:[%s222 + $0x38] sm:$0xff] %v237
                %v239 = vld [vmem:[%s221 + $0x80] sm:$0xff]
                %240 = vst [vmem:[%s222 + $0x40] sm:$0xff] %v239
                %v241 = vld [vmem:[%s221 + $0x90] sm:$0xff]
                %242 = vst [vmem:[%s222 + $0x48] sm:$0xff] %v241
                %v243 = vld [vmem:[%s221 + $0xa0] sm:$0xff]
                %244 = vst [vmem:[%s222 + $0x50] sm:$0xff] %v243
                %v245 = vld [vmem:[%s221 + $0xb0] sm:$0xff]
                %246 = vst [vmem:[%s222 + $0x58] sm:$0xff] %v245
                %v247 = vld [vmem:[%s221 + $0xc0] sm:$0xff]
                %248 = vst [vmem:[%s222 + $0x60] sm:$0xff] %v247
                %v249 = vld [vmem:[%s221 + $0xd0] sm:$0xff]
                %250 = vst [vmem:[%s222 + $0x68] sm:$0xff] %v249
                %v251 = vld [vmem:[%s221 + $0xe0] sm:$0xff]
                %252 = vst [vmem:[%s222 + $0x70] sm:$0xff] %v251
                %v253 = vld [vmem:[%s221 + $0xf0] sm:$0xff]
                %254 = vst [vmem:[%s222 + $0x78] sm:$0xff] %v253
              $region45: #{gcn3_forward.3} parent=39 // loop_footer
                %s220 = sadd.s32 1, %s216
              $region46: #{gcn3_forward.3} parent=39 // loop_footer_branch
                %215 = sbr.rel target = $region42
              $region47: #{gcn3_forward.3} parent=39 // loop_exit
                _
            $region40: #{gcn3_forward.3} parent=31 // pred_fallthru
              _
          $region32: #{gcn3_forward.3} parent=27 // pred_fallthru
            _
          %299 = vnop
        $region28: #{gcn3_forward.3} parent=23 // pred_fallthru
          _
        // Predicated region
        $region63: #{gcn3_forward.3} parent=23 // pred_check
          %p300 = pneg %p94
        $region64: #{gcn3_forward.3} parent=23 // pred_check_branch
          %302 = sbr.rel (%p300) target = $region66
        $region65: #{gcn3_forward.3} parent=23 // pred_region
          %s303 = smul.u32 %s29, 2
          %s304 = sadd.s32 %s303, %s30
          %s305 = sld [smem:[#allocation4 + %s304]]
          %s306 = smul.u32 16, %s305
          %p307 = scmp.lt.s32.totalorder %s306, 31
          %s308 = scalar_select %p307, %s306, 31
          %s309 = smul.addr %s308, 8
          %s310 = scalar_lea.vmem %s3, %s309
          %s311 = smul.u32 %s29, 2
          %s312 = sadd.s32 %s311, %s30
          %s313 = sld [smem:[#allocation4 + %s312]]
          %s314 = smul.u32 16, %s313
        $region66: #{gcn3_forward.3} parent=23 // pred_fallthru
          _
      $region24: #{gcn3_forward.3} parent=5 // pred_fallthru
        _
      %p315 = scmp.le.s32.totalorder 1, %s22
      %p316 = scmp.lt.s32.totalorder %s22, 5
      %p317 = pnand %p315, %p316
      %p318 = pneg %p317
      // Predicated region
      $region67: #{gcn3_forward.3} parent=5 // pred_check
        _
      $region68: #{gcn3_forward.3} parent=5 // pred_check_branch
        %320 = sbr.rel (%p317) target = $region70
      $region69: #{gcn3_forward.3} parent=5 // pred_region
        %s321 = ssub.s32 %s22, 1
        %s322 = sand.u32 %s55, 1
        %s323 = sand.u32 %s55, 1
        %s324 = smul.addr %s323, 128
        %s325 = scalar_lea.vmem [#allocation6], %s324
        // Predicated region
        $region71: #{gcn3_forward.3} parent=69 // pred_check
          %p326 = pneg %p68
        $region72: #{gcn3_forward.3} parent=69 // pred_check_branch
          %328 = sbr.rel (%p326) target = $region74
        $region73: #{gcn3_forward.3} parent=69 // pred_region
          _
        $region74: #{gcn3_forward.3} parent=69 // pred_fallthru
          _
        %s329 = sand.u32 %s55, 1
        %s330 = sand.u32 %s55, 1
        %s331 = smul.addr %s330, 128
        %s332 = scalar_lea.vmem [#allocation6], %s331
        %p333 = pneg %p68
        %p334 = pneg %p65
        %s335 = smul.u32 %s31, 2
        %s336 = sadd.s32 %s335, %s32
        %s337 = sld [smem:[#allocation4 + %s336]]
        %s338 = smul.u32 16, %s337
        %p339 = scmp.lt.s32.totalorder %s338, 31
        %s340 = scalar_select %p339, %s338, 31
        %s341 = smul.addr %s340, 8
        %s342 = scalar_lea.vmem %s3, %s341
        %p343 = pneg %p100
        %p344 = pneg %p97
        %p345 = pneg %p121
        %p346 = pneg %p118
        %p347 = pneg %p142
        %p348 = pneg %p139
        %p349 = pneg %p168
        %p350 = pneg %p165
        %s351 = smul.u32 16, %s31
        %p352 = scmp.lt.s32.totalorder %s351, 31
        %s353 = scalar_select %p352, %s351, 31
        %s354 = smul.addr %s353, 2
        %s355 = smul.addr %s354, 8
        %s356 = scalar_lea.vmem %s6, %s355
        %s357 = smul.u32 %s31, 2
        %s358 = sadd.s32 %s357, %s32
        %s359 = sld [smem:[#allocation4 + %s358]]
        %s360 = smul.u32 16, %s31
        %s361 = smul.u32 %s31, 2
        %s362 = sadd.s32 %s361, %s32
        %s363 = sld [smem:[#allocation4 + %s362]]
        %s364 = smul.u32 16, %s363
        %p365 = scmp.lt.s32.totalorder %s364, 31
        %s366 = scalar_select %p365, %s364, 31
        %s367 = smul.addr %s366, 8
        %s368 = scalar_lea.vmem %s3, %s367
        %s369 = smul.u32 %s31, 2
        %s370 = sadd.s32 %s369, %s32
        %s371 = sld [smem:[#allocation4 + %s370]]
        %s372 = smul.u32 16, %s371
        %s373 = smul.u32 16, %s31
        %p374 = scmp.lt.s32.totalorder %s373, 31
        %s375 = scalar_select %p374, %s373, 31
        %s376 = smul.addr %s375, 2
        %s377 = smul.addr %s376, 8
        %s378 = scalar_lea.vmem %s6, %s377
        %s379 = smul.u32 16, %s31
        %p380 = scmp.eq.s32.totalorder %s32, 0
        // Predicated region
        $region75: #{gcn3_forward.3} parent=69 // pred_check
          %p381 = pneg %p380
        $region76: #{gcn3_forward.3} parent=69 // pred_check_branch
          %383 = sbr.rel (%p381) target = $region78
        $region77: #{gcn3_forward.3} parent=69 // pred_region
          %384 = vst [vmem:[#allocation2] sm:$0xff] 0.0
          %385 = vst [vmem:[#allocation2 + $0x8] sm:$0xff] 0.0
          %386 = vst [vmem:[#allocation2 + $0x10] sm:$0xff] 0.0
          %387 = vst [vmem:[#allocation2 + $0x18] sm:$0xff] 0.0
          %388 = vst [vmem:[#allocation2 + $0x20] sm:$0xff] 0.0
          %389 = vst [vmem:[#allocation2 + $0x28] sm:$0xff] 0.0
          %390 = vst [vmem:[#allocation2 + $0x30] sm:$0xff] 0.0
          %391 = vst [vmem:[#allocation2 + $0x38] sm:$0xff] 0.0
          %392 = vst [vmem:[#allocation2 + $0x40] sm:$0xff] 0.0
          %393 = vst [vmem:[#allocation2 + $0x48] sm:$0xff] 0.0
          %394 = vst [vmem:[#allocation2 + $0x50] sm:$0xff] 0.0
          %395 = vst [vmem:[#allocation2 + $0x58] sm:$0xff] 0.0
          %396 = vst [vmem:[#allocation2 + $0x60] sm:$0xff] 0.0
          %397 = vst [vmem:[#allocation2 + $0x68] sm:$0xff] 0.0
          %398 = vst [vmem:[#allocation2 + $0x70] sm:$0xff] 0.0
          %399 = vst [vmem:[#allocation2 + $0x78] sm:$0xff] 0.0
        $region78: #{gcn3_forward.3} parent=69 // pred_fallthru
          _
        %s400 = sld [smem:[#allocation5 + %s31]]
        %p401 = scmp.lt.s32.totalorder %s32, %s400
        // Predicated region
        $region79: #{gcn3_forward.3} parent=69 // pred_check
          %p402 = pneg %p401
        $region80: #{gcn3_forward.3} parent=69 // pred_check_branch
          %404 = sbr.rel (%p402) target = $region82
        $region81: #{gcn3_forward.3} parent=69 // pred_region
          %v405 = vld [vmem:[%s368] sm:$0xff]
          %v406 = vld [vmem:[%s368 + $0x8] sm:$0xff]
          %v407 = vld [vmem:[%s368 + $0x10] sm:$0xff]
          %v408 = vld [vmem:[%s368 + $0x18] sm:$0xff]
          %v409 = vld [vmem:[%s368 + $0x20] sm:$0xff]
          %v410 = vld [vmem:[%s368 + $0x28] sm:$0xff]
          %v411 = vld [vmem:[%s368 + $0x30] sm:$0xff]
          %v412 = vld [vmem:[%s368 + $0x38] sm:$0xff]
          %v413 = vld [vmem:[%s368 + $0x40] sm:$0xff]
          %v414 = vld [vmem:[%s368 + $0x48] sm:$0xff]
          %v415 = vld [vmem:[%s368 + $0x50] sm:$0xff]
          %v416 = vld [vmem:[%s368 + $0x58] sm:$0xff]
          %v417 = vld [vmem:[%s368 + $0x60] sm:$0xff]
          %v418 = vld [vmem:[%s368 + $0x68] sm:$0xff]
          %v419 = vld [vmem:[%s368 + $0x70] sm:$0xff]
          %v420 = vld [vmem:[%s368 + $0x78] sm:$0xff]
          %v421 = vld [vmem:[#allocation2] sm:$0xff]
          %v422 = vld [vmem:[#allocation2 + $0x8] sm:$0xff]
          %v423 = vld [vmem:[#allocation2 + $0x10] sm:$0xff]
          %v424 = vld [vmem:[#allocation2 + $0x18] sm:$0xff]
          %v425 = vld [vmem:[#allocation2 + $0x20] sm:$0xff]
          %v426 = vld [vmem:[#allocation2 + $0x28] sm:$0xff]
          %v427 = vld [vmem:[#allocation2 + $0x30] sm:$0xff]
          %v428 = vld [vmem:[#allocation2 + $0x38] sm:$0xff]
          %v429 = vld [vmem:[#allocation2 + $0x40] sm:$0xff]
          %v430 = vld [vmem:[#allocation2 + $0x48] sm:$0xff]
          %v431 = vld [vmem:[#allocation2 + $0x50] sm:$0xff]
          %v432 = vld [vmem:[#allocation2 + $0x58] sm:$0xff]
          %v433 = vld [vmem:[#allocation2 + $0x60] sm:$0xff]
          %v434 = vld [vmem:[#allocation2 + $0x68] sm:$0xff]
          %v435 = vld [vmem:[#allocation2 + $0x70] sm:$0xff]
          %v436 = vld [vmem:[#allocation2 + $0x78] sm:$0xff]
          %v437 = vld [vmem:[%s325] sm:$0xff]
          %v438 = vld [vmem:[%s325 + $0x8] sm:$0xff]
          %v439 = vld [vmem:[%s325 + $0x10] sm:$0xff]
          %v440 = vld [vmem:[%s325 + $0x18] sm:$0xff]
          %v441 = vld [vmem:[%s325 + $0x20] sm:$0xff]
          %v442 = vld [vmem:[%s325 + $0x28] sm:$0xff]
          %v443 = vld [vmem:[%s325 + $0x30] sm:$0xff]
          %v444 = vld [vmem:[%s325 + $0x38] sm:$0xff]
          %v445 = vld [vmem:[%s325 + $0x40] sm:$0xff]
          %v446 = vld [vmem:[%s325 + $0x48] sm:$0xff]
          %v447 = vld [vmem:[%s325 + $0x50] sm:$0xff]
          %v448 = vld [vmem:[%s325 + $0x58] sm:$0xff]
          %v449 = vld [vmem:[%s325 + $0x60] sm:$0xff]
          %v450 = vld [vmem:[%s325 + $0x68] sm:$0xff]
          %v451 = vld [vmem:[%s325 + $0x70] sm:$0xff]
          %v452 = vld [vmem:[%s325 + $0x78] sm:$0xff]
          %453 = vmatprep.subr.mxu0 0.0
          %454 = vmatpush1.msra.mxu0 %v405
          %455 = vmatprep.subr.mxu0 0.0
          %456 = vmatpush1.msra.mxu0 %v406
          %457 = vmatprep.subr.mxu0 0.0
          %458 = vmatpush1.msra.mxu0 %v407
          %459 = vmatprep.subr.mxu0 0.0
          %460 = vmatpush1.msra.mxu0 %v408
          %461 = vmatprep.subr.mxu0 0.0
          %462 = vmatpush1.msra.mxu0 %v409
          %463 = vmatprep.subr.mxu0 0.0
          %464 = vmatpush1.msra.mxu0 %v410
          %465 = vmatprep.subr.mxu0 0.0
          %466 = vmatpush1.msra.mxu0 %v411
          %467 = vmatprep.subr.mxu0 0.0
          %468 = vmatpush1.msra.mxu0 %v412
          %469 = vmatprep.subr.mxu0 0.0
          %470 = vmatpush1.msra.mxu0 %v413
          %471 = vmatprep.subr.mxu0 0.0
          %472 = vmatpush1.msra.mxu0 %v414
          %473 = vmatprep.subr.mxu0 0.0
          %474 = vmatpush1.msra.mxu0 %v415
          %475 = vmatprep.subr.mxu0 0.0
          %476 = vmatpush1.msra.mxu0 %v416
          %477 = vmatprep.subr.mxu0 0.0
          %478 = vmatpush1.msra.mxu0 %v417
          %479 = vmatprep.subr.mxu0 0.0
          %480 = vmatpush1.msra.mxu0 %v418
          %481 = vmatprep.subr.mxu0 0.0
          %482 = vmatpush1.msra.mxu0 %v419
          %483 = vmatprep.subr.mxu0 0.0
          %484 = vmatpush1.msra.mxu0 %v420
          %485 = vmatprep.subr.mxu0 0.0
          %486 = vmatpush1.msra.mxu0 0.0
          %487 = vmatprep.subr.mxu0 0.0
          %488 = vmatpush1.msra.mxu0 0.0
          %489 = vmatprep.subr.mxu0 0.0
          %490 = vmatpush1.msra.mxu0 0.0
          %491 = vmatprep.subr.mxu0 0.0
          %492 = vmatpush1.msra.mxu0 0.0
          %493 = vmatprep.subr.mxu0 0.0
          %494 = vmatpush1.msra.mxu0 0.0
          %495 = vmatprep.subr.mxu0 0.0
          %496 = vmatpush1.msra.mxu0 0.0
          %497 = vmatprep.subr.mxu0 0.0
          %498 = vmatpush1.msra.mxu0 0.0
          %499 = vmatprep.subr.mxu0 0.0
          %500 = vmatpush1.msra.mxu0 0.0
          %501 = vmatprep.subr.mxu0 0.0
          %502 = vmatpush1.msra.mxu0 0.0
          %503 = vmatprep.subr.mxu0 0.0
          %504 = vmatpush1.msra.mxu0 0.0
          %505 = vmatprep.subr.mxu0 0.0
          %506 = vmatpush1.msra.mxu0 0.0
          %507 = vmatprep.subr.mxu0 0.0
          %508 = vmatpush1.msra.mxu0 0.0
          %509 = vmatprep.subr.mxu0 0.0
          %510 = vmatpush1.msra.mxu0 0.0
          %511 = vmatprep.subr.mxu0 0.0
          %512 = vmatpush1.msra.mxu0 0.0
          %513 = vmatprep.subr.mxu0 0.0
          %514 = vmatpush1.msra.mxu0 0.0
          %515 = vmatprep.subr.mxu0 0.0
          %516 = vmatpush1.msra.mxu0 0.0
          %517 = vmatprep.mubr.f32.mxu0 0.0
          %518 = vmatmul.mubr.f32.gmra.mrb[0].mxu0 %v437
          %v519 = vpop.f32.mrb[0].mxu0
          %v520 = vadd.f32 0.0, %v519
          %v521 = vpop.f32.mrb[0].mxu0
          %522 = vmatprep.mubr.f32.mxu0 0.0
          %523 = vmatmul.mubr.f32.gmra.mrb[0].mxu0 %v438
          %v524 = vpop.f32.mrb[0].mxu0
          %v525 = vadd.f32 0.0, %v524
          %v526 = vpop.f32.mrb[0].mxu0
          %527 = vmatprep.mubr.f32.mxu0 0.0
          %528 = vmatmul.mubr.f32.gmra.mrb[0].mxu0 %v439
          %v529 = vpop.f32.mrb[0].mxu0
          %v530 = vadd.f32 0.0, %v529
          %v531 = vpop.f32.mrb[0].mxu0
          %532 = vmatprep.mubr.f32.mxu0 0.0
          %533 = vmatmul.mubr.f32.gmra.mrb[0].mxu0 %v440
          %v534 = vpop.f32.mrb[0].mxu0
          %v535 = vadd.f32 0.0, %v534
          %v536 = vpop.f32.mrb[0].mxu0
          %537 = vmatprep.mubr.f32.mxu0 0.0
          %538 = vmatmul.mubr.f32.gmra.mrb[0].mxu0 %v441
          %v539 = vpop.f32.mrb[0].mxu0
          %v540 = vadd.f32 0.0, %v539
          %v541 = vpop.f32.mrb[0].mxu0
          %542 = vmatprep.mubr.f32.mxu0 0.0
          %543 = vmatmul.mubr.f32.gmra.mrb[0].mxu0 %v442
          %v544 = vpop.f32.mrb[0].mxu0
          %v545 = vadd.f32 0.0, %v544
          %v546 = vpop.f32.mrb[0].mxu0
          %547 = vmatprep.mubr.f32.mxu0 0.0
          %548 = vmatmul.mubr.f32.gmra.mrb[0].mxu0 %v443
          %v549 = vpop.f32.mrb[0].mxu0
          %v550 = vadd.f32 0.0, %v549
          %v551 = vpop.f32.mrb[0].mxu0
          %552 = vmatprep.mubr.f32.mxu0 0.0
          %553 = vmatmul.mubr.f32.gmra.mrb[0].mxu0 %v444
          %v554 = vpop.f32.mrb[0].mxu0
          %v555 = vadd.f32 0.0, %v554
          %v556 = vpop.f32.mrb[0].mxu0
          %557 = vmatprep.mubr.f32.mxu0 0.0
          %558 = vmatmul.mubr.f32.gmra.mrb[0].mxu0 %v445
          %v559 = vpop.f32.mrb[0].mxu0
          %v560 = vadd.f32 0.0, %v559
          %v561 = vpop.f32.mrb[0].mxu0
          %562 = vmatprep.mubr.f32.mxu0 0.0
          %563 = vmatmul.mubr.f32.gmra.mrb[0].mxu0 %v446
          %v564 = vpop.f32.mrb[0].mxu0
          %v565 = vadd.f32 0.0, %v564
          %v566 = vpop.f32.mrb[0].mxu0
          %567 = vmatprep.mubr.f32.mxu0 0.0
          %568 = vmatmul.mubr.f32.gmra.mrb[0].mxu0 %v447
          %v569 = vpop.f32.mrb[0].mxu0
          %v570 = vadd.f32 0.0, %v569
          %v571 = vpop.f32.mrb[0].mxu0
          %572 = vmatprep.mubr.f32.mxu0 0.0
          %573 = vmatmul.mubr.f32.gmra.mrb[0].mxu0 %v448
          %v574 = vpop.f32.mrb[0].mxu0
          %v575 = vadd.f32 0.0, %v574
          %v576 = vpop.f32.mrb[0].mxu0
          %577 = vmatprep.mubr.f32.mxu0 0.0
          %578 = vmatmul.mubr.f32.gmra.mrb[0].mxu0 %v449
          %v579 = vpop.f32.mrb[0].mxu0
          %v580 = vadd.f32 0.0, %v579
          %v581 = vpop.f32.mrb[0].mxu0
          %582 = vmatprep.mubr.f32.mxu0 0.0
          %583 = vmatmul.mubr.f32.gmra.mrb[0].mxu0 %v450
          %v584 = vpop.f32.mrb[0].mxu0
          %v585 = vadd.f32 0.0, %v584
          %v586 = vpop.f32.mrb[0].mxu0
          %587 = vmatprep.mubr.f32.mxu0 0.0
          %588 = vmatmul.mubr.f32.gmra.mrb[0].mxu0 %v451
          %v589 = vpop.f32.mrb[0].mxu0
          %v590 = vadd.f32 0.0, %v589
          %v591 = vpop.f32.mrb[0].mxu0
          %592 = vmatprep.mubr.f32.mxu0 0.0
          %593 = vmatmul.mubr.f32.gmra.mrb[0].mxu0 %v452
          %v594 = vpop.f32.mrb[0].mxu0
          %v595 = vadd.f32 0.0, %v594
          %v596 = vpop.f32.mrb[0].mxu0
          %597 = vdwg.mxu0
          %v598 = vadd.f32 %v421, %v520
          %v599 = vadd.f32 %v422, %v525
          %v600 = vadd.f32 %v423, %v530
          %v601 = vadd.f32 %v424, %v535
          %v602 = vadd.f32 %v425, %v540
          %v603 = vadd.f32 %v426, %v545
          %v604 = vadd.f32 %v427, %v550
          %v605 = vadd.f32 %v428, %v555
          %v606 = vadd.f32 %v429, %v560
          %v607 = vadd.f32 %v430, %v565
          %v608 = vadd.f32 %v431, %v570
          %v609 = vadd.f32 %v432, %v575
          %v610 = vadd.f32 %v433, %v580
          %v611 = vadd.f32 %v434, %v585
          %v612 = vadd.f32 %v435, %v590
          %v613 = vadd.f32 %v436, %v595
          %614 = vst [vmem:[#allocation2] sm:$0xff] %v598
          %615 = vst [vmem:[#allocation2 + $0x8] sm:$0xff] %v599
          %616 = vst [vmem:[#allocation2 + $0x10] sm:$0xff] %v600
          %617 = vst [vmem:[#allocation2 + $0x18] sm:$0xff] %v601
          %618 = vst [vmem:[#allocation2 + $0x20] sm:$0xff] %v602
          %619 = vst [vmem:[#allocation2 + $0x28] sm:$0xff] %v603
          %620 = vst [vmem:[#allocation2 + $0x30] sm:$0xff] %v604
          %621 = vst [vmem:[#allocation2 + $0x38] sm:$0xff] %v605
          %622 = vst [vmem:[#allocation2 + $0x40] sm:$0xff] %v606
          %623 = vst [vmem:[#allocation2 + $0x48] sm:$0xff] %v607
          %624 = vst [vmem:[#allocation2 + $0x50] sm:$0xff] %v608
          %625 = vst [vmem:[#allocation2 + $0x58] sm:$0xff] %v609
          %626 = vst [vmem:[#allocation2 + $0x60] sm:$0xff] %v610
          %627 = vst [vmem:[#allocation2 + $0x68] sm:$0xff] %v611
          %628 = vst [vmem:[#allocation2 + $0x70] sm:$0xff] %v612
          %629 = vst [vmem:[#allocation2 + $0x78] sm:$0xff] %v613
        $region82: #{gcn3_forward.3} parent=69 // pred_fallthru
          _
        %p630 = scmp.eq.s32.totalorder %s32, 1
        // Predicated region
        $region83: #{gcn3_forward.3} parent=69 // pred_check
          %p631 = pneg %p630
        $region84: #{gcn3_forward.3} parent=69 // pred_check_branch
          %633 = sbr.rel (%p631) target = $region86
        $region85: #{gcn3_forward.3} parent=69 // pred_region
          %v634 = vld [vmem:[#allocation2] sm:$0xff]
          %v635 = vld [vmem:[#allocation2 + $0x8] sm:$0xff]
          %v636 = vld [vmem:[#allocation2 + $0x10] sm:$0xff]
          %v637 = vld [vmem:[#allocation2 + $0x18] sm:$0xff]
          %v638 = vld [vmem:[#allocation2 + $0x20] sm:$0xff]
          %v639 = vld [vmem:[#allocation2 + $0x28] sm:$0xff]
          %v640 = vld [vmem:[#allocation2 + $0x30] sm:$0xff]
          %v641 = vld [vmem:[#allocation2 + $0x38] sm:$0xff]
          %v642 = vld [vmem:[#allocation2 + $0x40] sm:$0xff]
          %v643 = vld [vmem:[#allocation2 + $0x48] sm:$0xff]
          %v644 = vld [vmem:[#allocation2 + $0x50] sm:$0xff]
          %v645 = vld [vmem:[#allocation2 + $0x58] sm:$0xff]
          %v646 = vld [vmem:[#allocation2 + $0x60] sm:$0xff]
          %v647 = vld [vmem:[#allocation2 + $0x68] sm:$0xff]
          %v648 = vld [vmem:[#allocation2 + $0x70] sm:$0xff]
          %v649 = vld [vmem:[#allocation2 + $0x78] sm:$0xff]
          %v650 = vld [vmem:[%s4] sm:$0xff]
          %v651 = vld [vmem:[%s4 + $0x8] sm:$0xff]
          %v652 = vld [vmem:[%s4 + $0x10] sm:$0xff]
          %v653 = vld [vmem:[%s4 + $0x18] sm:$0xff]
          %v654 = vld [vmem:[%s4 + $0x20] sm:$0xff]
          %v655 = vld [vmem:[%s4 + $0x28] sm:$0xff]
          %v656 = vld [vmem:[%s4 + $0x30] sm:$0xff]
          %v657 = vld [vmem:[%s4 + $0x38] sm:$0xff]
          %v658 = vld [vmem:[%s4 + $0x40] sm:$0xff]
          %v659 = vld [vmem:[%s4 + $0x48] sm:$0xff]
          %v660 = vld [vmem:[%s4 + $0x50] sm:$0xff]
          %v661 = vld [vmem:[%s4 + $0x58] sm:$0xff]
          %v662 = vld [vmem:[%s4 + $0x60] sm:$0xff]
          %v663 = vld [vmem:[%s4 + $0x68] sm:$0xff]
          %v664 = vld [vmem:[%s4 + $0x70] sm:$0xff]
          %v665 = vld [vmem:[%s4 + $0x78] sm:$0xff]
          %v666 = vld [vmem:[%s4 + $0x80] sm:$0xff]
          %v667 = vld [vmem:[%s4 + $0x88] sm:$0xff]
          %v668 = vld [vmem:[%s4 + $0x90] sm:$0xff]
          %v669 = vld [vmem:[%s4 + $0x98] sm:$0xff]
          %v670 = vld [vmem:[%s4 + $0xa0] sm:$0xff]
          %v671 = vld [vmem:[%s4 + $0xa8] sm:$0xff]
          %v672 = vld [vmem:[%s4 + $0xb0] sm:$0xff]
          %v673 = vld [vmem:[%s4 + $0xb8] sm:$0xff]
          %v674 = vld [vmem:[%s4 + $0xc0] sm:$0xff]
          %v675 = vld [vmem:[%s4 + $0xc8] sm:$0xff]
          %v676 = vld [vmem:[%s4 + $0xd0] sm:$0xff]
          %v677 = vld [vmem:[%s4 + $0xd8] sm:$0xff]
          %v678 = vld [vmem:[%s4 + $0xe0] sm:$0xff]
          %v679 = vld [vmem:[%s4 + $0xe8] sm:$0xff]
          %v680 = vld [vmem:[%s4 + $0xf0] sm:$0xff]
          %v681 = vld [vmem:[%s4 + $0xf8] sm:$0xff]
          %v682 = vld [vmem:[%s5] sm:$0x3]
          %v684 = vlaneseq
          %v685 = vshrl.u32 %v684, 7
          %v686 = vsub.s32 0, %v685
          %v687 = vrot.slane %v682, %v686
          %v688 = vlaneseq
          %v689 = vshrl.u32 %v688, 7
          %v690 = vsub.s32 1, %v689
          %v691 = vrot.slane %v682, %v690
          %694 = vmatprep.subr.mxu0 %v651
          %695 = vmatpush1.msra.mxu0 %v650
          %696 = vmatprep.subr.mxu0 %v653
          %697 = vmatpush1.msra.mxu0 %v652
          %698 = vmatprep.subr.mxu0 %v655
          %699 = vmatpush1.msra.mxu0 %v654
          %700 = vmatprep.subr.mxu0 %v657
          %701 = vmatpush1.msra.mxu0 %v656
          %702 = vmatprep.subr.mxu0 %v659
          %703 = vmatpush1.msra.mxu0 %v658
          %704 = vmatprep.subr.mxu0 %v661
          %705 = vmatpush1.msra.mxu0 %v660
          %706 = vmatprep.subr.mxu0 %v663
          %707 = vmatpush1.msra.mxu0 %v662
          %708 = vmatprep.subr.mxu0 %v665
          %709 = vmatpush1.msra.mxu0 %v664
          %710 = vmatprep.subr.mxu0 %v667
          %711 = vmatpush1.msra.mxu0 %v666
          %712 = vmatprep.subr.mxu0 %v669
          %713 = vmatpush1.msra.mxu0 %v668
          %714 = vmatprep.subr.mxu0 %v671
          %715 = vmatpush1.msra.mxu0 %v670
          %716 = vmatprep.subr.mxu0 %v673
          %717 = vmatpush1.msra.mxu0 %v672
          %718 = vmatprep.subr.mxu0 %v675
          %719 = vmatpush1.msra.mxu0 %v674
          %720 = vmatprep.subr.mxu0 %v677
          %721 = vmatpush1.msra.mxu0 %v676
          %722 = vmatprep.subr.mxu0 %v679
          %723 = vmatpush1.msra.mxu0 %v678
          %724 = vmatprep.subr.mxu0 %v681
          %725 = vmatpush1.msra.mxu0 %v680
          %726 = vmatprep.subr.mxu0 0.0
          %727 = vmatpush1.msra.mxu0 0.0
          %728 = vmatprep.subr.mxu0 0.0
          %729 = vmatpush1.msra.mxu0 0.0
          %730 = vmatprep.subr.mxu0 0.0
          %731 = vmatpush1.msra.mxu0 0.0
          %732 = vmatprep.subr.mxu0 0.0
          %733 = vmatpush1.msra.mxu0 0.0
          %734 = vmatprep.subr.mxu0 0.0
          %735 = vmatpush1.msra.mxu0 0.0
          %736 = vmatprep.subr.mxu0 0.0
          %737 = vmatpush1.msra.mxu0 0.0
          %738 = vmatprep.subr.mxu0 0.0
          %739 = vmatpush1.msra.mxu0 0.0
          %740 = vmatprep.subr.mxu0 0.0
          %741 = vmatpush1.msra.mxu0 0.0
          %742 = vmatprep.subr.mxu0 0.0
          %743 = vmatpush1.msra.mxu0 0.0
          %744 = vmatprep.subr.mxu0 0.0
          %745 = vmatpush1.msra.mxu0 0.0
          %746 = vmatprep.subr.mxu0 0.0
          %747 = vmatpush1.msra.mxu0 0.0
          %748 = vmatprep.subr.mxu0 0.0
          %749 = vmatpush1.msra.mxu0 0.0
          %750 = vmatprep.subr.mxu0 0.0
          %751 = vmatpush1.msra.mxu0 0.0
          %752 = vmatprep.subr.mxu0 0.0
          %753 = vmatpush1.msra.mxu0 0.0
          %754 = vmatprep.subr.mxu0 0.0
          %755 = vmatpush1.msra.mxu0 0.0
          %756 = vmatprep.subr.mxu0 0.0
          %757 = vmatpush1.msra.mxu0 0.0
          %758 = vmatprep.mubr.f32.mxu0 0.0
          %759 = vmatmul.mubr.f32.gmra.mrb[0].mxu0 %v634
          %v760 = vpop.f32.mrb[0].mxu0
          %v761 = vadd.f32 %v687, %v760
          %v762 = vpop.f32.mrb[0].mxu0
          %v763 = vadd.f32 %v691, %v762
          %764 = vmatprep.mubr.f32.mxu0 0.0
          %765 = vmatmul.mubr.f32.gmra.mrb[0].mxu0 %v635
          %v766 = vpop.f32.mrb[0].mxu0
          %v767 = vadd.f32 %v687, %v766
          %v768 = vpop.f32.mrb[0].mxu0
          %v769 = vadd.f32 %v691, %v768
          %770 = vmatprep.mubr.f32.mxu0 0.0
          %771 = vmatmul.mubr.f32.gmra.mrb[0].mxu0 %v636
          %v772 = vpop.f32.mrb[0].mxu0
          %v773 = vadd.f32 %v687, %v772
          %v774 = vpop.f32.mrb[0].mxu0
          %v775 = vadd.f32 %v691, %v774
          %776 = vmatprep.mubr.f32.mxu0 0.0
          %777 = vmatmul.mubr.f32.gmra.mrb[0].mxu0 %v637
          %v778 = vpop.f32.mrb[0].mxu0
          %v779 = vadd.f32 %v687, %v778
          %v780 = vpop.f32.mrb[0].mxu0
          %v781 = vadd.f32 %v691, %v780
          %782 = vmatprep.mubr.f32.mxu0 0.0
          %783 = vmatmul.mubr.f32.gmra.mrb[0].mxu0 %v638
          %v784 = vpop.f32.mrb[0].mxu0
          %v785 = vadd.f32 %v687, %v784
          %v786 = vpop.f32.mrb[0].mxu0
          %v787 = vadd.f32 %v691, %v786
          %788 = vmatprep.mubr.f32.mxu0 0.0
          %789 = vmatmul.mubr.f32.gmra.mrb[0].mxu0 %v639
          %v790 = vpop.f32.mrb[0].mxu0
          %v791 = vadd.f32 %v687, %v790
          %v792 = vpop.f32.mrb[0].mxu0
          %v793 = vadd.f32 %v691, %v792
          %794 = vmatprep.mubr.f32.mxu0 0.0
          %795 = vmatmul.mubr.f32.gmra.mrb[0].mxu0 %v640
          %v796 = vpop.f32.mrb[0].mxu0
          %v797 = vadd.f32 %v687, %v796
          %v798 = vpop.f32.mrb[0].mxu0
          %v799 = vadd.f32 %v691, %v798
          %800 = vmatprep.mubr.f32.mxu0 0.0
          %801 = vmatmul.mubr.f32.gmra.mrb[0].mxu0 %v641
          %v802 = vpop.f32.mrb[0].mxu0
          %v803 = vadd.f32 %v687, %v802
          %v804 = vpop.f32.mrb[0].mxu0
          %v805 = vadd.f32 %v691, %v804
          %806 = vmatprep.mubr.f32.mxu0 0.0
          %807 = vmatmul.mubr.f32.gmra.mrb[0].mxu0 %v642
          %v808 = vpop.f32.mrb[0].mxu0
          %v809 = vadd.f32 %v687, %v808
          %v810 = vpop.f32.mrb[0].mxu0
          %v811 = vadd.f32 %v691, %v810
          %812 = vmatprep.mubr.f32.mxu0 0.0
          %813 = vmatmul.mubr.f32.gmra.mrb[0].mxu0 %v643
          %v814 = vpop.f32.mrb[0].mxu0
          %v815 = vadd.f32 %v687, %v814
          %v816 = vpop.f32.mrb[0].mxu0
          %v817 = vadd.f32 %v691, %v816
          %818 = vmatprep.mubr.f32.mxu0 0.0
          %819 = vmatmul.mubr.f32.gmra.mrb[0].mxu0 %v644
          %v820 = vpop.f32.mrb[0].mxu0
          %v821 = vadd.f32 %v687, %v820
          %v822 = vpop.f32.mrb[0].mxu0
          %v823 = vadd.f32 %v691, %v822
          %824 = vmatprep.mubr.f32.mxu0 0.0
          %825 = vmatmul.mubr.f32.gmra.mrb[0].mxu0 %v645
          %v826 = vpop.f32.mrb[0].mxu0
          %v827 = vadd.f32 %v687, %v826
          %v828 = vpop.f32.mrb[0].mxu0
          %v829 = vadd.f32 %v691, %v828
          %830 = vmatprep.mubr.f32.mxu0 0.0
          %831 = vmatmul.mubr.f32.gmra.mrb[0].mxu0 %v646
          %v832 = vpop.f32.mrb[0].mxu0
          %v833 = vadd.f32 %v687, %v832
          %v834 = vpop.f32.mrb[0].mxu0
          %v835 = vadd.f32 %v691, %v834
          %836 = vmatprep.mubr.f32.mxu0 0.0
          %837 = vmatmul.mubr.f32.gmra.mrb[0].mxu0 %v647
          %v838 = vpop.f32.mrb[0].mxu0
          %v839 = vadd.f32 %v687, %v838
          %v840 = vpop.f32.mrb[0].mxu0
          %v841 = vadd.f32 %v691, %v840
          %842 = vmatprep.mubr.f32.mxu0 0.0
          %843 = vmatmul.mubr.f32.gmra.mrb[0].mxu0 %v648
          %v844 = vpop.f32.mrb[0].mxu0
          %v845 = vadd.f32 %v687, %v844
          %v846 = vpop.f32.mrb[0].mxu0
          %v847 = vadd.f32 %v691, %v846
          %848 = vmatprep.mubr.f32.mxu0 0.0
          %849 = vmatmul.mubr.f32.gmra.mrb[0].mxu0 %v649
          %v850 = vpop.f32.mrb[0].mxu0
          %v851 = vadd.f32 %v687, %v850
          %v852 = vpop.f32.mrb[0].mxu0
          %v853 = vadd.f32 %v691, %v852
          %854 = vdwg.mxu0
          %vm855 = vcmp.gt.f32.partialorder %v761, 0.0
          %vm856 = vcmp.gt.f32.partialorder %v763, 0.0
          %vm857 = vcmp.gt.f32.partialorder %v767, 0.0
          %vm858 = vcmp.gt.f32.partialorder %v769, 0.0
          %vm859 = vcmp.gt.f32.partialorder %v773, 0.0
          %vm860 = vcmp.gt.f32.partialorder %v775, 0.0
          %vm861 = vcmp.gt.f32.partialorder %v779, 0.0
          %vm862 = vcmp.gt.f32.partialorder %v781, 0.0
          %vm863 = vcmp.gt.f32.partialorder %v785, 0.0
          %vm864 = vcmp.gt.f32.partialorder %v787, 0.0
          %vm865 = vcmp.gt.f32.partialorder %v791, 0.0
          %vm866 = vcmp.gt.f32.partialorder %v793, 0.0
          %vm867 = vcmp.gt.f32.partialorder %v797, 0.0
          %vm868 = vcmp.gt.f32.partialorder %v799, 0.0
          %vm869 = vcmp.gt.f32.partialorder %v803, 0.0
          %vm870 = vcmp.gt.f32.partialorder %v805, 0.0
          %vm871 = vcmp.gt.f32.partialorder %v809, 0.0
          %vm872 = vcmp.gt.f32.partialorder %v811, 0.0
          %vm873 = vcmp.gt.f32.partialorder %v815, 0.0
          %vm874 = vcmp.gt.f32.partialorder %v817, 0.0
          %vm875 = vcmp.gt.f32.partialorder %v821, 0.0
          %vm876 = vcmp.gt.f32.partialorder %v823, 0.0
          %vm877 = vcmp.gt.f32.partialorder %v827, 0.0
          %vm878 = vcmp.gt.f32.partialorder %v829, 0.0
          %vm879 = vcmp.gt.f32.partialorder %v833, 0.0
          %vm880 = vcmp.gt.f32.partialorder %v835, 0.0
          %vm881 = vcmp.gt.f32.partialorder %v839, 0.0
          %vm882 = vcmp.gt.f32.partialorder %v841, 0.0
          %vm883 = vcmp.gt.f32.partialorder %v845, 0.0
          %vm884 = vcmp.gt.f32.partialorder %v847, 0.0
          %vm885 = vcmp.gt.f32.partialorder %v851, 0.0
          %vm886 = vcmp.gt.f32.partialorder %v853, 0.0
          %v887 = vmul.f32 %v761, 0.1
          %v888 = vmul.f32 %v763, 0.1
          %v889 = vmul.f32 %v767, 0.1
          %v890 = vmul.f32 %v769, 0.1
          %v891 = vmul.f32 %v773, 0.1
          %v892 = vmul.f32 %v775, 0.1
          %v893 = vmul.f32 %v779, 0.1
          %v894 = vmul.f32 %v781, 0.1
          %v895 = vmul.f32 %v785, 0.1
          %v896 = vmul.f32 %v787, 0.1
          %v897 = vmul.f32 %v791, 0.1
          %v898 = vmul.f32 %v793, 0.1
          %v899 = vmul.f32 %v797, 0.1
          %v900 = vmul.f32 %v799, 0.1
          %v901 = vmul.f32 %v803, 0.1
          %v902 = vmul.f32 %v805, 0.1
          %v903 = vmul.f32 %v809, 0.1
          %v904 = vmul.f32 %v811, 0.1
          %v905 = vmul.f32 %v815, 0.1
          %v906 = vmul.f32 %v817, 0.1
          %v907 = vmul.f32 %v821, 0.1
          %v908 = vmul.f32 %v823, 0.1
          %v909 = vmul.f32 %v827, 0.1
          %v910 = vmul.f32 %v829, 0.1
          %v911 = vmul.f32 %v833, 0.1
          %v912 = vmul.f32 %v835, 0.1
          %v913 = vmul.f32 %v839, 0.1
          %v914 = vmul.f32 %v841, 0.1
          %v915 = vmul.f32 %v845, 0.1
          %v916 = vmul.f32 %v847, 0.1
          %v917 = vmul.f32 %v851, 0.1
          %v918 = vmul.f32 %v853, 0.1
          %v919 = vsel %vm855, %v761, %v887
          %v920 = vsel %vm856, %v763, %v888
          %v921 = vsel %vm857, %v767, %v889
          %v922 = vsel %vm858, %v769, %v890
          %v923 = vsel %vm859, %v773, %v891
          %v924 = vsel %vm860, %v775, %v892
          %v925 = vsel %vm861, %v779, %v893
          %v926 = vsel %vm862, %v781, %v894
          %v927 = vsel %vm863, %v785, %v895
          %v928 = vsel %vm864, %v787, %v896
          %v929 = vsel %vm865, %v791, %v897
          %v930 = vsel %vm866, %v793, %v898
          %v931 = vsel %vm867, %v797, %v899
          %v932 = vsel %vm868, %v799, %v900
          %v933 = vsel %vm869, %v803, %v901
          %v934 = vsel %vm870, %v805, %v902
          %v935 = vsel %vm871, %v809, %v903
          %v936 = vsel %vm872, %v811, %v904
          %v937 = vsel %vm873, %v815, %v905
          %v938 = vsel %vm874, %v817, %v906
          %v939 = vsel %vm875, %v821, %v907
          %v940 = vsel %vm876, %v823, %v908
          %v941 = vsel %vm877, %v827, %v909
          %v942 = vsel %vm878, %v829, %v910
          %v943 = vsel %vm879, %v833, %v911
          %v944 = vsel %vm880, %v835, %v912
          %v945 = vsel %vm881, %v839, %v913
          %v946 = vsel %vm882, %v841, %v914
          %v947 = vsel %vm883, %v845, %v915
          %v948 = vsel %vm884, %v847, %v916
          %v949 = vsel %vm885, %v851, %v917
          %v950 = vsel %vm886, %v853, %v918
          %951 = vst [vmem:[%s378] sm:$0xff] %v919
          %952 = vst [vmem:[%s378 + $0x8] sm:$0xff] %v920
          %953 = vst [vmem:[%s378 + $0x10] sm:$0xff] %v921
          %954 = vst [vmem:[%s378 + $0x18] sm:$0xff] %v922
          %955 = vst [vmem:[%s378 + $0x20] sm:$0xff] %v923
          %956 = vst [vmem:[%s378 + $0x28] sm:$0xff] %v924
          %957 = vst [vmem:[%s378 + $0x30] sm:$0xff] %v925
          %958 = vst [vmem:[%s378 + $0x38] sm:$0xff] %v926
          %959 = vst [vmem:[%s378 + $0x40] sm:$0xff] %v927
          %960 = vst [vmem:[%s378 + $0x48] sm:$0xff] %v928
          %961 = vst [vmem:[%s378 + $0x50] sm:$0xff] %v929
          %962 = vst [vmem:[%s378 + $0x58] sm:$0xff] %v930
          %963 = vst [vmem:[%s378 + $0x60] sm:$0xff] %v931
          %964 = vst [vmem:[%s378 + $0x68] sm:$0xff] %v932
          %965 = vst [vmem:[%s378 + $0x70] sm:$0xff] %v933
          %966 = vst [vmem:[%s378 + $0x78] sm:$0xff] %v934
          %967 = vst [vmem:[%s378 + $0x80] sm:$0xff] %v935
          %968 = vst [vmem:[%s378 + $0x88] sm:$0xff] %v936
          %969 = vst [vmem:[%s378 + $0x90] sm:$0xff] %v937
          %970 = vst [vmem:[%s378 + $0x98] sm:$0xff] %v938
          %971 = vst [vmem:[%s378 + $0xa0] sm:$0xff] %v939
          %972 = vst [vmem:[%s378 + $0xa8] sm:$0xff] %v940
          %973 = vst [vmem:[%s378 + $0xb0] sm:$0xff] %v941
          %974 = vst [vmem:[%s378 + $0xb8] sm:$0xff] %v942
          %975 = vst [vmem:[%s378 + $0xc0] sm:$0xff] %v943
          %976 = vst [vmem:[%s378 + $0xc8] sm:$0xff] %v944
          %977 = vst [vmem:[%s378 + $0xd0] sm:$0xff] %v945
          %978 = vst [vmem:[%s378 + $0xd8] sm:$0xff] %v946
          %979 = vst [vmem:[%s378 + $0xe0] sm:$0xff] %v947
          %980 = vst [vmem:[%s378 + $0xe8] sm:$0xff] %v948
          %981 = vst [vmem:[%s378 + $0xf0] sm:$0xff] %v949
          %982 = vst [vmem:[%s378 + $0xf8] sm:$0xff] %v950
        $region86: #{gcn3_forward.3} parent=69 // pred_fallthru
          _
        %s983 = smul.u32 16, %s31
        %p984 = scmp.lt.s32.totalorder %s983, 31
        %s985 = scalar_select %p984, %s983, 31
        %s986 = smul.addr %s985, 2
        %s987 = smul.addr %s986, 8
        %s988 = scalar_lea.vmem %s6, %s987
        // Predicated region
        $region87: #{gcn3_forward.3} parent=69 // pred_check
          %p989 = pneg %p165
        $region88: #{gcn3_forward.3} parent=69 // pred_check_branch
          %991 = sbr.rel (%p989) target = $region90
        $region89: #{gcn3_forward.3} parent=69 // pred_region
          %s992 = smul.u32 16, %s31
        $region90: #{gcn3_forward.3} parent=69 // pred_fallthru
          _
      $region70: #{gcn3_forward.3} parent=5 // pred_fallthru
        _
      %p993 = scmp.le.s32.totalorder 2, %s22
      // Predicated region
      $region91: #{gcn3_forward.3} parent=5 // pred_check
        %p994 = pneg %p993
      $region92: #{gcn3_forward.3} parent=5 // pred_check_branch
        %996 = sbr.rel (%p994) target = $region94
      $region93: #{gcn3_forward.3} parent=5 // pred_region
        %s997 = ssub.s32 %s22, 2
        // Predicated region
        $region95: #{gcn3_forward.3} parent=93 // pred_check
          %p998 = pneg %p171
        $region96: #{gcn3_forward.3} parent=93 // pred_check_branch
          %1000 = sbr.rel (%p998) target = $region98
        $region97: #{gcn3_forward.3} parent=93 // pred_region
          %s1001 = smul.u32 16, %s33
          %p1002 = scmp.lt.s32.totalorder %s1001, 31
          %s1003 = scalar_select %p1002, %s1001, 31
          %s1004 = smul.addr %s1003, 2
          %s1005 = smul.addr %s1004, 8
          %s1006 = scalar_lea.vmem %s6, %s1005
        $region98: #{gcn3_forward.3} parent=93 // pred_fallthru
          _
      $region94: #{gcn3_forward.3} parent=5 // pred_fallthru
        _
    $region6: #{gcn3_forward.3} parent=1 // loop_footer
      %s26 = sadd.s32 1, %s22
    $region7: #{gcn3_forward.3} parent=1 // loop_footer_branch
      %21 = sbr.rel target = $region3
    $region8: #{gcn3_forward.3} parent=1 // loop_exit
      _

// kernel: gcn3_forward.5
$region0: #{gcn3_forward.5}
  #allocation0 [shape = 'u32[]', space=smem, size = 0x4, offset = 0x4, fixed_abs, tag = 'smem constant byte address 0x4 - core index']
  #allocation1 [shape = 'u32[144,128]{1,0:T(1,128)}', space=vmem, size = 0x12000, scoped, tag = 'internal scratch']
  #allocation2 [shape = 'f32[128,128]{1,0:T(8,128)}', space=vmem, size = 0x10000, scoped, tag = 'scratch operand']
  #allocation3 [shape = 's32[1]{0}', space=sflag, size = 0x4, scoped, tag = 'scoped memory for gcn3_forward.5']
  #allocation4 [shape = 'u8[512]{0}', space=smem, size = 0x200, scoped, tag = 'prefetched SMEM operand 0']
  #allocation5 [shape = 'u8[512]{0}', space=smem, size = 0x200, scoped, tag = 'prefetched SMEM operand 1']
  %s0 = inlined_call_operand.vmem [shape: s32[4], index: 0, kind: input, shape index: {}]
  %s1 = inlined_call_operand.vmem [shape: s32[2], index: 1, kind: input, shape index: {}]
  %s2 = inlined_call_operand.vmem [shape: f32[256,256], index: 2, kind: input, shape index: {}]
  %s3 = inlined_call_operand.vmem [shape: f32[256,128], index: 3, kind: input, shape index: {}]
  %s4 = inlined_call_operand.vmem [shape: f32[1,128], index: 4, kind: input, shape index: {}]
  %s5 = inlined_call_operand.vmem [shape: f32[256,128], index: 5, kind: output, shape index: {}]
  %s6 = sld [smem:[#allocation0]]
  $region95: #{gcn3_forward.5} parent=0
    _
  %s8 = ssub.s32 1, %s6
  %s9 = scalar_select 0, %s8, %s6
  %s10 = sshll.u32 %s0, 4
  %s11 = int_to_ptr.vmem [resolvable:$true] %s10
  %13 = dma.vmem_to_smem %s11, 16, [#allocation4], [#allocation3]
  %s14 = sshll.u32 %s1, 4
  %s15 = int_to_ptr.vmem [resolvable:$true] %s14
  %17 = dma.vmem_to_smem %s15, 16, [#allocation5], [#allocation3]
  %18 = dma.done [#allocation3], 32
  %19 = sfence
  $region1: #{gcn3_forward.5} parent=0
    #allocation6 [shape = 'u8[131072]{0}', space=vmem, size = 0x20000, scoped, tag = 'input window, operand 2']
    loop: start=0, step=1, limit=6
    $region2: #{gcn3_forward.5} parent=1 // loop_pre_header
      _
    $region3: #{gcn3_forward.5} parent=1 // loop_header
      %s21 = sphi 0, %s25
      %p22 = scmp.ge.s32.totalorder %s21, 6
      %s28 = sphi 0, %s40
      %s29 = sphi 0, %s36
      %s30 = sphi 0, %s28
      %s31 = sphi 0, %s29
      %s32 = sphi 0, %s30
      %s33 = sphi 0, %s31
      %s51 = sphi 0, %s53
      %s54 = sphi 0, %s51
      %s55 = sphi 0, %s54
      %s71 = sphi 0, %s55
      %s83 = sphi 0, %s85
      %s86 = sphi 0, %s83
      %s87 = sphi 0, %s86
      %s103 = sphi 0, %s87
      %s107 = sphi 0, %s107
      %s109 = sphi 0, %s107
      %s110 = sphi 0, %s109
      %s124 = sphi 0, %s110
      %s130 = sphi 0, %s132
      %s133 = sphi 0, %s130
      %s134 = sphi 0, %s133
      %s150 = sphi 0, %s134
    $region4: #{gcn3_forward.5} parent=1 // loop_header_branch
      %24 = sbr.rel (%p22) target = $region8
    $region5: #{gcn3_forward.5} parent=1 // loop_body
      %s26 = ssub.s32 %s21, 1
      %s27 = ssub.s32 %s21, 2
      %s34 = sadd.s32 1, %s29
      %p35 = scmp.ge.s32.totalorder %s34, 2
      %s36 = scalar_select %p35, 0, %s34
      %s37 = sadd.s32 1, %s28
      %s38 = scalar_select %p35, %s37, %s28
      %p39 = scmp.ge.s32.totalorder %s38, 2
      %s40 = scalar_select %p39, 0, %s38
      %s41 = smul.u32 %s28, 2
      %s42 = sadd.s32 %s41, %s29
      %s43 = sld [smem:[#allocation4 + %s42]]
      %s44 = smul.u32 %s40, 2
      %s45 = sadd.s32 %s44, %s36
      %s46 = sld [smem:[#allocation4 + %s45]]
      %s47 = ssub.s32 %s28, %s40
      %s48 = ssub.s32 %s43, %s46
      %s49 = sor.u32 %s47, %s48
      %p50 = scmp.eq.s32.totalorder %s49, 0
      %s52 = sadd.s32 %s51, 1
      %s53 = scalar_select %p50, %s51, %s52
      %p56 = pneg %p50
      %p57 = scmp.eq.s32.totalorder %s21, 3
      %p58 = por %p56, %p57
      %p59 = scmp.ne.s32.totalorder %s51, %s54
      %p60 = scmp.eq.s32.totalorder %s21, 0
      %p61 = por %p59, %p60
      %p62 = scmp.ne.s32.totalorder %s51, %s54
      %p63 = scmp.eq.s32.totalorder %s26, 3
      %p64 = por %p62, %p63
      %p65 = scmp.ne.s32.totalorder %s54, %s55
      %p66 = scmp.eq.s32.totalorder %s26, 0
      %p67 = por %p65, %p66
      %p68 = scmp.ne.s32.totalorder %s54, %s55
      %p69 = scmp.eq.s32.totalorder %s27, 3
      %p70 = por %p68, %p69
      %p72 = scmp.ne.s32.totalorder %s55, %s71
      %p73 = scmp.eq.s32.totalorder %s27, 0
      %p74 = por %p72, %p73
      %s75 = smul.u32 %s28, 2
      %s76 = sadd.s32 %s75, %s29
      %s77 = sld [smem:[#allocation4 + %s76]]
      %s78 = smul.u32 %s40, 2
      %s79 = sadd.s32 %s78, %s36
      %s80 = sld [smem:[#allocation4 + %s79]]
      %s81 = ssub.s32 %s77, %s80
      %p82 = scmp.eq.s32.totalorder %s81, 0
      %s84 = sadd.s32 %s83, 1
      %s85 = scalar_select %p82, %s83, %s84
      %p88 = pneg %p82
      %p89 = scmp.eq.s32.totalorder %s21, 3
      %p90 = por %p88, %p89
      %p91 = scmp.ne.s32.totalorder %s83, %s86
      %p92 = scmp.eq.s32.totalorder %s21, 0
      %p93 = por %p91, %p92
      %p94 = scmp.ne.s32.totalorder %s83, %s86
      %p95 = scmp.eq.s32.totalorder %s26, 3
      %p96 = por %p94, %p95
      %p97 = scmp.ne.s32.totalorder %s86, %s87
      %p98 = scmp.eq.s32.totalorder %s26, 0
      %p99 = por %p97, %p98
      %p100 = scmp.ne.s32.totalorder %s86, %s87
      %p101 = scmp.eq.s32.totalorder %s27, 3
      %p102 = por %p100, %p101
      %p104 = scmp.ne.s32.totalorder %s87, %s103
      %p105 = scmp.eq.s32.totalorder %s27, 0
      %p106 = por %p104, %p105
      %s108 = sadd.s32 %s107, 1
      %p111 = scmp.eq.s32.totalorder %s21, 3
      %p112 = scmp.ne.s32.totalorder %s107, %s109
      %p113 = scmp.eq.s32.totalorder %s21, 0
      %p114 = por %p112, %p113
      %p115 = scmp.ne.s32.totalorder %s107, %s109
      %p116 = scmp.eq.s32.totalorder %s26, 3
      %p117 = por %p115, %p116
      %p118 = scmp.ne.s32.totalorder %s109, %s110
      %p119 = scmp.eq.s32.totalorder %s26, 0
      %p120 = por %p118, %p119
      %p121 = scmp.ne.s32.totalorder %s109, %s110
      %p122 = scmp.eq.s32.totalorder %s27, 3
      %p123 = por %p121, %p122
      %p125 = scmp.ne.s32.totalorder %s110, %s124
      %p126 = scmp.eq.s32.totalorder %s27, 0
      %p127 = por %p125, %p126
      %s128 = ssub.s32 %s28, %s40
      %p129 = scmp.eq.s32.totalorder %s128, 0
      %s131 = sadd.s32 %s130, 1
      %s132 = scalar_select %p129, %s130, %s131
      %p135 = pneg %p129
      %p136 = scmp.eq.s32.totalorder %s21, 3
      %p137 = por %p135, %p136
      %p138 = scmp.ne.s32.totalorder %s130, %s133
      %p139 = scmp.eq.s32.totalorder %s21, 0
      %p140 = por %p138, %p139
      %p141 = scmp.ne.s32.totalorder %s130, %s133
      %p142 = scmp.eq.s32.totalorder %s26, 3
      %p143 = por %p141, %p142
      %p144 = scmp.ne.s32.totalorder %s133, %s134
      %p145 = scmp.eq.s32.totalorder %s26, 0
      %p146 = por %p144, %p145
      %p147 = scmp.ne.s32.totalorder %s133, %s134
      %p148 = scmp.eq.s32.totalorder %s27, 3
      %p149 = por %p147, %p148
      %p151 = scmp.ne.s32.totalorder %s134, %s150
      %p152 = scmp.eq.s32.totalorder %s27, 0
      %p153 = por %p151, %p152
      %p154 = scmp.le.s32.totalorder 1, %s21
      %p155 = scmp.lt.s32.totalorder %s21, 5
      %p156 = pnand %p154, %p155
      %p157 = pneg %p156
      // Predicated region
      $region9: #{gcn3_forward.5} parent=5 // pred_check
        _
      $region10: #{gcn3_forward.5} parent=5 // pred_check_branch
        %159 = sbr.rel (%p156) target = $region12
      $region11: #{gcn3_forward.5} parent=5 // pred_region
        %s160 = ssub.s32 %s21, 1
        // Predicated region
        $region13: #{gcn3_forward.5} parent=11 // pred_check
          %p161 = pneg %p120
        $region14: #{gcn3_forward.5} parent=11 // pred_check_branch
          %163 = sbr.rel (%p161) target = $region16
        $region15: #{gcn3_forward.5} parent=11 // pred_region
          _
        $region16: #{gcn3_forward.5} parent=11 // pred_fallthru
          _
      $region12: #{gcn3_forward.5} parent=5 // pred_fallthru
        _
      %p164 = scmp.lt.s32.totalorder %s21, 4
      // Predicated region
      $region17: #{gcn3_forward.5} parent=5 // pred_check
        %p165 = pneg %p164
      $region18: #{gcn3_forward.5} parent=5 // pred_check_branch
        %167 = sbr.rel (%p165) target = $region20
      $region19: #{gcn3_forward.5} parent=5 // pred_region
        // Predicated region
        $region21: #{gcn3_forward.5} parent=19 // pred_check
          %p168 = pneg %p61
        $region22: #{gcn3_forward.5} parent=19 // pred_check_branch
          %170 = sbr.rel (%p168) target = $region24
        $region23: #{gcn3_forward.5} parent=19 // pred_region
          %s171 = sand.u32 %s51, 1
          %s172 = sand.u32 %s51, 1
          %s173 = smul.addr %s172, 128
          %s174 = scalar_lea.vmem [#allocation6], %s173
          %s175 = smul.u32 %s28, 2
          %s176 = sadd.s32 %s175, %s29
          %s177 = sld [smem:[#allocation4 + %s176]]
          %s178 = smul.u32 16, %s28
          %s179 = smul.addr %s178, 2
          %s180 = sadd.s32 %s177, %s179
          %s181 = smul.addr %s180, 8
          %s182 = scalar_lea.vmem %s2, %s181
          // Predicated region
          $region25: #{gcn3_forward.5} parent=23 // pred_check
            _
          $region26: #{gcn3_forward.5} parent=23 // pred_check_branch
            %184 = sbr.rel (0) target = $region28
          $region27: #{gcn3_forward.5} parent=23 // pred_region
            // Predicated region
            $region29: #{gcn3_forward.5} parent=27 // pred_check
              _
            $region30: #{gcn3_forward.5} parent=27 // pred_check_branch
              %186 = sbr.rel (0) target = $region32
            $region31: #{gcn3_forward.5} parent=27 // pred_region
              // Predicated region
              $region44: #{gcn3_forward.5} parent=31 // pred_check
                _
              $region45: #{gcn3_forward.5} parent=31 // pred_check_branch
                %231 = sbr.rel (0) target = $region47
              $region46: #{gcn3_forward.5} parent=31 // pred_region
                loop: start=0, step=1, limit=1
                $region48: #{gcn3_forward.5} parent=46 // loop_pre_header
                  _
                $region49: #{gcn3_forward.5} parent=46 // loop_header
                  %s233 = sphi 0, %s237
                  %p234 = scmp.ge.s32.totalorder %s233, 1
                  %s238 = sphi %s182, %s182
                  %s239 = sphi %s174, %s174
                $region50: #{gcn3_forward.5} parent=46 // loop_header_branch
                  %236 = sbr.rel (%p234) target = $region54
                $region51: #{gcn3_forward.5} parent=46 // loop_body
                  %v240 = vld [vmem:[%s238] sm:$0xff]
                  %241 = vst [vmem:[%s239] sm:$0xff] %v240
                  %v242 = vld [vmem:[%s238 + $0x10] sm:$0xff]
                  %243 = vst [vmem:[%s239 + $0x8] sm:$0xff] %v242
                  %v244 = vld [vmem:[%s238 + $0x20] sm:$0xff]
                  %245 = vst [vmem:[%s239 + $0x10] sm:$0xff] %v244
                  %v246 = vld [vmem:[%s238 + $0x30] sm:$0xff]
                  %247 = vst [vmem:[%s239 + $0x18] sm:$0xff] %v246
                  %v248 = vld [vmem:[%s238 + $0x40] sm:$0xff]
                  %249 = vst [vmem:[%s239 + $0x20] sm:$0xff] %v248
                  %v250 = vld [vmem:[%s238 + $0x50] sm:$0xff]
                  %251 = vst [vmem:[%s239 + $0x28] sm:$0xff] %v250
                  %v252 = vld [vmem:[%s238 + $0x60] sm:$0xff]
                  %253 = vst [vmem:[%s239 + $0x30] sm:$0xff] %v252
                  %v254 = vld [vmem:[%s238 + $0x70] sm:$0xff]
                  %255 = vst [vmem:[%s239 + $0x38] sm:$0xff] %v254
                  %v256 = vld [vmem:[%s238 + $0x80] sm:$0xff]
                  %257 = vst [vmem:[%s239 + $0x40] sm:$0xff] %v256
                  %v258 = vld [vmem:[%s238 + $0x90] sm:$0xff]
                  %259 = vst [vmem:[%s239 + $0x48] sm:$0xff] %v258
                  %v260 = vld [vmem:[%s238 + $0xa0] sm:$0xff]
                  %261 = vst [vmem:[%s239 + $0x50] sm:$0xff] %v260
                  %v262 = vld [vmem:[%s238 + $0xb0] sm:$0xff]
                  %263 = vst [vmem:[%s239 + $0x58] sm:$0xff] %v262
                  %v264 = vld [vmem:[%s238 + $0xc0] sm:$0xff]
                  %265 = vst [vmem:[%s239 + $0x60] sm:$0xff] %v264
                  %v266 = vld [vmem:[%s238 + $0xd0] sm:$0xff]
                  %267 = vst [vmem:[%s239 + $0x68] sm:$0xff] %v266
                  %v268 = vld [vmem:[%s238 + $0xe0] sm:$0xff]
                  %269 = vst [vmem:[%s239 + $0x70] sm:$0xff] %v268
                  %v270 = vld [vmem:[%s238 + $0xf0] sm:$0xff]
                  %271 = vst [vmem:[%s239 + $0x78] sm:$0xff] %v270
                $region52: #{gcn3_forward.5} parent=46 // loop_footer
                  %s237 = sadd.s32 1, %s233
                $region53: #{gcn3_forward.5} parent=46 // loop_footer_branch
                  %232 = sbr.rel target = $region49
                $region54: #{gcn3_forward.5} parent=46 // loop_exit
                  _
              $region47: #{gcn3_forward.5} parent=31 // pred_fallthru
                _
              // Predicated region
              $region55: #{gcn3_forward.5} parent=31 // pred_check
                _
              $region56: #{gcn3_forward.5} parent=31 // pred_check_branch
                %273 = sbr.rel target = $region58
              $region57: #{gcn3_forward.5} parent=31 // pred_region
                _
              $region58: #{gcn3_forward.5} parent=31 // pred_fallthru
                _
            $region32: #{gcn3_forward.5} parent=27 // pred_fallthru
              _
            // Predicated region
            $region33: #{gcn3_forward.5} parent=27 // pred_check
              _
            $region34: #{gcn3_forward.5} parent=27 // pred_check_branch
              %188 = sbr.rel target = $region36
            $region35: #{gcn3_forward.5} parent=27 // pred_region
              loop: start=0, step=1, limit=1
              $region37: #{gcn3_forward.5} parent=35 // loop_pre_header
                _
              $region38: #{gcn3_forward.5} parent=35 // loop_header
                %s191 = sphi 0, %s195
                %p192 = scmp.ge.s32.totalorder %s191, 1
                %s196 = sphi %s182, %s182
                %s197 = sphi %s174, %s174
              $region39: #{gcn3_forward.5} parent=35 // loop_header_branch
                %194 = sbr.rel (%p192) target = $region43
              $region40: #{gcn3_forward.5} parent=35 // loop_body
                %v198 = vld [vmem:[%s196] sm:$0xff]
                %199 = vst [vmem:[%s197] sm:$0xff] %v198
                %v200 = vld [vmem:[%s196 + $0x10] sm:$0xff]
                %201 = vst [vmem:[%s197 + $0x8] sm:$0xff] %v200
                %v202 = vld [vmem:[%s196 + $0x20] sm:$0xff]
                %203 = vst [vmem:[%s197 + $0x10] sm:$0xff] %v202
                %v204 = vld [vmem:[%s196 + $0x30] sm:$0xff]
                %205 = vst [vmem:[%s197 + $0x18] sm:$0xff] %v204
                %v206 = vld [vmem:[%s196 + $0x40] sm:$0xff]
                %207 = vst [vmem:[%s197 + $0x20] sm:$0xff] %v206
                %v208 = vld [vmem:[%s196 + $0x50] sm:$0xff]
                %209 = vst [vmem:[%s197 + $0x28] sm:$0xff] %v208
                %v210 = vld [vmem:[%s196 + $0x60] sm:$0xff]
                %211 = vst [vmem:[%s197 + $0x30] sm:$0xff] %v210
                %v212 = vld [vmem:[%s196 + $0x70] sm:$0xff]
                %213 = vst [vmem:[%s197 + $0x38] sm:$0xff] %v212
                %v214 = vld [vmem:[%s196 + $0x80] sm:$0xff]
                %215 = vst [vmem:[%s197 + $0x40] sm:$0xff] %v214
                %v216 = vld [vmem:[%s196 + $0x90] sm:$0xff]
                %217 = vst [vmem:[%s197 + $0x48] sm:$0xff] %v216
                %v218 = vld [vmem:[%s196 + $0xa0] sm:$0xff]
                %219 = vst [vmem:[%s197 + $0x50] sm:$0xff] %v218
                %v220 = vld [vmem:[%s196 + $0xb0] sm:$0xff]
                %221 = vst [vmem:[%s197 + $0x58] sm:$0xff] %v220
                %v222 = vld [vmem:[%s196 + $0xc0] sm:$0xff]
                %223 = vst [vmem:[%s197 + $0x60] sm:$0xff] %v222
                %v224 = vld [vmem:[%s196 + $0xd0] sm:$0xff]
                %225 = vst [vmem:[%s197 + $0x68] sm:$0xff] %v224
                %v226 = vld [vmem:[%s196 + $0xe0] sm:$0xff]
                %227 = vst [vmem:[%s197 + $0x70] sm:$0xff] %v226
                %v228 = vld [vmem:[%s196 + $0xf0] sm:$0xff]
                %229 = vst [vmem:[%s197 + $0x78] sm:$0xff] %v228
              $region41: #{gcn3_forward.5} parent=35 // loop_footer
                %s195 = sadd.s32 1, %s191
              $region42: #{gcn3_forward.5} parent=35 // loop_footer_branch
                %190 = sbr.rel target = $region38
              $region43: #{gcn3_forward.5} parent=35 // loop_exit
                _
            $region36: #{gcn3_forward.5} parent=27 // pred_fallthru
              _
          $region28: #{gcn3_forward.5} parent=23 // pred_fallthru
            _
          %274 = vnop
        $region24: #{gcn3_forward.5} parent=19 // pred_fallthru
          _
        // Predicated region
        $region59: #{gcn3_forward.5} parent=19 // pred_check
          %p275 = pneg %p93
        $region60: #{gcn3_forward.5} parent=19 // pred_check_branch
          %277 = sbr.rel (%p275) target = $region62
        $region61: #{gcn3_forward.5} parent=19 // pred_region
          %s278 = smul.u32 %s28, 2
          %s279 = sadd.s32 %s278, %s29
          %s280 = sld [smem:[#allocation4 + %s279]]
          %s281 = smul.u32 16, %s280
          %p282 = scmp.lt.s32.totalorder %s281, 31
          %s283 = scalar_select %p282, %s281, 31
          %s284 = smul.addr %s283, 8
          %s285 = scalar_lea.vmem %s3, %s284
          %s286 = smul.u32 %s28, 2
          %s287 = sadd.s32 %s286, %s29
          %s288 = sld [smem:[#allocation4 + %s287]]
          %s289 = smul.u32 16, %s288
        $region62: #{gcn3_forward.5} parent=19 // pred_fallthru
          _
      $region20: #{gcn3_forward.5} parent=5 // pred_fallthru
        _
      %p290 = scmp.le.s32.totalorder 1, %s21
      %p291 = scmp.lt.s32.totalorder %s21, 5
      %p292 = pnand %p290, %p291
      %p293 = pneg %p292
      // Predicated region
      $region63: #{gcn3_forward.5} parent=5 // pred_check
        _
      $region64: #{gcn3_forward.5} parent=5 // pred_check_branch
        %295 = sbr.rel (%p292) target = $region66
      $region65: #{gcn3_forward.5} parent=5 // pred_region
        %s296 = ssub.s32 %s21, 1
        %s297 = sand.u32 %s54, 1
        %s298 = sand.u32 %s54, 1
        %s299 = smul.addr %s298, 128
        %s300 = scalar_lea.vmem [#allocation6], %s299
        // Predicated region
        $region67: #{gcn3_forward.5} parent=65 // pred_check
          %p301 = pneg %p67
        $region68: #{gcn3_forward.5} parent=65 // pred_check_branch
          %303 = sbr.rel (%p301) target = $region70
        $region69: #{gcn3_forward.5} parent=65 // pred_region
          _
        $region70: #{gcn3_forward.5} parent=65 // pred_fallthru
          _
        %s304 = sand.u32 %s54, 1
        %s305 = sand.u32 %s54, 1
        %s306 = smul.addr %s305, 128
        %s307 = scalar_lea.vmem [#allocation6], %s306
        %p308 = pneg %p67
        %p309 = pneg %p64
        %s310 = smul.u32 %s30, 2
        %s311 = sadd.s32 %s310, %s31
        %s312 = sld [smem:[#allocation4 + %s311]]
        %s313 = smul.u32 16, %s312
        %p314 = scmp.lt.s32.totalorder %s313, 31
        %s315 = scalar_select %p314, %s313, 31
        %s316 = smul.addr %s315, 8
        %s317 = scalar_lea.vmem %s3, %s316
        %p318 = pneg %p99
        %p319 = pneg %p96
        %p320 = pneg %p120
        %p321 = pneg %p117
        %p322 = pneg %p146
        %p323 = pneg %p143
        %s324 = smul.u32 16, %s30
        %p325 = scmp.lt.s32.totalorder %s324, 31
        %s326 = scalar_select %p325, %s324, 31
        %s327 = smul.addr %s326, 8
        %s328 = scalar_lea.vmem %s5, %s327
        %s329 = smul.u32 %s30, 2
        %s330 = sadd.s32 %s329, %s31
        %s331 = sld [smem:[#allocation4 + %s330]]
        %s332 = smul.u32 16, %s30
        %s333 = smul.u32 %s30, 2
        %s334 = sadd.s32 %s333, %s31
        %s335 = sld [smem:[#allocation4 + %s334]]
        %s336 = smul.u32 16, %s335
        %p337 = scmp.lt.s32.totalorder %s336, 31
        %s338 = scalar_select %p337, %s336, 31
        %s339 = smul.addr %s338, 8
        %s340 = scalar_lea.vmem %s3, %s339
        %s341 = smul.u32 %s30, 2
        %s342 = sadd.s32 %s341, %s31
        %s343 = sld [smem:[#allocation4 + %s342]]
        %s344 = smul.u32 16, %s343
        %s345 = smul.u32 16, %s30
        %p346 = scmp.lt.s32.totalorder %s345, 31
        %s347 = scalar_select %p346, %s345, 31
        %s348 = smul.addr %s347, 8
        %s349 = scalar_lea.vmem %s5, %s348
        %s350 = smul.u32 16, %s30
        %p351 = scmp.eq.s32.totalorder %s31, 0
        // Predicated region
        $region71: #{gcn3_forward.5} parent=65 // pred_check
          %p352 = pneg %p351
        $region72: #{gcn3_forward.5} parent=65 // pred_check_branch
          %354 = sbr.rel (%p352) target = $region74
        $region73: #{gcn3_forward.5} parent=65 // pred_region
          %355 = vst [vmem:[#allocation2] sm:$0xff] 0.0
          %356 = vst [vmem:[#allocation2 + $0x8] sm:$0xff] 0.0
          %357 = vst [vmem:[#allocation2 + $0x10] sm:$0xff] 0.0
          %358 = vst [vmem:[#allocation2 + $0x18] sm:$0xff] 0.0
          %359 = vst [vmem:[#allocation2 + $0x20] sm:$0xff] 0.0
          %360 = vst [vmem:[#allocation2 + $0x28] sm:$0xff] 0.0
          %361 = vst [vmem:[#allocation2 + $0x30] sm:$0xff] 0.0
          %362 = vst [vmem:[#allocation2 + $0x38] sm:$0xff] 0.0
          %363 = vst [vmem:[#allocation2 + $0x40] sm:$0xff] 0.0
          %364 = vst [vmem:[#allocation2 + $0x48] sm:$0xff] 0.0
          %365 = vst [vmem:[#allocation2 + $0x50] sm:$0xff] 0.0
          %366 = vst [vmem:[#allocation2 + $0x58] sm:$0xff] 0.0
          %367 = vst [vmem:[#allocation2 + $0x60] sm:$0xff] 0.0
          %368 = vst [vmem:[#allocation2 + $0x68] sm:$0xff] 0.0
          %369 = vst [vmem:[#allocation2 + $0x70] sm:$0xff] 0.0
          %370 = vst [vmem:[#allocation2 + $0x78] sm:$0xff] 0.0
        $region74: #{gcn3_forward.5} parent=65 // pred_fallthru
          _
        %s371 = sld [smem:[#allocation5 + %s30]]
        %p372 = scmp.lt.s32.totalorder %s31, %s371
        // Predicated region
        $region75: #{gcn3_forward.5} parent=65 // pred_check
          %p373 = pneg %p372
        $region76: #{gcn3_forward.5} parent=65 // pred_check_branch
          %375 = sbr.rel (%p373) target = $region78
        $region77: #{gcn3_forward.5} parent=65 // pred_region
          %v376 = vld [vmem:[%s340] sm:$0xff]
          %v377 = vld [vmem:[%s340 + $0x8] sm:$0xff]
          %v378 = vld [vmem:[%s340 + $0x10] sm:$0xff]
          %v379 = vld [vmem:[%s340 + $0x18] sm:$0xff]
          %v380 = vld [vmem:[%s340 + $0x20] sm:$0xff]
          %v381 = vld [vmem:[%s340 + $0x28] sm:$0xff]
          %v382 = vld [vmem:[%s340 + $0x30] sm:$0xff]
          %v383 = vld [vmem:[%s340 + $0x38] sm:$0xff]
          %v384 = vld [vmem:[%s340 + $0x40] sm:$0xff]
          %v385 = vld [vmem:[%s340 + $0x48] sm:$0xff]
          %v386 = vld [vmem:[%s340 + $0x50] sm:$0xff]
          %v387 = vld [vmem:[%s340 + $0x58] sm:$0xff]
          %v388 = vld [vmem:[%s340 + $0x60] sm:$0xff]
          %v389 = vld [vmem:[%s340 + $0x68] sm:$0xff]
          %v390 = vld [vmem:[%s340 + $0x70] sm:$0xff]
          %v391 = vld [vmem:[%s340 + $0x78] sm:$0xff]
          %v392 = vld [vmem:[#allocation2] sm:$0xff]
          %v393 = vld [vmem:[#allocation2 + $0x8] sm:$0xff]
          %v394 = vld [vmem:[#allocation2 + $0x10] sm:$0xff]
          %v395 = vld [vmem:[#allocation2 + $0x18] sm:$0xff]
          %v396 = vld [vmem:[#allocation2 + $0x20] sm:$0xff]
          %v397 = vld [vmem:[#allocation2 + $0x28] sm:$0xff]
          %v398 = vld [vmem:[#allocation2 + $0x30] sm:$0xff]
          %v399 = vld [vmem:[#allocation2 + $0x38] sm:$0xff]
          %v400 = vld [vmem:[#allocation2 + $0x40] sm:$0xff]
          %v401 = vld [vmem:[#allocation2 + $0x48] sm:$0xff]
          %v402 = vld [vmem:[#allocation2 + $0x50] sm:$0xff]
          %v403 = vld [vmem:[#allocation2 + $0x58] sm:$0xff]
          %v404 = vld [vmem:[#allocation2 + $0x60] sm:$0xff]
          %v405 = vld [vmem:[#allocation2 + $0x68] sm:$0xff]
          %v406 = vld [vmem:[#allocation2 + $0x70] sm:$0xff]
          %v407 = vld [vmem:[#allocation2 + $0x78] sm:$0xff]
          %v408 = vld [vmem:[%s300] sm:$0xff]
          %v409 = vld [vmem:[%s300 + $0x8] sm:$0xff]
          %v410 = vld [vmem:[%s300 + $0x10] sm:$0xff]
          %v411 = vld [vmem:[%s300 + $0x18] sm:$0xff]
          %v412 = vld [vmem:[%s300 + $0x20] sm:$0xff]
          %v413 = vld [vmem:[%s300 + $0x28] sm:$0xff]
          %v414 = vld [vmem:[%s300 + $0x30] sm:$0xff]
          %v415 = vld [vmem:[%s300 + $0x38] sm:$0xff]
          %v416 = vld [vmem:[%s300 + $0x40] sm:$0xff]
          %v417 = vld [vmem:[%s300 + $0x48] sm:$0xff]
          %v418 = vld [vmem:[%s300 + $0x50] sm:$0xff]
          %v419 = vld [vmem:[%s300 + $0x58] sm:$0xff]
          %v420 = vld [vmem:[%s300 + $0x60] sm:$0xff]
          %v421 = vld [vmem:[%s300 + $0x68] sm:$0xff]
          %v422 = vld [vmem:[%s300 + $0x70] sm:$0xff]
          %v423 = vld [vmem:[%s300 + $0x78] sm:$0xff]
          %424 = vmatprep.subr.mxu0 0.0
          %425 = vmatpush1.msra.mxu0 %v376
          %426 = vmatprep.subr.mxu0 0.0
          %427 = vmatpush1.msra.mxu0 %v377
          %428 = vmatprep.subr.mxu0 0.0
          %429 = vmatpush1.msra.mxu0 %v378
          %430 = vmatprep.subr.mxu0 0.0
          %431 = vmatpush1.msra.mxu0 %v379
          %432 = vmatprep.subr.mxu0 0.0
          %433 = vmatpush1.msra.mxu0 %v380
          %434 = vmatprep.subr.mxu0 0.0
          %435 = vmatpush1.msra.mxu0 %v381
          %436 = vmatprep.subr.mxu0 0.0
          %437 = vmatpush1.msra.mxu0 %v382
          %438 = vmatprep.subr.mxu0 0.0
          %439 = vmatpush1.msra.mxu0 %v383
          %440 = vmatprep.subr.mxu0 0.0
          %441 = vmatpush1.msra.mxu0 %v384
          %442 = vmatprep.subr.mxu0 0.0
          %443 = vmatpush1.msra.mxu0 %v385
          %444 = vmatprep.subr.mxu0 0.0
          %445 = vmatpush1.msra.mxu0 %v386
          %446 = vmatprep.subr.mxu0 0.0
          %447 = vmatpush1.msra.mxu0 %v387
          %448 = vmatprep.subr.mxu0 0.0
          %449 = vmatpush1.msra.mxu0 %v388
          %450 = vmatprep.subr.mxu0 0.0
          %451 = vmatpush1.msra.mxu0 %v389
          %452 = vmatprep.subr.mxu0 0.0
          %453 = vmatpush1.msra.mxu0 %v390
          %454 = vmatprep.subr.mxu0 0.0
          %455 = vmatpush1.msra.mxu0 %v391
          %456 = vmatprep.subr.mxu0 0.0
          %457 = vmatpush1.msra.mxu0 0.0
          %458 = vmatprep.subr.mxu0 0.0
          %459 = vmatpush1.msra.mxu0 0.0
          %460 = vmatprep.subr.mxu0 0.0
          %461 = vmatpush1.msra.mxu0 0.0
          %462 = vmatprep.subr.mxu0 0.0
          %463 = vmatpush1.msra.mxu0 0.0
          %464 = vmatprep.subr.mxu0 0.0
          %465 = vmatpush1.msra.mxu0 0.0
          %466 = vmatprep.subr.mxu0 0.0
          %467 = vmatpush1.msra.mxu0 0.0
          %468 = vmatprep.subr.mxu0 0.0
          %469 = vmatpush1.msra.mxu0 0.0
          %470 = vmatprep.subr.mxu0 0.0
          %471 = vmatpush1.msra.mxu0 0.0
          %472 = vmatprep.subr.mxu0 0.0
          %473 = vmatpush1.msra.mxu0 0.0
          %474 = vmatprep.subr.mxu0 0.0
          %475 = vmatpush1.msra.mxu0 0.0
          %476 = vmatprep.subr.mxu0 0.0
          %477 = vmatpush1.msra.mxu0 0.0
          %478 = vmatprep.subr.mxu0 0.0
          %479 = vmatpush1.msra.mxu0 0.0
          %480 = vmatprep.subr.mxu0 0.0
          %481 = vmatpush1.msra.mxu0 0.0
          %482 = vmatprep.subr.mxu0 0.0
          %483 = vmatpush1.msra.mxu0 0.0
          %484 = vmatprep.subr.mxu0 0.0
          %485 = vmatpush1.msra.mxu0 0.0
          %486 = vmatprep.subr.mxu0 0.0
          %487 = vmatpush1.msra.mxu0 0.0
          %488 = vmatprep.mubr.f32.mxu0 0.0
          %489 = vmatmul.mubr.f32.gmra.mrb[0].mxu0 %v408
          %v490 = vpop.f32.mrb[0].mxu0
          %v491 = vadd.f32 0.0, %v490
          %v492 = vpop.f32.mrb[0].mxu0
          %493 = vmatprep.mubr.f32.mxu0 0.0
          %494 = vmatmul.mubr.f32.gmra.mrb[0].mxu0 %v409
          %v495 = vpop.f32.mrb[0].mxu0
          %v496 = vadd.f32 0.0, %v495
          %v497 = vpop.f32.mrb[0].mxu0
          %498 = vmatprep.mubr.f32.mxu0 0.0
          %499 = vmatmul.mubr.f32.gmra.mrb[0].mxu0 %v410
          %v500 = vpop.f32.mrb[0].mxu0
          %v501 = vadd.f32 0.0, %v500
          %v502 = vpop.f32.mrb[0].mxu0
          %503 = vmatprep.mubr.f32.mxu0 0.0
          %504 = vmatmul.mubr.f32.gmra.mrb[0].mxu0 %v411
          %v505 = vpop.f32.mrb[0].mxu0
          %v506 = vadd.f32 0.0, %v505
          %v507 = vpop.f32.mrb[0].mxu0
          %508 = vmatprep.mubr.f32.mxu0 0.0
          %509 = vmatmul.mubr.f32.gmra.mrb[0].mxu0 %v412
          %v510 = vpop.f32.mrb[0].mxu0
          %v511 = vadd.f32 0.0, %v510
          %v512 = vpop.f32.mrb[0].mxu0
          %513 = vmatprep.mubr.f32.mxu0 0.0
          %514 = vmatmul.mubr.f32.gmra.mrb[0].mxu0 %v413
          %v515 = vpop.f32.mrb[0].mxu0
          %v516 = vadd.f32 0.0, %v515
          %v517 = vpop.f32.mrb[0].mxu0
          %518 = vmatprep.mubr.f32.mxu0 0.0
          %519 = vmatmul.mubr.f32.gmra.mrb[0].mxu0 %v414
          %v520 = vpop.f32.mrb[0].mxu0
          %v521 = vadd.f32 0.0, %v520
          %v522 = vpop.f32.mrb[0].mxu0
          %523 = vmatprep.mubr.f32.mxu0 0.0
          %524 = vmatmul.mubr.f32.gmra.mrb[0].mxu0 %v415
          %v525 = vpop.f32.mrb[0].mxu0
          %v526 = vadd.f32 0.0, %v525
          %v527 = vpop.f32.mrb[0].mxu0
          %528 = vmatprep.mubr.f32.mxu0 0.0
          %529 = vmatmul.mubr.f32.gmra.mrb[0].mxu0 %v416
          %v530 = vpop.f32.mrb[0].mxu0
          %v531 = vadd.f32 0.0, %v530
          %v532 = vpop.f32.mrb[0].mxu0
          %533 = vmatprep.mubr.f32.mxu0 0.0
          %534 = vmatmul.mubr.f32.gmra.mrb[0].mxu0 %v417
          %v535 = vpop.f32.mrb[0].mxu0
          %v536 = vadd.f32 0.0, %v535
          %v537 = vpop.f32.mrb[0].mxu0
          %538 = vmatprep.mubr.f32.mxu0 0.0
          %539 = vmatmul.mubr.f32.gmra.mrb[0].mxu0 %v418
          %v540 = vpop.f32.mrb[0].mxu0
          %v541 = vadd.f32 0.0, %v540
          %v542 = vpop.f32.mrb[0].mxu0
          %543 = vmatprep.mubr.f32.mxu0 0.0
          %544 = vmatmul.mubr.f32.gmra.mrb[0].mxu0 %v419
          %v545 = vpop.f32.mrb[0].mxu0
          %v546 = vadd.f32 0.0, %v545
          %v547 = vpop.f32.mrb[0].mxu0
          %548 = vmatprep.mubr.f32.mxu0 0.0
          %549 = vmatmul.mubr.f32.gmra.mrb[0].mxu0 %v420
          %v550 = vpop.f32.mrb[0].mxu0
          %v551 = vadd.f32 0.0, %v550
          %v552 = vpop.f32.mrb[0].mxu0
          %553 = vmatprep.mubr.f32.mxu0 0.0
          %554 = vmatmul.mubr.f32.gmra.mrb[0].mxu0 %v421
          %v555 = vpop.f32.mrb[0].mxu0
          %v556 = vadd.f32 0.0, %v555
          %v557 = vpop.f32.mrb[0].mxu0
          %558 = vmatprep.mubr.f32.mxu0 0.0
          %559 = vmatmul.mubr.f32.gmra.mrb[0].mxu0 %v422
          %v560 = vpop.f32.mrb[0].mxu0
          %v561 = vadd.f32 0.0, %v560
          %v562 = vpop.f32.mrb[0].mxu0
          %563 = vmatprep.mubr.f32.mxu0 0.0
          %564 = vmatmul.mubr.f32.gmra.mrb[0].mxu0 %v423
          %v565 = vpop.f32.mrb[0].mxu0
          %v566 = vadd.f32 0.0, %v565
          %v567 = vpop.f32.mrb[0].mxu0
          %568 = vdwg.mxu0
          %v569 = vadd.f32 %v392, %v491
          %v570 = vadd.f32 %v393, %v496
          %v571 = vadd.f32 %v394, %v501
          %v572 = vadd.f32 %v395, %v506
          %v573 = vadd.f32 %v396, %v511
          %v574 = vadd.f32 %v397, %v516
          %v575 = vadd.f32 %v398, %v521
          %v576 = vadd.f32 %v399, %v526
          %v577 = vadd.f32 %v400, %v531
          %v578 = vadd.f32 %v401, %v536
          %v579 = vadd.f32 %v402, %v541
          %v580 = vadd.f32 %v403, %v546
          %v581 = vadd.f32 %v404, %v551
          %v582 = vadd.f32 %v405, %v556
          %v583 = vadd.f32 %v406, %v561
          %v584 = vadd.f32 %v407, %v566
          %585 = vst [vmem:[#allocation2] sm:$0xff] %v569
          %586 = vst [vmem:[#allocation2 + $0x8] sm:$0xff] %v570
          %587 = vst [vmem:[#allocation2 + $0x10] sm:$0xff] %v571
          %588 = vst [vmem:[#allocation2 + $0x18] sm:$0xff] %v572
          %589 = vst [vmem:[#allocation2 + $0x20] sm:$0xff] %v573
          %590 = vst [vmem:[#allocation2 + $0x28] sm:$0xff] %v574
          %591 = vst [vmem:[#allocation2 + $0x30] sm:$0xff] %v575
          %592 = vst [vmem:[#allocation2 + $0x38] sm:$0xff] %v576
          %593 = vst [vmem:[#allocation2 + $0x40] sm:$0xff] %v577
          %594 = vst [vmem:[#allocation2 + $0x48] sm:$0xff] %v578
          %595 = vst [vmem:[#allocation2 + $0x50] sm:$0xff] %v579
          %596 = vst [vmem:[#allocation2 + $0x58] sm:$0xff] %v580
          %597 = vst [vmem:[#allocation2 + $0x60] sm:$0xff] %v581
          %598 = vst [vmem:[#allocation2 + $0x68] sm:$0xff] %v582
          %599 = vst [vmem:[#allocation2 + $0x70] sm:$0xff] %v583
          %600 = vst [vmem:[#allocation2 + $0x78] sm:$0xff] %v584
        $region78: #{gcn3_forward.5} parent=65 // pred_fallthru
          _
        %p601 = scmp.eq.s32.totalorder %s31, 1
        // Predicated region
        $region79: #{gcn3_forward.5} parent=65 // pred_check
          %p602 = pneg %p601
        $region80: #{gcn3_forward.5} parent=65 // pred_check_branch
          %604 = sbr.rel (%p602) target = $region82
        $region81: #{gcn3_forward.5} parent=65 // pred_region
          %v605 = vld [vmem:[#allocation2] sm:$0xff]
          %v606 = vld [vmem:[#allocation2 + $0x8] sm:$0xff]
          %v607 = vld [vmem:[#allocation2 + $0x10] sm:$0xff]
          %v608 = vld [vmem:[#allocation2 + $0x18] sm:$0xff]
          %v609 = vld [vmem:[#allocation2 + $0x20] sm:$0xff]
          %v610 = vld [vmem:[#allocation2 + $0x28] sm:$0xff]
          %v611 = vld [vmem:[#allocation2 + $0x30] sm:$0xff]
          %v612 = vld [vmem:[#allocation2 + $0x38] sm:$0xff]
          %v613 = vld [vmem:[#allocation2 + $0x40] sm:$0xff]
          %v614 = vld [vmem:[#allocation2 + $0x48] sm:$0xff]
          %v615 = vld [vmem:[#allocation2 + $0x50] sm:$0xff]
          %v616 = vld [vmem:[#allocation2 + $0x58] sm:$0xff]
          %v617 = vld [vmem:[#allocation2 + $0x60] sm:$0xff]
          %v618 = vld [vmem:[#allocation2 + $0x68] sm:$0xff]
          %v619 = vld [vmem:[#allocation2 + $0x70] sm:$0xff]
          %v620 = vld [vmem:[#allocation2 + $0x78] sm:$0xff]
          %v621 = vld [vmem:[%s4] sm:$0x1]
          %v623 = vlaneseq
          %v624 = vshrl.u32 %v623, 7
          %v625 = vsub.s32 0, %v624
          %v626 = vrot.slane %v621, %v625
          %v628 = vadd.f32 %v605, %v626
          %v629 = vadd.f32 %v606, %v626
          %v630 = vadd.f32 %v607, %v626
          %v631 = vadd.f32 %v608, %v626
          %v632 = vadd.f32 %v609, %v626
          %v633 = vadd.f32 %v610, %v626
          %v634 = vadd.f32 %v611, %v626
          %v635 = vadd.f32 %v612, %v626
          %v636 = vadd.f32 %v613, %v626
          %v637 = vadd.f32 %v614, %v626
          %v638 = vadd.f32 %v615, %v626
          %v639 = vadd.f32 %v616, %v626
          %v640 = vadd.f32 %v617, %v626
          %v641 = vadd.f32 %v618, %v626
          %v642 = vadd.f32 %v619, %v626
          %v643 = vadd.f32 %v620, %v626
          %644 = vst [vmem:[%s349] sm:$0xff] %v628
          %645 = vst [vmem:[%s349 + $0x8] sm:$0xff] %v629
          %646 = vst [vmem:[%s349 + $0x10] sm:$0xff] %v630
          %647 = vst [vmem:[%s349 + $0x18] sm:$0xff] %v631
          %648 = vst [vmem:[%s349 + $0x20] sm:$0xff] %v632
          %649 = vst [vmem:[%s349 + $0x28] sm:$0xff] %v633
          %650 = vst [vmem:[%s349 + $0x30] sm:$0xff] %v634
          %651 = vst [vmem:[%s349 + $0x38] sm:$0xff] %v635
          %652 = vst [vmem:[%s349 + $0x40] sm:$0xff] %v636
          %653 = vst [vmem:[%s349 + $0x48] sm:$0xff] %v637
          %654 = vst [vmem:[%s349 + $0x50] sm:$0xff] %v638
          %655 = vst [vmem:[%s349 + $0x58] sm:$0xff] %v639
          %656 = vst [vmem:[%s349 + $0x60] sm:$0xff] %v640
          %657 = vst [vmem:[%s349 + $0x68] sm:$0xff] %v641
          %658 = vst [vmem:[%s349 + $0x70] sm:$0xff] %v642
          %659 = vst [vmem:[%s349 + $0x78] sm:$0xff] %v643
        $region82: #{gcn3_forward.5} parent=65 // pred_fallthru
          _
        %s660 = smul.u32 16, %s30
        %p661 = scmp.lt.s32.totalorder %s660, 31
        %s662 = scalar_select %p661, %s660, 31
        %s663 = smul.addr %s662, 8
        %s664 = scalar_lea.vmem %s5, %s663
        // Predicated region
        $region83: #{gcn3_forward.5} parent=65 // pred_check
          %p665 = pneg %p143
        $region84: #{gcn3_forward.5} parent=65 // pred_check_branch
          %667 = sbr.rel (%p665) target = $region86
        $region85: #{gcn3_forward.5} parent=65 // pred_region
          %s668 = smul.u32 16, %s30
        $region86: #{gcn3_forward.5} parent=65 // pred_fallthru
          _
      $region66: #{gcn3_forward.5} parent=5 // pred_fallthru
        _
      %p669 = scmp.le.s32.totalorder 2, %s21
      // Predicated region
      $region87: #{gcn3_forward.5} parent=5 // pred_check
        %p670 = pneg %p669
      $region88: #{gcn3_forward.5} parent=5 // pred_check_branch
        %672 = sbr.rel (%p670) target = $region90
      $region89: #{gcn3_forward.5} parent=5 // pred_region
        %s673 = ssub.s32 %s21, 2
        // Predicated region
        $region91: #{gcn3_forward.5} parent=89 // pred_check
          %p674 = pneg %p149
        $region92: #{gcn3_forward.5} parent=89 // pred_check_branch
          %676 = sbr.rel (%p674) target = $region94
        $region93: #{gcn3_forward.5} parent=89 // pred_region
          %s677 = smul.u32 16, %s32
          %p678 = scmp.lt.s32.totalorder %s677, 31
          %s679 = scalar_select %p678, %s677, 31
          %s680 = smul.addr %s679, 8
          %s681 = scalar_lea.vmem %s5, %s680
        $region94: #{gcn3_forward.5} parent=89 // pred_fallthru
          _
      $region90: #{gcn3_forward.5} parent=5 // pred_fallthru
        _
    $region6: #{gcn3_forward.5} parent=1 // loop_footer
      %s25 = sadd.s32 1, %s21
    $region7: #{gcn3_forward.5} parent=1 // loop_footer_branch
      %20 = sbr.rel target = $region3
    $region8: #{gcn3_forward.5} parent=1 // loop_exit
      _

// kernel: gcn3_forward.4
$region0: #{gcn3_forward.4}
  #allocation0 [shape = 'u32[]', space=smem, size = 0x4, offset = 0x4, fixed_abs, tag = 'smem constant byte address 0x4 - core index']
  #allocation1 [shape = 'u32[144,128]{1,0:T(1,128)}', space=vmem, size = 0x12000, scoped, tag = 'internal scratch']
  #allocation2 [shape = 'f32[128,256]{1,0:T(8,128)}', space=vmem, size = 0x20000, scoped, tag = 'scratch operand']
  #allocation3 [shape = 's32[1]{0}', space=sflag, size = 0x4, scoped, tag = 'scoped memory for gcn3_forward.4']
  #allocation4 [shape = 'u8[512]{0}', space=smem, size = 0x200, scoped, tag = 'prefetched SMEM operand 0']
  #allocation5 [shape = 'u8[512]{0}', space=smem, size = 0x200, scoped, tag = 'prefetched SMEM operand 1']
  %s0 = inlined_call_operand.vmem [shape: s32[4], index: 0, kind: input, shape index: {}]
  %s1 = inlined_call_operand.vmem [shape: s32[2], index: 1, kind: input, shape index: {}]
  %s2 = inlined_call_operand.vmem [shape: f32[256,256], index: 2, kind: input, shape index: {}]
  %s3 = inlined_call_operand.vmem [shape: f32[256,256], index: 3, kind: input, shape index: {}]
  %s4 = inlined_call_operand.vmem [shape: f32[256,256], index: 4, kind: input, shape index: {}]
  %s5 = inlined_call_operand.vmem [shape: f32[1,256], index: 5, kind: input, shape index: {}]
  %s6 = inlined_call_operand.vmem [shape: f32[256,128], index: 6, kind: input, shape index: {}]
  %s7 = inlined_call_operand.vmem [shape: f32[256,128], index: 7, kind: output, shape index: {}]
  %s8 = sld [smem:[#allocation0]]
  $region103: #{gcn3_forward.4} parent=0
    _
  %s10 = ssub.s32 1, %s8
  %s11 = scalar_select 0, %s10, %s8
  %s12 = sshll.u32 %s0, 4
  %s13 = int_to_ptr.vmem [resolvable:$true] %s12
  %15 = dma.vmem_to_smem %s13, 16, [#allocation4], [#allocation3]
  %s16 = sshll.u32 %s1, 4
  %s17 = int_to_ptr.vmem [resolvable:$true] %s16
  %19 = dma.vmem_to_smem %s17, 16, [#allocation5], [#allocation3]
  %20 = dma.done [#allocation3], 32
  %21 = sfence
  $region1: #{gcn3_forward.4} parent=0
    #allocation6 [shape = 'u8[131072]{0}', space=vmem, size = 0x20000, scoped, tag = 'input window, operand 2']
    loop: start=0, step=1, limit=6
    $region2: #{gcn3_forward.4} parent=1 // loop_pre_header
      _
    $region3: #{gcn3_forward.4} parent=1 // loop_header
      %s23 = sphi 0, %s27
      %p24 = scmp.ge.s32.totalorder %s23, 6
      %s30 = sphi 0, %s42
      %s31 = sphi 0, %s38
      %s32 = sphi 0, %s30
      %s33 = sphi 0, %s31
      %s34 = sphi 0, %s32
      %s35 = sphi 0, %s33
      %s53 = sphi 0, %s55
      %s56 = sphi 0, %s53
      %s57 = sphi 0, %s56
      %s73 = sphi 0, %s57
      %s85 = sphi 0, %s87
      %s88 = sphi 0, %s85
      %s89 = sphi 0, %s88
      %s105 = sphi 0, %s89
      %s109 = sphi 0, %s109
      %s111 = sphi 0, %s109
      %s112 = sphi 0, %s111
      %s126 = sphi 0, %s112
      %s130 = sphi 0, %s130
      %s132 = sphi 0, %s130
      %s133 = sphi 0, %s132
      %s147 = sphi 0, %s133
      %s151 = sphi 0, %s151
      %s153 = sphi 0, %s151
      %s154 = sphi 0, %s153
      %s168 = sphi 0, %s154
      %s174 = sphi 0, %s176
      %s177 = sphi 0, %s174
      %s178 = sphi 0, %s177
      %s194 = sphi 0, %s178
    $region4: #{gcn3_forward.4} parent=1 // loop_header_branch
      %26 = sbr.rel (%p24) target = $region8
    $region5: #{gcn3_forward.4} parent=1 // loop_body
      %s28 = ssub.s32 %s23, 1
      %s29 = ssub.s32 %s23, 2
      %s36 = sadd.s32 1, %s31
      %p37 = scmp.ge.s32.totalorder %s36, 2
      %s38 = scalar_select %p37, 0, %s36
      %s39 = sadd.s32 1, %s30
      %s40 = scalar_select %p37, %s39, %s30
      %p41 = scmp.ge.s32.totalorder %s40, 2
      %s42 = scalar_select %p41, 0, %s40
      %s43 = smul.u32 %s30, 2
      %s44 = sadd.s32 %s43, %s31
      %s45 = sld [smem:[#allocation4 + %s44]]
      %s46 = smul.u32 %s42, 2
      %s47 = sadd.s32 %s46, %s38
      %s48 = sld [smem:[#allocation4 + %s47]]
      %s49 = ssub.s32 %s30, %s42
      %s50 = ssub.s32 %s45, %s48
      %s51 = sor.u32 %s49, %s50
      %p52 = scmp.eq.s32.totalorder %s51, 0
      %s54 = sadd.s32 %s53, 1
      %s55 = scalar_select %p52, %s53, %s54
      %p58 = pneg %p52
      %p59 = scmp.eq.s32.totalorder %s23, 3
      %p60 = por %p58, %p59
      %p61 = scmp.ne.s32.totalorder %s53, %s56
      %p62 = scmp.eq.s32.totalorder %s23, 0
      %p63 = por %p61, %p62
      %p64 = scmp.ne.s32.totalorder %s53, %s56
      %p65 = scmp.eq.s32.totalorder %s28, 3
      %p66 = por %p64, %p65
      %p67 = scmp.ne.s32.totalorder %s56, %s57
      %p68 = scmp.eq.s32.totalorder %s28, 0
      %p69 = por %p67, %p68
      %p70 = scmp.ne.s32.totalorder %s56, %s57
      %p71 = scmp.eq.s32.totalorder %s29, 3
      %p72 = por %p70, %p71
      %p74 = scmp.ne.s32.totalorder %s57, %s73
      %p75 = scmp.eq.s32.totalorder %s29, 0
      %p76 = por %p74, %p75
      %s77 = smul.u32 %s30, 2
      %s78 = sadd.s32 %s77, %s31
      %s79 = sld [smem:[#allocation4 + %s78]]
      %s80 = smul.u32 %s42, 2
      %s81 = sadd.s32 %s80, %s38
      %s82 = sld [smem:[#allocation4 + %s81]]
      %s83 = ssub.s32 %s79, %s82
      %p84 = scmp.eq.s32.totalorder %s83, 0
      %s86 = sadd.s32 %s85, 1
      %s87 = scalar_select %p84, %s85, %s86
      %p90 = pneg %p84
      %p91 = scmp.eq.s32.totalorder %s23, 3
      %p92 = por %p90, %p91
      %p93 = scmp.ne.s32.totalorder %s85, %s88
      %p94 = scmp.eq.s32.totalorder %s23, 0
      %p95 = por %p93, %p94
      %p96 = scmp.ne.s32.totalorder %s85, %s88
      %p97 = scmp.eq.s32.totalorder %s28, 3
      %p98 = por %p96, %p97
      %p99 = scmp.ne.s32.totalorder %s88, %s89
      %p100 = scmp.eq.s32.totalorder %s28, 0
      %p101 = por %p99, %p100
      %p102 = scmp.ne.s32.totalorder %s88, %s89
      %p103 = scmp.eq.s32.totalorder %s29, 3
      %p104 = por %p102, %p103
      %p106 = scmp.ne.s32.totalorder %s89, %s105
      %p107 = scmp.eq.s32.totalorder %s29, 0
      %p108 = por %p106, %p107
      %s110 = sadd.s32 %s109, 1
      %p113 = scmp.eq.s32.totalorder %s23, 3
      %p114 = scmp.ne.s32.totalorder %s109, %s111
      %p115 = scmp.eq.s32.totalorder %s23, 0
      %p116 = por %p114, %p115
      %p117 = scmp.ne.s32.totalorder %s109, %s111
      %p118 = scmp.eq.s32.totalorder %s28, 3
      %p119 = por %p117, %p118
      %p120 = scmp.ne.s32.totalorder %s111, %s112
      %p121 = scmp.eq.s32.totalorder %s28, 0
      %p122 = por %p120, %p121
      %p123 = scmp.ne.s32.totalorder %s111, %s112
      %p124 = scmp.eq.s32.totalorder %s29, 3
      %p125 = por %p123, %p124
      %p127 = scmp.ne.s32.totalorder %s112, %s126
      %p128 = scmp.eq.s32.totalorder %s29, 0
      %p129 = por %p127, %p128
      %s131 = sadd.s32 %s130, 1
      %p134 = scmp.eq.s32.totalorder %s23, 3
      %p135 = scmp.ne.s32.totalorder %s130, %s132
      %p136 = scmp.eq.s32.totalorder %s23, 0
      %p137 = por %p135, %p136
      %p138 = scmp.ne.s32.totalorder %s130, %s132
      %p139 = scmp.eq.s32.totalorder %s28, 3
      %p140 = por %p138, %p139
      %p141 = scmp.ne.s32.totalorder %s132, %s133
      %p142 = scmp.eq.s32.totalorder %s28, 0
      %p143 = por %p141, %p142
      %p144 = scmp.ne.s32.totalorder %s132, %s133
      %p145 = scmp.eq.s32.totalorder %s29, 3
      %p146 = por %p144, %p145
      %p148 = scmp.ne.s32.totalorder %s133, %s147
      %p149 = scmp.eq.s32.totalorder %s29, 0
      %p150 = por %p148, %p149
      %s152 = sadd.s32 %s151, 1
      %p155 = scmp.eq.s32.totalorder %s23, 3
      %p156 = scmp.ne.s32.totalorder %s151, %s153
      %p157 = scmp.eq.s32.totalorder %s23, 0
      %p158 = por %p156, %p157
      %p159 = scmp.ne.s32.totalorder %s151, %s153
      %p160 = scmp.eq.s32.totalorder %s28, 3
      %p161 = por %p159, %p160
      %p162 = scmp.ne.s32.totalorder %s153, %s154
      %p163 = scmp.eq.s32.totalorder %s28, 0
      %p164 = por %p162, %p163
      %p165 = scmp.ne.s32.totalorder %s153, %s154
      %p166 = scmp.eq.s32.totalorder %s29, 3
      %p167 = por %p165, %p166
      %p169 = scmp.ne.s32.totalorder %s154, %s168
      %p170 = scmp.eq.s32.totalorder %s29, 0
      %p171 = por %p169, %p170
      %s172 = ssub.s32 %s30, %s42
      %p173 = scmp.eq.s32.totalorder %s172, 0
      %s175 = sadd.s32 %s174, 1
      %s176 = scalar_select %p173, %s174, %s175
      %p179 = pneg %p173
      %p180 = scmp.eq.s32.totalorder %s23, 3
      %p181 = por %p179, %p180
      %p182 = scmp.ne.s32.totalorder %s174, %s177
      %p183 = scmp.eq.s32.totalorder %s23, 0
      %p184 = por %p182, %p183
      %p185 = scmp.ne.s32.totalorder %s174, %s177
      %p186 = scmp.eq.s32.totalorder %s28, 3
      %p187 = por %p185, %p186
      %p188 = scmp.ne.s32.totalorder %s177, %s178
      %p189 = scmp.eq.s32.totalorder %s28, 0
      %p190 = por %p188, %p189
      %p191 = scmp.ne.s32.totalorder %s177, %s178
      %p192 = scmp.eq.s32.totalorder %s29, 3
      %p193 = por %p191, %p192
      %p195 = scmp.ne.s32.totalorder %s178, %s194
      %p196 = scmp.eq.s32.totalorder %s29, 0
      %p197 = por %p195, %p196
      %p198 = scmp.le.s32.totalorder 1, %s23
      %p199 = scmp.lt.s32.totalorder %s23, 5
      %p200 = pnand %p198, %p199
      %p201 = pneg %p200
      // Predicated region
      $region9: #{gcn3_forward.4} parent=5 // pred_check
        _
      $region10: #{gcn3_forward.4} parent=5 // pred_check_branch
        %203 = sbr.rel (%p200) target = $region12
      $region11: #{gcn3_forward.4} parent=5 // pred_region
        %s204 = ssub.s32 %s23, 1
        // Predicated region
        $region13: #{gcn3_forward.4} parent=11 // pred_check
          %p205 = pneg %p122
        $region14: #{gcn3_forward.4} parent=11 // pred_check_branch
          %207 = sbr.rel (%p205) target = $region16
        $region15: #{gcn3_forward.4} parent=11 // pred_region
          _
        $region16: #{gcn3_forward.4} parent=11 // pred_fallthru
          _
        // Predicated region
        $region17: #{gcn3_forward.4} parent=11 // pred_check
          %p208 = pneg %p143
        $region18: #{gcn3_forward.4} parent=11 // pred_check_branch
          %210 = sbr.rel (%p208) target = $region20
        $region19: #{gcn3_forward.4} parent=11 // pred_region
          _
        $region20: #{gcn3_forward.4} parent=11 // pred_fallthru
          _
        // Predicated region
        $region21: #{gcn3_forward.4} parent=11 // pred_check
          %p211 = pneg %p164
        $region22: #{gcn3_forward.4} parent=11 // pred_check_branch
          %213 = sbr.rel (%p211) target = $region24
        $region23: #{gcn3_forward.4} parent=11 // pred_region
          _
        $region24: #{gcn3_forward.4} parent=11 // pred_fallthru
          _
      $region12: #{gcn3_forward.4} parent=5 // pred_fallthru
        _
      %p214 = scmp.lt.s32.totalorder %s23, 4
      // Predicated region
      $region25: #{gcn3_forward.4} parent=5 // pred_check
        %p215 = pneg %p214
      $region26: #{gcn3_forward.4} parent=5 // pred_check_branch
        %217 = sbr.rel (%p215) target = $region28
      $region27: #{gcn3_forward.4} parent=5 // pred_region
        // Predicated region
        $region29: #{gcn3_forward.4} parent=27 // pred_check
          %p218 = pneg %p63
        $region30: #{gcn3_forward.4} parent=27 // pred_check_branch
          %220 = sbr.rel (%p218) target = $region32
        $region31: #{gcn3_forward.4} parent=27 // pred_region
          %s221 = sand.u32 %s53, 1
          %s222 = sand.u32 %s53, 1
          %s223 = smul.addr %s222, 128
          %s224 = scalar_lea.vmem [#allocation6], %s223
          %s225 = smul.u32 %s30, 2
          %s226 = sadd.s32 %s225, %s31
          %s227 = sld [smem:[#allocation4 + %s226]]
          %s228 = smul.u32 16, %s30
          %s229 = smul.addr %s228, 2
          %s230 = sadd.s32 %s227, %s229
          %s231 = smul.addr %s230, 8
          %s232 = scalar_lea.vmem %s2, %s231
          // Predicated region
          $region33: #{gcn3_forward.4} parent=31 // pred_check
            _
          $region34: #{gcn3_forward.4} parent=31 // pred_check_branch
            %234 = sbr.rel (0) target = $region36
          $region35: #{gcn3_forward.4} parent=31 // pred_region
            // Predicated region
            $region37: #{gcn3_forward.4} parent=35 // pred_check
              _
            $region38: #{gcn3_forward.4} parent=35 // pred_check_branch
              %236 = sbr.rel (0) target = $region40
            $region39: #{gcn3_forward.4} parent=35 // pred_region
              // Predicated region
              $region52: #{gcn3_forward.4} parent=39 // pred_check
                _
              $region53: #{gcn3_forward.4} parent=39 // pred_check_branch
                %281 = sbr.rel (0) target = $region55
              $region54: #{gcn3_forward.4} parent=39 // pred_region
                loop: start=0, step=1, limit=1
                $region56: #{gcn3_forward.4} parent=54 // loop_pre_header
                  _
                $region57: #{gcn3_forward.4} parent=54 // loop_header
                  %s283 = sphi 0, %s287
                  %p284 = scmp.ge.s32.totalorder %s283, 1
                  %s288 = sphi %s232, %s232
                  %s289 = sphi %s224, %s224
                $region58: #{gcn3_forward.4} parent=54 // loop_header_branch
                  %286 = sbr.rel (%p284) target = $region62
                $region59: #{gcn3_forward.4} parent=54 // loop_body
                  %v290 = vld [vmem:[%s288] sm:$0xff]
                  %291 = vst [vmem:[%s289] sm:$0xff] %v290
                  %v292 = vld [vmem:[%s288 + $0x10] sm:$0xff]
                  %293 = vst [vmem:[%s289 + $0x8] sm:$0xff] %v292
                  %v294 = vld [vmem:[%s288 + $0x20] sm:$0xff]
                  %295 = vst [vmem:[%s289 + $0x10] sm:$0xff] %v294
                  %v296 = vld [vmem:[%s288 + $0x30] sm:$0xff]
                  %297 = vst [vmem:[%s289 + $0x18] sm:$0xff] %v296
                  %v298 = vld [vmem:[%s288 + $0x40] sm:$0xff]
                  %299 = vst [vmem:[%s289 + $0x20] sm:$0xff] %v298
                  %v300 = vld [vmem:[%s288 + $0x50] sm:$0xff]
                  %301 = vst [vmem:[%s289 + $0x28] sm:$0xff] %v300
                  %v302 = vld [vmem:[%s288 + $0x60] sm:$0xff]
                  %303 = vst [vmem:[%s289 + $0x30] sm:$0xff] %v302
                  %v304 = vld [vmem:[%s288 + $0x70] sm:$0xff]
                  %305 = vst [vmem:[%s289 + $0x38] sm:$0xff] %v304
                  %v306 = vld [vmem:[%s288 + $0x80] sm:$0xff]
                  %307 = vst [vmem:[%s289 + $0x40] sm:$0xff] %v306
                  %v308 = vld [vmem:[%s288 + $0x90] sm:$0xff]
                  %309 = vst [vmem:[%s289 + $0x48] sm:$0xff] %v308
                  %v310 = vld [vmem:[%s288 + $0xa0] sm:$0xff]
                  %311 = vst [vmem:[%s289 + $0x50] sm:$0xff] %v310
                  %v312 = vld [vmem:[%s288 + $0xb0] sm:$0xff]
                  %313 = vst [vmem:[%s289 + $0x58] sm:$0xff] %v312
                  %v314 = vld [vmem:[%s288 + $0xc0] sm:$0xff]
                  %315 = vst [vmem:[%s289 + $0x60] sm:$0xff] %v314
                  %v316 = vld [vmem:[%s288 + $0xd0] sm:$0xff]
                  %317 = vst [vmem:[%s289 + $0x68] sm:$0xff] %v316
                  %v318 = vld [vmem:[%s288 + $0xe0] sm:$0xff]
                  %319 = vst [vmem:[%s289 + $0x70] sm:$0xff] %v318
                  %v320 = vld [vmem:[%s288 + $0xf0] sm:$0xff]
                  %321 = vst [vmem:[%s289 + $0x78] sm:$0xff] %v320
                $region60: #{gcn3_forward.4} parent=54 // loop_footer
                  %s287 = sadd.s32 1, %s283
                $region61: #{gcn3_forward.4} parent=54 // loop_footer_branch
                  %282 = sbr.rel target = $region57
                $region62: #{gcn3_forward.4} parent=54 // loop_exit
                  _
              $region55: #{gcn3_forward.4} parent=39 // pred_fallthru
                _
              // Predicated region
              $region63: #{gcn3_forward.4} parent=39 // pred_check
                _
              $region64: #{gcn3_forward.4} parent=39 // pred_check_branch
                %323 = sbr.rel target = $region66
              $region65: #{gcn3_forward.4} parent=39 // pred_region
                _
              $region66: #{gcn3_forward.4} parent=39 // pred_fallthru
                _
            $region40: #{gcn3_forward.4} parent=35 // pred_fallthru
              _
            // Predicated region
            $region41: #{gcn3_forward.4} parent=35 // pred_check
              _
            $region42: #{gcn3_forward.4} parent=35 // pred_check_branch
              %238 = sbr.rel target = $region44
            $region43: #{gcn3_forward.4} parent=35 // pred_region
              loop: start=0, step=1, limit=1
              $region45: #{gcn3_forward.4} parent=43 // loop_pre_header
                _
              $region46: #{gcn3_forward.4} parent=43 // loop_header
                %s241 = sphi 0, %s245
                %p242 = scmp.ge.s32.totalorder %s241, 1
                %s246 = sphi %s232, %s232
                %s247 = sphi %s224, %s224
              $region47: #{gcn3_forward.4} parent=43 // loop_header_branch
                %244 = sbr.rel (%p242) target = $region51
              $region48: #{gcn3_forward.4} parent=43 // loop_body
                %v248 = vld [vmem:[%s246] sm:$0xff]
                %249 = vst [vmem:[%s247] sm:$0xff] %v248
                %v250 = vld [vmem:[%s246 + $0x10] sm:$0xff]
                %251 = vst [vmem:[%s247 + $0x8] sm:$0xff] %v250
                %v252 = vld [vmem:[%s246 + $0x20] sm:$0xff]
                %253 = vst [vmem:[%s247 + $0x10] sm:$0xff] %v252
                %v254 = vld [vmem:[%s246 + $0x30] sm:$0xff]
                %255 = vst [vmem:[%s247 + $0x18] sm:$0xff] %v254
                %v256 = vld [vmem:[%s246 + $0x40] sm:$0xff]
                %257 = vst [vmem:[%s247 + $0x20] sm:$0xff] %v256
                %v258 = vld [vmem:[%s246 + $0x50] sm:$0xff]
                %259 = vst [vmem:[%s247 + $0x28] sm:$0xff] %v258
                %v260 = vld [vmem:[%s246 + $0x60] sm:$0xff]
                %261 = vst [vmem:[%s247 + $0x30] sm:$0xff] %v260
                %v262 = vld [vmem:[%s246 + $0x70] sm:$0xff]
                %263 = vst [vmem:[%s247 + $0x38] sm:$0xff] %v262
                %v264 = vld [vmem:[%s246 + $0x80] sm:$0xff]
                %265 = vst [vmem:[%s247 + $0x40] sm:$0xff] %v264
                %v266 = vld [vmem:[%s246 + $0x90] sm:$0xff]
                %267 = vst [vmem:[%s247 + $0x48] sm:$0xff] %v266
                %v268 = vld [vmem:[%s246 + $0xa0] sm:$0xff]
                %269 = vst [vmem:[%s247 + $0x50] sm:$0xff] %v268
                %v270 = vld [vmem:[%s246 + $0xb0] sm:$0xff]
                %271 = vst [vmem:[%s247 + $0x58] sm:$0xff] %v270
                %v272 = vld [vmem:[%s246 + $0xc0] sm:$0xff]
                %273 = vst [vmem:[%s247 + $0x60] sm:$0xff] %v272
                %v274 = vld [vmem:[%s246 + $0xd0] sm:$0xff]
                %275 = vst [vmem:[%s247 + $0x68] sm:$0xff] %v274
                %v276 = vld [vmem:[%s246 + $0xe0] sm:$0xff]
                %277 = vst [vmem:[%s247 + $0x70] sm:$0xff] %v276
                %v278 = vld [vmem:[%s246 + $0xf0] sm:$0xff]
                %279 = vst [vmem:[%s247 + $0x78] sm:$0xff] %v278
              $region49: #{gcn3_forward.4} parent=43 // loop_footer
                %s245 = sadd.s32 1, %s241
              $region50: #{gcn3_forward.4} parent=43 // loop_footer_branch
                %240 = sbr.rel target = $region46
              $region51: #{gcn3_forward.4} parent=43 // loop_exit
                _
            $region44: #{gcn3_forward.4} parent=35 // pred_fallthru
              _
          $region36: #{gcn3_forward.4} parent=31 // pred_fallthru
            _
          %324 = vnop
        $region32: #{gcn3_forward.4} parent=27 // pred_fallthru
          _
        // Predicated region
        $region67: #{gcn3_forward.4} parent=27 // pred_check
          %p325 = pneg %p95
        $region68: #{gcn3_forward.4} parent=27 // pred_check_branch
          %327 = sbr.rel (%p325) target = $region70
        $region69: #{gcn3_forward.4} parent=27 // pred_region
          %s328 = smul.u32 %s30, 2
          %s329 = sadd.s32 %s328, %s31
          %s330 = sld [smem:[#allocation4 + %s329]]
          %s331 = smul.u32 16, %s330
          %p332 = scmp.lt.s32.totalorder %s331, 31
          %s333 = scalar_select %p332, %s331, 31
          %s334 = smul.addr %s333, 2
          %s335 = smul.addr %s334, 8
          %s336 = scalar_lea.vmem %s3, %s335
          %s337 = smul.u32 %s30, 2
          %s338 = sadd.s32 %s337, %s31
          %s339 = sld [smem:[#allocation4 + %s338]]
          %s340 = smul.u32 16, %s339
        $region70: #{gcn3_forward.4} parent=27 // pred_fallthru
          _
      $region28: #{gcn3_forward.4} parent=5 // pred_fallthru
        _
      %p341 = scmp.le.s32.totalorder 1, %s23
      %p342 = scmp.lt.s32.totalorder %s23, 5
      %p343 = pnand %p341, %p342
      %p344 = pneg %p343
      // Predicated region
      $region71: #{gcn3_forward.4} parent=5 // pred_check
        _
      $region72: #{gcn3_forward.4} parent=5 // pred_check_branch
        %346 = sbr.rel (%p343) target = $region74
      $region73: #{gcn3_forward.4} parent=5 // pred_region
        %s347 = ssub.s32 %s23, 1
        %s348 = sand.u32 %s56, 1
        %s349 = sand.u32 %s56, 1
        %s350 = smul.addr %s349, 128
        %s351 = scalar_lea.vmem [#allocation6], %s350
        // Predicated region
        $region75: #{gcn3_forward.4} parent=73 // pred_check
          %p352 = pneg %p69
        $region76: #{gcn3_forward.4} parent=73 // pred_check_branch
          %354 = sbr.rel (%p352) target = $region78
        $region77: #{gcn3_forward.4} parent=73 // pred_region
          _
        $region78: #{gcn3_forward.4} parent=73 // pred_fallthru
          _
        %s355 = sand.u32 %s56, 1
        %s356 = sand.u32 %s56, 1
        %s357 = smul.addr %s356, 128
        %s358 = scalar_lea.vmem [#allocation6], %s357
        %p359 = pneg %p69
        %p360 = pneg %p66
        %s361 = smul.u32 %s32, 2
        %s362 = sadd.s32 %s361, %s33
        %s363 = sld [smem:[#allocation4 + %s362]]
        %s364 = smul.u32 16, %s363
        %p365 = scmp.lt.s32.totalorder %s364, 31
        %s366 = scalar_select %p365, %s364, 31
        %s367 = smul.addr %s366, 2
        %s368 = smul.addr %s367, 8
        %s369 = scalar_lea.vmem %s3, %s368
        %p370 = pneg %p101
        %p371 = pneg %p98
        %p372 = pneg %p122
        %p373 = pneg %p119
        %p374 = pneg %p143
        %p375 = pneg %p140
        %p376 = pneg %p164
        %p377 = pneg %p161
        %p378 = pneg %p190
        %p379 = pneg %p187
        %s380 = smul.u32 16, %s32
        %p381 = scmp.lt.s32.totalorder %s380, 31
        %s382 = scalar_select %p381, %s380, 31
        %s383 = smul.addr %s382, 8
        %s384 = scalar_lea.vmem %s7, %s383
        %s385 = smul.u32 %s32, 2
        %s386 = sadd.s32 %s385, %s33
        %s387 = sld [smem:[#allocation4 + %s386]]
        %s388 = smul.u32 16, %s32
        %s389 = smul.u32 %s32, 2
        %s390 = sadd.s32 %s389, %s33
        %s391 = sld [smem:[#allocation4 + %s390]]
        %s392 = smul.u32 16, %s391
        %p393 = scmp.lt.s32.totalorder %s392, 31
        %s394 = scalar_select %p393, %s392, 31
        %s395 = smul.addr %s394, 2
        %s396 = smul.addr %s395, 8
        %s397 = scalar_lea.vmem %s3, %s396
        %s398 = smul.u32 %s32, 2
        %s399 = sadd.s32 %s398, %s33
        %s400 = sld [smem:[#allocation4 + %s399]]
        %s401 = smul.u32 16, %s400
        %s402 = smul.u32 16, %s32
        %p403 = scmp.lt.s32.totalorder %s402, 31
        %s404 = scalar_select %p403, %s402, 31
        %s405 = smul.addr %s404, 8
        %s406 = scalar_lea.vmem %s7, %s405
        %s407 = smul.u32 16, %s32
        %p408 = scmp.eq.s32.totalorder %s33, 0
        // Predicated region
        $region79: #{gcn3_forward.4} parent=73 // pred_check
          %p409 = pneg %p408
        $region80: #{gcn3_forward.4} parent=73 // pred_check_branch
          %411 = sbr.rel (%p409) target = $region82
        $region81: #{gcn3_forward.4} parent=73 // pred_region
          %412 = vst [vmem:[#allocation2] sm:$0xff] 0.0
          %413 = vst [vmem:[#allocation2 + $0x8] sm:$0xff] 0.0
          %414 = vst [vmem:[#allocation2 + $0x10] sm:$0xff] 0.0
          %415 = vst [vmem:[#allocation2 + $0x18] sm:$0xff] 0.0
          %416 = vst [vmem:[#allocation2 + $0x20] sm:$0xff] 0.0
          %417 = vst [vmem:[#allocation2 + $0x28] sm:$0xff] 0.0
          %418 = vst [vmem:[#allocation2 + $0x30] sm:$0xff] 0.0
          %419 = vst [vmem:[#allocation2 + $0x38] sm:$0xff] 0.0
          %420 = vst [vmem:[#allocation2 + $0x40] sm:$0xff] 0.0
          %421 = vst [vmem:[#allocation2 + $0x48] sm:$0xff] 0.0
          %422 = vst [vmem:[#allocation2 + $0x50] sm:$0xff] 0.0
          %423 = vst [vmem:[#allocation2 + $0x58] sm:$0xff] 0.0
          %424 = vst [vmem:[#allocation2 + $0x60] sm:$0xff] 0.0
          %425 = vst [vmem:[#allocation2 + $0x68] sm:$0xff] 0.0
          %426 = vst [vmem:[#allocation2 + $0x70] sm:$0xff] 0.0
          %427 = vst [vmem:[#allocation2 + $0x78] sm:$0xff] 0.0
          %428 = vst [vmem:[#allocation2 + $0x80] sm:$0xff] 0.0
          %429 = vst [vmem:[#allocation2 + $0x88] sm:$0xff] 0.0
          %430 = vst [vmem:[#allocation2 + $0x90] sm:$0xff] 0.0
          %431 = vst [vmem:[#allocation2 + $0x98] sm:$0xff] 0.0
          %432 = vst [vmem:[#allocation2 + $0xa0] sm:$0xff] 0.0
          %433 = vst [vmem:[#allocation2 + $0xa8] sm:$0xff] 0.0
          %434 = vst [vmem:[#allocation2 + $0xb0] sm:$0xff] 0.0
          %435 = vst [vmem:[#allocation2 + $0xb8] sm:$0xff] 0.0
          %436 = vst [vmem:[#allocation2 + $0xc0] sm:$0xff] 0.0
          %437 = vst [vmem:[#allocation2 + $0xc8] sm:$0xff] 0.0
          %438 = vst [vmem:[#allocation2 + $0xd0] sm:$0xff] 0.0
          %439 = vst [vmem:[#allocation2 + $0xd8] sm:$0xff] 0.0
          %440 = vst [vmem:[#allocation2 + $0xe0] sm:$0xff] 0.0
          %441 = vst [vmem:[#allocation2 + $0xe8] sm:$0xff] 0.0
          %442 = vst [vmem:[#allocation2 + $0xf0] sm:$0xff] 0.0
          %443 = vst [vmem:[#allocation2 + $0xf8] sm:$0xff] 0.0
        $region82: #{gcn3_forward.4} parent=73 // pred_fallthru
          _
        %s444 = sld [smem:[#allocation5 + %s32]]
        %p445 = scmp.lt.s32.totalorder %s33, %s444
        // Predicated region
        $region83: #{gcn3_forward.4} parent=73 // pred_check
          %p446 = pneg %p445
        $region84: #{gcn3_forward.4} parent=73 // pred_check_branch
          %448 = sbr.rel (%p446) target = $region86
        $region85: #{gcn3_forward.4} parent=73 // pred_region
          %v449 = vld [vmem:[%s397] sm:$0xff]
          %v450 = vld [vmem:[%s397 + $0x8] sm:$0xff]
          %v451 = vld [vmem:[%s397 + $0x10] sm:$0xff]
          %v452 = vld [vmem:[%s397 + $0x18] sm:$0xff]
          %v453 = vld [vmem:[%s397 + $0x20] sm:$0xff]
          %v454 = vld [vmem:[%s397 + $0x28] sm:$0xff]
          %v455 = vld [vmem:[%s397 + $0x30] sm:$0xff]
          %v456 = vld [vmem:[%s397 + $0x38] sm:$0xff]
          %v457 = vld [vmem:[%s397 + $0x40] sm:$0xff]
          %v458 = vld [vmem:[%s397 + $0x48] sm:$0xff]
          %v459 = vld [vmem:[%s397 + $0x50] sm:$0xff]
          %v460 = vld [vmem:[%s397 + $0x58] sm:$0xff]
          %v461 = vld [vmem:[%s397 + $0x60] sm:$0xff]
          %v462 = vld [vmem:[%s397 + $0x68] sm:$0xff]
          %v463 = vld [vmem:[%s397 + $0x70] sm:$0xff]
          %v464 = vld [vmem:[%s397 + $0x78] sm:$0xff]
          %v465 = vld [vmem:[%s397 + $0x80] sm:$0xff]
          %v466 = vld [vmem:[%s397 + $0x88] sm:$0xff]
          %v467 = vld [vmem:[%s397 + $0x90] sm:$0xff]
          %v468 = vld [vmem:[%s397 + $0x98] sm:$0xff]
          %v469 = vld [vmem:[%s397 + $0xa0] sm:$0xff]
          %v470 = vld [vmem:[%s397 + $0xa8] sm:$0xff]
          %v471 = vld [vmem:[%s397 + $0xb0] sm:$0xff]
          %v472 = vld [vmem:[%s397 + $0xb8] sm:$0xff]
          %v473 = vld [vmem:[%s397 + $0xc0] sm:$0xff]
          %v474 = vld [vmem:[%s397 + $0xc8] sm:$0xff]
          %v475 = vld [vmem:[%s397 + $0xd0] sm:$0xff]
          %v476 = vld [vmem:[%s397 + $0xd8] sm:$0xff]
          %v477 = vld [vmem:[%s397 + $0xe0] sm:$0xff]
          %v478 = vld [vmem:[%s397 + $0xe8] sm:$0xff]
          %v479 = vld [vmem:[%s397 + $0xf0] sm:$0xff]
          %v480 = vld [vmem:[%s397 + $0xf8] sm:$0xff]
          %v481 = vld [vmem:[#allocation2] sm:$0xff]
          %v482 = vld [vmem:[#allocation2 + $0x8] sm:$0xff]
          %v483 = vld [vmem:[#allocation2 + $0x10] sm:$0xff]
          %v484 = vld [vmem:[#allocation2 + $0x18] sm:$0xff]
          %v485 = vld [vmem:[#allocation2 + $0x20] sm:$0xff]
          %v486 = vld [vmem:[#allocation2 + $0x28] sm:$0xff]
          %v487 = vld [vmem:[#allocation2 + $0x30] sm:$0xff]
          %v488 = vld [vmem:[#allocation2 + $0x38] sm:$0xff]
          %v489 = vld [vmem:[#allocation2 + $0x40] sm:$0xff]
          %v490 = vld [vmem:[#allocation2 + $0x48] sm:$0xff]
          %v491 = vld [vmem:[#allocation2 + $0x50] sm:$0xff]
          %v492 = vld [vmem:[#allocation2 + $0x58] sm:$0xff]
          %v493 = vld [vmem:[#allocation2 + $0x60] sm:$0xff]
          %v494 = vld [vmem:[#allocation2 + $0x68] sm:$0xff]
          %v495 = vld [vmem:[#allocation2 + $0x70] sm:$0xff]
          %v496 = vld [vmem:[#allocation2 + $0x78] sm:$0xff]
          %v497 = vld [vmem:[#allocation2 + $0x80] sm:$0xff]
          %v498 = vld [vmem:[#allocation2 + $0x88] sm:$0xff]
          %v499 = vld [vmem:[#allocation2 + $0x90] sm:$0xff]
          %v500 = vld [vmem:[#allocation2 + $0x98] sm:$0xff]
          %v501 = vld [vmem:[#allocation2 + $0xa0] sm:$0xff]
          %v502 = vld [vmem:[#allocation2 + $0xa8] sm:$0xff]
          %v503 = vld [vmem:[#allocation2 + $0xb0] sm:$0xff]
          %v504 = vld [vmem:[#allocation2 + $0xb8] sm:$0xff]
          %v505 = vld [vmem:[#allocation2 + $0xc0] sm:$0xff]
          %v506 = vld [vmem:[#allocation2 + $0xc8] sm:$0xff]
          %v507 = vld [vmem:[#allocation2 + $0xd0] sm:$0xff]
          %v508 = vld [vmem:[#allocation2 + $0xd8] sm:$0xff]
          %v509 = vld [vmem:[#allocation2 + $0xe0] sm:$0xff]
          %v510 = vld [vmem:[#allocation2 + $0xe8] sm:$0xff]
          %v511 = vld [vmem:[#allocation2 + $0xf0] sm:$0xff]
          %v512 = vld [vmem:[#allocation2 + $0xf8] sm:$0xff]
          %v513 = vld [vmem:[%s351] sm:$0xff]
          %v514 = vld [vmem:[%s351 + $0x8] sm:$0xff]
          %v515 = vld [vmem:[%s351 + $0x10] sm:$0xff]
          %v516 = vld [vmem:[%s351 + $0x18] sm:$0xff]
          %v517 = vld [vmem:[%s351 + $0x20] sm:$0xff]
          %v518 = vld [vmem:[%s351 + $0x28] sm:$0xff]
          %v519 = vld [vmem:[%s351 + $0x30] sm:$0xff]
          %v520 = vld [vmem:[%s351 + $0x38] sm:$0xff]
          %v521 = vld [vmem:[%s351 + $0x40] sm:$0xff]
          %v522 = vld [vmem:[%s351 + $0x48] sm:$0xff]
          %v523 = vld [vmem:[%s351 + $0x50] sm:$0xff]
          %v524 = vld [vmem:[%s351 + $0x58] sm:$0xff]
          %v525 = vld [vmem:[%s351 + $0x60] sm:$0xff]
          %v526 = vld [vmem:[%s351 + $0x68] sm:$0xff]
          %v527 = vld [vmem:[%s351 + $0x70] sm:$0xff]
          %v528 = vld [vmem:[%s351 + $0x78] sm:$0xff]
          %529 = vmatprep.subr.mxu0 %v450
          %530 = vmatpush1.msra.mxu0 %v449
          %531 = vmatprep.subr.mxu0 %v452
          %532 = vmatpush1.msra.mxu0 %v451
          %533 = vmatprep.subr.mxu0 %v454
          %534 = vmatpush1.msra.mxu0 %v453
          %535 = vmatprep.subr.mxu0 %v456
          %536 = vmatpush1.msra.mxu0 %v455
          %537 = vmatprep.subr.mxu0 %v458
          %538 = vmatpush1.msra.mxu0 %v457
          %539 = vmatprep.subr.mxu0 %v460
          %540 = vmatpush1.msra.mxu0 %v459
          %541 = vmatprep.subr.mxu0 %v462
          %542 = vmatpush1.msra.mxu0 %v461
          %543 = vmatprep.subr.mxu0 %v464
          %544 = vmatpush1.msra.mxu0 %v463
          %545 = vmatprep.subr.mxu0 %v466
          %546 = vmatpush1.msra.mxu0 %v465
          %547 = vmatprep.subr.mxu0 %v468
          %548 = vmatpush1.msra.mxu0 %v467
          %549 = vmatprep.subr.mxu0 %v470
          %550 = vmatpush1.msra.mxu0 %v469
          %551 = vmatprep.subr.mxu0 %v472
          %552 = vmatpush1.msra.mxu0 %v471
          %553 = vmatprep.subr.mxu0 %v474
          %554 = vmatpush1.msra.mxu0 %v473
          %555 = vmatprep.subr.mxu0 %v476
          %556 = vmatpush1.msra.mxu0 %v475
          %557 = vmatprep.subr.mxu0 %v478
          %558 = vmatpush1.msra.mxu0 %v477
          %559 = vmatprep.subr.mxu0 %v480
          %560 = vmatpush1.msra.mxu0 %v479
          %561 = vmatprep.subr.mxu0 0.0
          %562 = vmatpush1.msra.mxu0 0.0
          %563 = vmatprep.subr.mxu0 0.0
          %564 = vmatpush1.msra.mxu0 0.0
          %565 = vmatprep.subr.mxu0 0.0
          %566 = vmatpush1.msra.mxu0 0.0
          %567 = vmatprep.subr.mxu0 0.0
          %568 = vmatpush1.msra.mxu0 0.0
          %569 = vmatprep.subr.mxu0 0.0
          %570 = vmatpush1.msra.mxu0 0.0
          %571 = vmatprep.subr.mxu0 0.0
          %572 = vmatpush1.msra.mxu0 0.0
          %573 = vmatprep.subr.mxu0 0.0
          %574 = vmatpush1.msra.mxu0 0.0
          %575 = vmatprep.subr.mxu0 0.0
          %576 = vmatpush1.msra.mxu0 0.0
          %577 = vmatprep.subr.mxu0 0.0
          %578 = vmatpush1.msra.mxu0 0.0
          %579 = vmatprep.subr.mxu0 0.0
          %580 = vmatpush1.msra.mxu0 0.0
          %581 = vmatprep.subr.mxu0 0.0
          %582 = vmatpush1.msra.mxu0 0.0
          %583 = vmatprep.subr.mxu0 0.0
          %584 = vmatpush1.msra.mxu0 0.0
          %585 = vmatprep.subr.mxu0 0.0
          %586 = vmatpush1.msra.mxu0 0.0
          %587 = vmatprep.subr.mxu0 0.0
          %588 = vmatpush1.msra.mxu0 0.0
          %589 = vmatprep.subr.mxu0 0.0
          %590 = vmatpush1.msra.mxu0 0.0
          %591 = vmatprep.subr.mxu0 0.0
          %592 = vmatpush1.msra.mxu0 0.0
          %593 = vmatprep.mubr.f32.mxu0 0.0
          %594 = vmatmul.mubr.f32.gmra.mrb[0].mxu0 %v513
          %v595 = vpop.f32.mrb[0].mxu0
          %v596 = vadd.f32 0.0, %v595
          %v597 = vpop.f32.mrb[0].mxu0
          %v598 = vadd.f32 0.0, %v597
          %599 = vmatprep.mubr.f32.mxu0 0.0
          %600 = vmatmul.mubr.f32.gmra.mrb[0].mxu0 %v514
          %v601 = vpop.f32.mrb[0].mxu0
          %v602 = vadd.f32 0.0, %v601
          %v603 = vpop.f32.mrb[0].mxu0
          %v604 = vadd.f32 0.0, %v603
          %605 = vmatprep.mubr.f32.mxu0 0.0
          %606 = vmatmul.mubr.f32.gmra.mrb[0].mxu0 %v515
          %v607 = vpop.f32.mrb[0].mxu0
          %v608 = vadd.f32 0.0, %v607
          %v609 = vpop.f32.mrb[0].mxu0
          %v610 = vadd.f32 0.0, %v609
          %611 = vmatprep.mubr.f32.mxu0 0.0
          %612 = vmatmul.mubr.f32.gmra.mrb[0].mxu0 %v516
          %v613 = vpop.f32.mrb[0].mxu0
          %v614 = vadd.f32 0.0, %v613
          %v615 = vpop.f32.mrb[0].mxu0
          %v616 = vadd.f32 0.0, %v615
          %617 = vmatprep.mubr.f32.mxu0 0.0
          %618 = vmatmul.mubr.f32.gmra.mrb[0].mxu0 %v517
          %v619 = vpop.f32.mrb[0].mxu0
          %v620 = vadd.f32 0.0, %v619
          %v621 = vpop.f32.mrb[0].mxu0
          %v622 = vadd.f32 0.0, %v621
          %623 = vmatprep.mubr.f32.mxu0 0.0
          %624 = vmatmul.mubr.f32.gmra.mrb[0].mxu0 %v518
          %v625 = vpop.f32.mrb[0].mxu0
          %v626 = vadd.f32 0.0, %v625
          %v627 = vpop.f32.mrb[0].mxu0
          %v628 = vadd.f32 0.0, %v627
          %629 = vmatprep.mubr.f32.mxu0 0.0
          %630 = vmatmul.mubr.f32.gmra.mrb[0].mxu0 %v519
          %v631 = vpop.f32.mrb[0].mxu0
          %v632 = vadd.f32 0.0, %v631
          %v633 = vpop.f32.mrb[0].mxu0
          %v634 = vadd.f32 0.0, %v633
          %635 = vmatprep.mubr.f32.mxu0 0.0
          %636 = vmatmul.mubr.f32.gmra.mrb[0].mxu0 %v520
          %v637 = vpop.f32.mrb[0].mxu0
          %v638 = vadd.f32 0.0, %v637
          %v639 = vpop.f32.mrb[0].mxu0
          %v640 = vadd.f32 0.0, %v639
          %641 = vmatprep.mubr.f32.mxu0 0.0
          %642 = vmatmul.mubr.f32.gmra.mrb[0].mxu0 %v521
          %v643 = vpop.f32.mrb[0].mxu0
          %v644 = vadd.f32 0.0, %v643
          %v645 = vpop.f32.mrb[0].mxu0
          %v646 = vadd.f32 0.0, %v645
          %647 = vmatprep.mubr.f32.mxu0 0.0
          %648 = vmatmul.mubr.f32.gmra.mrb[0].mxu0 %v522
          %v649 = vpop.f32.mrb[0].mxu0
          %v650 = vadd.f32 0.0, %v649
          %v651 = vpop.f32.mrb[0].mxu0
          %v652 = vadd.f32 0.0, %v651
          %653 = vmatprep.mubr.f32.mxu0 0.0
          %654 = vmatmul.mubr.f32.gmra.mrb[0].mxu0 %v523
          %v655 = vpop.f32.mrb[0].mxu0
          %v656 = vadd.f32 0.0, %v655
          %v657 = vpop.f32.mrb[0].mxu0
          %v658 = vadd.f32 0.0, %v657
          %659 = vmatprep.mubr.f32.mxu0 0.0
          %660 = vmatmul.mubr.f32.gmra.mrb[0].mxu0 %v524
          %v661 = vpop.f32.mrb[0].mxu0
          %v662 = vadd.f32 0.0, %v661
          %v663 = vpop.f32.mrb[0].mxu0
          %v664 = vadd.f32 0.0, %v663
          %665 = vmatprep.mubr.f32.mxu0 0.0
          %666 = vmatmul.mubr.f32.gmra.mrb[0].mxu0 %v525
          %v667 = vpop.f32.mrb[0].mxu0
          %v668 = vadd.f32 0.0, %v667
          %v669 = vpop.f32.mrb[0].mxu0
          %v670 = vadd.f32 0.0, %v669
          %671 = vmatprep.mubr.f32.mxu0 0.0
          %672 = vmatmul.mubr.f32.gmra.mrb[0].mxu0 %v526
          %v673 = vpop.f32.mrb[0].mxu0
          %v674 = vadd.f32 0.0, %v673
          %v675 = vpop.f32.mrb[0].mxu0
          %v676 = vadd.f32 0.0, %v675
          %677 = vmatprep.mubr.f32.mxu0 0.0
          %678 = vmatmul.mubr.f32.gmra.mrb[0].mxu0 %v527
          %v679 = vpop.f32.mrb[0].mxu0
          %v680 = vadd.f32 0.0, %v679
          %v681 = vpop.f32.mrb[0].mxu0
          %v682 = vadd.f32 0.0, %v681
          %683 = vmatprep.mubr.f32.mxu0 0.0
          %684 = vmatmul.mubr.f32.gmra.mrb[0].mxu0 %v528
          %v685 = vpop.f32.mrb[0].mxu0
          %v686 = vadd.f32 0.0, %v685
          %v687 = vpop.f32.mrb[0].mxu0
          %v688 = vadd.f32 0.0, %v687
          %689 = vdwg.mxu0
          %v690 = vadd.f32 %v481, %v596
          %v691 = vadd.f32 %v482, %v598
          %v692 = vadd.f32 %v483, %v602
          %v693 = vadd.f32 %v484, %v604
          %v694 = vadd.f32 %v485, %v608
          %v695 = vadd.f32 %v486, %v610
          %v696 = vadd.f32 %v487, %v614
          %v697 = vadd.f32 %v488, %v616
          %v698 = vadd.f32 %v489, %v620
          %v699 = vadd.f32 %v490, %v622
          %v700 = vadd.f32 %v491, %v626
          %v701 = vadd.f32 %v492, %v628
          %v702 = vadd.f32 %v493, %v632
          %v703 = vadd.f32 %v494, %v634
          %v704 = vadd.f32 %v495, %v638
          %v705 = vadd.f32 %v496, %v640
          %v706 = vadd.f32 %v497, %v644
          %v707 = vadd.f32 %v498, %v646
          %v708 = vadd.f32 %v499, %v650
          %v709 = vadd.f32 %v500, %v652
          %v710 = vadd.f32 %v501, %v656
          %v711 = vadd.f32 %v502, %v658
          %v712 = vadd.f32 %v503, %v662
          %v713 = vadd.f32 %v504, %v664
          %v714 = vadd.f32 %v505, %v668
          %v715 = vadd.f32 %v506, %v670
          %v716 = vadd.f32 %v507, %v674
          %v717 = vadd.f32 %v508, %v676
          %v718 = vadd.f32 %v509, %v680
          %v719 = vadd.f32 %v510, %v682
          %v720 = vadd.f32 %v511, %v686
          %v721 = vadd.f32 %v512, %v688
          %722 = vst [vmem:[#allocation2] sm:$0xff] %v690
          %723 = vst [vmem:[#allocation2 + $0x8] sm:$0xff] %v691
          %724 = vst [vmem:[#allocation2 + $0x10] sm:$0xff] %v692
          %725 = vst [vmem:[#allocation2 + $0x18] sm:$0xff] %v693
          %726 = vst [vmem:[#allocation2 + $0x20] sm:$0xff] %v694
          %727 = vst [vmem:[#allocation2 + $0x28] sm:$0xff] %v695
          %728 = vst [vmem:[#allocation2 + $0x30] sm:$0xff] %v696
          %729 = vst [vmem:[#allocation2 + $0x38] sm:$0xff] %v697
          %730 = vst [vmem:[#allocation2 + $0x40] sm:$0xff] %v698
          %731 = vst [vmem:[#allocation2 + $0x48] sm:$0xff] %v699
          %732 = vst [vmem:[#allocation2 + $0x50] sm:$0xff] %v700
          %733 = vst [vmem:[#allocation2 + $0x58] sm:$0xff] %v701
          %734 = vst [vmem:[#allocation2 + $0x60] sm:$0xff] %v702
          %735 = vst [vmem:[#allocation2 + $0x68] sm:$0xff] %v703
          %736 = vst [vmem:[#allocation2 + $0x70] sm:$0xff] %v704
          %737 = vst [vmem:[#allocation2 + $0x78] sm:$0xff] %v705
          %738 = vst [vmem:[#allocation2 + $0x80] sm:$0xff] %v706
          %739 = vst [vmem:[#allocation2 + $0x88] sm:$0xff] %v707
          %740 = vst [vmem:[#allocation2 + $0x90] sm:$0xff] %v708
          %741 = vst [vmem:[#allocation2 + $0x98] sm:$0xff] %v709
          %742 = vst [vmem:[#allocation2 + $0xa0] sm:$0xff] %v710
          %743 = vst [vmem:[#allocation2 + $0xa8] sm:$0xff] %v711
          %744 = vst [vmem:[#allocation2 + $0xb0] sm:$0xff] %v712
          %745 = vst [vmem:[#allocation2 + $0xb8] sm:$0xff] %v713
          %746 = vst [vmem:[#allocation2 + $0xc0] sm:$0xff] %v714
          %747 = vst [vmem:[#allocation2 + $0xc8] sm:$0xff] %v715
          %748 = vst [vmem:[#allocation2 + $0xd0] sm:$0xff] %v716
          %749 = vst [vmem:[#allocation2 + $0xd8] sm:$0xff] %v717
          %750 = vst [vmem:[#allocation2 + $0xe0] sm:$0xff] %v718
          %751 = vst [vmem:[#allocation2 + $0xe8] sm:$0xff] %v719
          %752 = vst [vmem:[#allocation2 + $0xf0] sm:$0xff] %v720
          %753 = vst [vmem:[#allocation2 + $0xf8] sm:$0xff] %v721
        $region86: #{gcn3_forward.4} parent=73 // pred_fallthru
          _
        %p754 = scmp.eq.s32.totalorder %s33, 1
        // Predicated region
        $region87: #{gcn3_forward.4} parent=73 // pred_check
          %p755 = pneg %p754
        $region88: #{gcn3_forward.4} parent=73 // pred_check_branch
          %757 = sbr.rel (%p755) target = $region90
        $region89: #{gcn3_forward.4} parent=73 // pred_region
          %v758 = vld [vmem:[#allocation2] sm:$0xff]
          %v759 = vld [vmem:[#allocation2 + $0x8] sm:$0xff]
          %v760 = vld [vmem:[#allocation2 + $0x10] sm:$0xff]
          %v761 = vld [vmem:[#allocation2 + $0x18] sm:$0xff]
          %v762 = vld [vmem:[#allocation2 + $0x20] sm:$0xff]
          %v763 = vld [vmem:[#allocation2 + $0x28] sm:$0xff]
          %v764 = vld [vmem:[#allocation2 + $0x30] sm:$0xff]
          %v765 = vld [vmem:[#allocation2 + $0x38] sm:$0xff]
          %v766 = vld [vmem:[#allocation2 + $0x40] sm:$0xff]
          %v767 = vld [vmem:[#allocation2 + $0x48] sm:$0xff]
          %v768 = vld [vmem:[#allocation2 + $0x50] sm:$0xff]
          %v769 = vld [vmem:[#allocation2 + $0x58] sm:$0xff]
          %v770 = vld [vmem:[#allocation2 + $0x60] sm:$0xff]
          %v771 = vld [vmem:[#allocation2 + $0x68] sm:$0xff]
          %v772 = vld [vmem:[#allocation2 + $0x70] sm:$0xff]
          %v773 = vld [vmem:[#allocation2 + $0x78] sm:$0xff]
          %v774 = vld [vmem:[#allocation2 + $0x80] sm:$0xff]
          %v775 = vld [vmem:[#allocation2 + $0x88] sm:$0xff]
          %v776 = vld [vmem:[#allocation2 + $0x90] sm:$0xff]
          %v777 = vld [vmem:[#allocation2 + $0x98] sm:$0xff]
          %v778 = vld [vmem:[#allocation2 + $0xa0] sm:$0xff]
          %v779 = vld [vmem:[#allocation2 + $0xa8] sm:$0xff]
          %v780 = vld [vmem:[#allocation2 + $0xb0] sm:$0xff]
          %v781 = vld [vmem:[#allocation2 + $0xb8] sm:$0xff]
          %v782 = vld [vmem:[#allocation2 + $0xc0] sm:$0xff]
          %v783 = vld [vmem:[#allocation2 + $0xc8] sm:$0xff]
          %v784 = vld [vmem:[#allocation2 + $0xd0] sm:$0xff]
          %v785 = vld [vmem:[#allocation2 + $0xd8] sm:$0xff]
          %v786 = vld [vmem:[#allocation2 + $0xe0] sm:$0xff]
          %v787 = vld [vmem:[#allocation2 + $0xe8] sm:$0xff]
          %v788 = vld [vmem:[#allocation2 + $0xf0] sm:$0xff]
          %v789 = vld [vmem:[#allocation2 + $0xf8] sm:$0xff]
          %v790 = vld [vmem:[%s4] sm:$0xff]
          %v791 = vld [vmem:[%s4 + $0x8] sm:$0xff]
          %v792 = vld [vmem:[%s4 + $0x10] sm:$0xff]
          %v793 = vld [vmem:[%s4 + $0x18] sm:$0xff]
          %v794 = vld [vmem:[%s4 + $0x20] sm:$0xff]
          %v795 = vld [vmem:[%s4 + $0x28] sm:$0xff]
          %v796 = vld [vmem:[%s4 + $0x30] sm:$0xff]
          %v797 = vld [vmem:[%s4 + $0x38] sm:$0xff]
          %v798 = vld [vmem:[%s4 + $0x40] sm:$0xff]
          %v799 = vld [vmem:[%s4 + $0x48] sm:$0xff]
          %v800 = vld [vmem:[%s4 + $0x50] sm:$0xff]
          %v801 = vld [vmem:[%s4 + $0x58] sm:$0xff]
          %v802 = vld [vmem:[%s4 + $0x60] sm:$0xff]
          %v803 = vld [vmem:[%s4 + $0x68] sm:$0xff]
          %v804 = vld [vmem:[%s4 + $0x70] sm:$0xff]
          %v805 = vld [vmem:[%s4 + $0x78] sm:$0xff]
          %v806 = vld [vmem:[%s4 + $0x80] sm:$0xff]
          %v807 = vld [vmem:[%s4 + $0x88] sm:$0xff]
          %v808 = vld [vmem:[%s4 + $0x90] sm:$0xff]
          %v809 = vld [vmem:[%s4 + $0x98] sm:$0xff]
          %v810 = vld [vmem:[%s4 + $0xa0] sm:$0xff]
          %v811 = vld [vmem:[%s4 + $0xa8] sm:$0xff]
          %v812 = vld [vmem:[%s4 + $0xb0] sm:$0xff]
          %v813 = vld [vmem:[%s4 + $0xb8] sm:$0xff]
          %v814 = vld [vmem:[%s4 + $0xc0] sm:$0xff]
          %v815 = vld [vmem:[%s4 + $0xc8] sm:$0xff]
          %v816 = vld [vmem:[%s4 + $0xd0] sm:$0xff]
          %v817 = vld [vmem:[%s4 + $0xd8] sm:$0xff]
          %v818 = vld [vmem:[%s4 + $0xe0] sm:$0xff]
          %v819 = vld [vmem:[%s4 + $0xe8] sm:$0xff]
          %v820 = vld [vmem:[%s4 + $0xf0] sm:$0xff]
          %v821 = vld [vmem:[%s4 + $0xf8] sm:$0xff]
          %v822 = vld [vmem:[%s4 + $0x100] sm:$0xff]
          %v823 = vld [vmem:[%s4 + $0x108] sm:$0xff]
          %v824 = vld [vmem:[%s4 + $0x110] sm:$0xff]
          %v825 = vld [vmem:[%s4 + $0x118] sm:$0xff]
          %v826 = vld [vmem:[%s4 + $0x120] sm:$0xff]
          %v827 = vld [vmem:[%s4 + $0x128] sm:$0xff]
          %v828 = vld [vmem:[%s4 + $0x130] sm:$0xff]
          %v829 = vld [vmem:[%s4 + $0x138] sm:$0xff]
          %v830 = vld [vmem:[%s4 + $0x140] sm:$0xff]
          %v831 = vld [vmem:[%s4 + $0x148] sm:$0xff]
          %v832 = vld [vmem:[%s4 + $0x150] sm:$0xff]
          %v833 = vld [vmem:[%s4 + $0x158] sm:$0xff]
          %v834 = vld [vmem:[%s4 + $0x160] sm:$0xff]
          %v835 = vld [vmem:[%s4 + $0x168] sm:$0xff]
          %v836 = vld [vmem:[%s4 + $0x170] sm:$0xff]
          %v837 = vld [vmem:[%s4 + $0x178] sm:$0xff]
          %v838 = vld [vmem:[%s4 + $0x180] sm:$0xff]
          %v839 = vld [vmem:[%s4 + $0x188] sm:$0xff]
          %v840 = vld [vmem:[%s4 + $0x190] sm:$0xff]
          %v841 = vld [vmem:[%s4 + $0x198] sm:$0xff]
          %v842 = vld [vmem:[%s4 + $0x1a0] sm:$0xff]
          %v843 = vld [vmem:[%s4 + $0x1a8] sm:$0xff]
          %v844 = vld [vmem:[%s4 + $0x1b0] sm:$0xff]
          %v845 = vld [vmem:[%s4 + $0x1b8] sm:$0xff]
          %v846 = vld [vmem:[%s4 + $0x1c0] sm:$0xff]
          %v847 = vld [vmem:[%s4 + $0x1c8] sm:$0xff]
          %v848 = vld [vmem:[%s4 + $0x1d0] sm:$0xff]
          %v849 = vld [vmem:[%s4 + $0x1d8] sm:$0xff]
          %v850 = vld [vmem:[%s4 + $0x1e0] sm:$0xff]
          %v851 = vld [vmem:[%s4 + $0x1e8] sm:$0xff]
          %v852 = vld [vmem:[%s4 + $0x1f0] sm:$0xff]
          %v853 = vld [vmem:[%s4 + $0x1f8] sm:$0xff]
          %v854 = vld [vmem:[%s5] sm:$0x3]
          %v856 = vlaneseq
          %v857 = vshrl.u32 %v856, 7
          %v858 = vsub.s32 0, %v857
          %v859 = vrot.slane %v854, %v858
          %v860 = vlaneseq
          %v861 = vshrl.u32 %v860, 7
          %v862 = vsub.s32 1, %v861
          %v863 = vrot.slane %v854, %v862
          %866 = vmatprep.subr.mxu0 %v791
          %867 = vmatpush1.msra.mxu0 %v790
          %868 = vmatprep.subr.mxu0 %v793
          %869 = vmatpush1.msra.mxu0 %v792
          %870 = vmatprep.subr.mxu0 %v795
          %871 = vmatpush1.msra.mxu0 %v794
          %872 = vmatprep.subr.mxu0 %v797
          %873 = vmatpush1.msra.mxu0 %v796
          %874 = vmatprep.subr.mxu0 %v799
          %875 = vmatpush1.msra.mxu0 %v798
          %876 = vmatprep.subr.mxu0 %v801
          %877 = vmatpush1.msra.mxu0 %v800
          %878 = vmatprep.subr.mxu0 %v803
          %879 = vmatpush1.msra.mxu0 %v802
          %880 = vmatprep.subr.mxu0 %v805
          %881 = vmatpush1.msra.mxu0 %v804
          %882 = vmatprep.subr.mxu0 %v807
          %883 = vmatpush1.msra.mxu0 %v806
          %884 = vmatprep.subr.mxu0 %v809
          %885 = vmatpush1.msra.mxu0 %v808
          %886 = vmatprep.subr.mxu0 %v811
          %887 = vmatpush1.msra.mxu0 %v810
          %888 = vmatprep.subr.mxu0 %v813
          %889 = vmatpush1.msra.mxu0 %v812
          %890 = vmatprep.subr.mxu0 %v815
          %891 = vmatpush1.msra.mxu0 %v814
          %892 = vmatprep.subr.mxu0 %v817
          %893 = vmatpush1.msra.mxu0 %v816
          %894 = vmatprep.subr.mxu0 %v819
          %895 = vmatpush1.msra.mxu0 %v818
          %896 = vmatprep.subr.mxu0 %v821
          %897 = vmatpush1.msra.mxu0 %v820
          %898 = vmatprep.subr.mxu0 %v823
          %899 = vmatpush1.msra.mxu0 %v822
          %900 = vmatprep.subr.mxu0 %v825
          %901 = vmatpush1.msra.mxu0 %v824
          %902 = vmatprep.subr.mxu0 %v827
          %903 = vmatpush1.msra.mxu0 %v826
          %904 = vmatprep.subr.mxu0 %v829
          %905 = vmatpush1.msra.mxu0 %v828
          %906 = vmatprep.subr.mxu0 %v831
          %907 = vmatpush1.msra.mxu0 %v830
          %908 = vmatprep.subr.mxu0 %v833
          %909 = vmatpush1.msra.mxu0 %v832
          %910 = vmatprep.subr.mxu0 %v835
          %911 = vmatpush1.msra.mxu0 %v834
          %912 = vmatprep.subr.mxu0 %v837
          %913 = vmatpush1.msra.mxu0 %v836
          %914 = vmatprep.subr.mxu0 %v839
          %915 = vmatpush1.msra.mxu0 %v838
          %916 = vmatprep.subr.mxu0 %v841
          %917 = vmatpush1.msra.mxu0 %v840
          %918 = vmatprep.subr.mxu0 %v843
          %919 = vmatpush1.msra.mxu0 %v842
          %920 = vmatprep.subr.mxu0 %v845
          %921 = vmatpush1.msra.mxu0 %v844
          %922 = vmatprep.subr.mxu0 %v847
          %923 = vmatpush1.msra.mxu0 %v846
          %924 = vmatprep.subr.mxu0 %v849
          %925 = vmatpush1.msra.mxu0 %v848
          %926 = vmatprep.subr.mxu0 %v851
          %927 = vmatpush1.msra.mxu0 %v850
          %928 = vmatprep.subr.mxu0 %v853
          %929 = vmatpush1.msra.mxu0 %v852
          %930 = vmatprep.mubr.f32.mxu0 %v759
          %931 = vmatmul.mubr.f32.gmra.mrb[0].mxu0 %v758
          %v932 = vpop.f32.mrb[0].mxu0
          %v933 = vadd.f32 %v859, %v932
          %v934 = vpop.f32.mrb[0].mxu0
          %v935 = vadd.f32 %v863, %v934
          %936 = vmatprep.mubr.f32.mxu0 %v761
          %937 = vmatmul.mubr.f32.gmra.mrb[0].mxu0 %v760
          %v938 = vpop.f32.mrb[0].mxu0
          %v939 = vadd.f32 %v859, %v938
          %v940 = vpop.f32.mrb[0].mxu0
          %v941 = vadd.f32 %v863, %v940
          %942 = vmatprep.mubr.f32.mxu0 %v763
          %943 = vmatmul.mubr.f32.gmra.mrb[0].mxu0 %v762
          %v944 = vpop.f32.mrb[0].mxu0
          %v945 = vadd.f32 %v859, %v944
          %v946 = vpop.f32.mrb[0].mxu0
          %v947 = vadd.f32 %v863, %v946
          %948 = vmatprep.mubr.f32.mxu0 %v765
          %949 = vmatmul.mubr.f32.gmra.mrb[0].mxu0 %v764
          %v950 = vpop.f32.mrb[0].mxu0
          %v951 = vadd.f32 %v859, %v950
          %v952 = vpop.f32.mrb[0].mxu0
          %v953 = vadd.f32 %v863, %v952
          %954 = vmatprep.mubr.f32.mxu0 %v767
          %955 = vmatmul.mubr.f32.gmra.mrb[0].mxu0 %v766
          %v956 = vpop.f32.mrb[0].mxu0
          %v957 = vadd.f32 %v859, %v956
          %v958 = vpop.f32.mrb[0].mxu0
          %v959 = vadd.f32 %v863, %v958
          %960 = vmatprep.mubr.f32.mxu0 %v769
          %961 = vmatmul.mubr.f32.gmra.mrb[0].mxu0 %v768
          %v962 = vpop.f32.mrb[0].mxu0
          %v963 = vadd.f32 %v859, %v962
          %v964 = vpop.f32.mrb[0].mxu0
          %v965 = vadd.f32 %v863, %v964
          %966 = vmatprep.mubr.f32.mxu0 %v771
          %967 = vmatmul.mubr.f32.gmra.mrb[0].mxu0 %v770
          %v968 = vpop.f32.mrb[0].mxu0
          %v969 = vadd.f32 %v859, %v968
          %v970 = vpop.f32.mrb[0].mxu0
          %v971 = vadd.f32 %v863, %v970
          %972 = vmatprep.mubr.f32.mxu0 %v773
          %973 = vmatmul.mubr.f32.gmra.mrb[0].mxu0 %v772
          %v974 = vpop.f32.mrb[0].mxu0
          %v975 = vadd.f32 %v859, %v974
          %v976 = vpop.f32.mrb[0].mxu0
          %v977 = vadd.f32 %v863, %v976
          %978 = vmatprep.mubr.f32.mxu0 %v775
          %979 = vmatmul.mubr.f32.gmra.mrb[0].mxu0 %v774
          %v980 = vpop.f32.mrb[0].mxu0
          %v981 = vadd.f32 %v859, %v980
          %v982 = vpop.f32.mrb[0].mxu0
          %v983 = vadd.f32 %v863, %v982
          %984 = vmatprep.mubr.f32.mxu0 %v777
          %985 = vmatmul.mubr.f32.gmra.mrb[0].mxu0 %v776
          %v986 = vpop.f32.mrb[0].mxu0
          %v987 = vadd.f32 %v859, %v986
          %v988 = vpop.f32.mrb[0].mxu0
          %v989 = vadd.f32 %v863, %v988
          %990 = vmatprep.mubr.f32.mxu0 %v779
          %991 = vmatmul.mubr.f32.gmra.mrb[0].mxu0 %v778
          %v992 = vpop.f32.mrb[0].mxu0
          %v993 = vadd.f32 %v859, %v992
          %v994 = vpop.f32.mrb[0].mxu0
          %v995 = vadd.f32 %v863, %v994
          %996 = vmatprep.mubr.f32.mxu0 %v781
          %997 = vmatmul.mubr.f32.gmra.mrb[0].mxu0 %v780
          %v998 = vpop.f32.mrb[0].mxu0
          %v999 = vadd.f32 %v859, %v998
          %v1000 = vpop.f32.mrb[0].mxu0
          %v1001 = vadd.f32 %v863, %v1000
          %1002 = vmatprep.mubr.f32.mxu0 %v783
          %1003 = vmatmul.mubr.f32.gmra.mrb[0].mxu0 %v782
          %v1004 = vpop.f32.mrb[0].mxu0
          %v1005 = vadd.f32 %v859, %v1004
          %v1006 = vpop.f32.mrb[0].mxu0
          %v1007 = vadd.f32 %v863, %v1006
          %1008 = vmatprep.mubr.f32.mxu0 %v785
          %1009 = vmatmul.mubr.f32.gmra.mrb[0].mxu0 %v784
          %v1010 = vpop.f32.mrb[0].mxu0
          %v1011 = vadd.f32 %v859, %v1010
          %v1012 = vpop.f32.mrb[0].mxu0
          %v1013 = vadd.f32 %v863, %v1012
          %1014 = vmatprep.mubr.f32.mxu0 %v787
          %1015 = vmatmul.mubr.f32.gmra.mrb[0].mxu0 %v786
          %v1016 = vpop.f32.mrb[0].mxu0
          %v1017 = vadd.f32 %v859, %v1016
          %v1018 = vpop.f32.mrb[0].mxu0
          %v1019 = vadd.f32 %v863, %v1018
          %1020 = vmatprep.mubr.f32.mxu0 %v789
          %1021 = vmatmul.mubr.f32.gmra.mrb[0].mxu0 %v788
          %v1022 = vpop.f32.mrb[0].mxu0
          %v1023 = vadd.f32 %v859, %v1022
          %v1024 = vpop.f32.mrb[0].mxu0
          %v1025 = vadd.f32 %v863, %v1024
          %1026 = vdwg.mxu0
          %vm1027 = vcmp.gt.f32.partialorder %v933, 0.0
          %vm1028 = vcmp.gt.f32.partialorder %v935, 0.0
          %vm1029 = vcmp.gt.f32.partialorder %v939, 0.0
          %vm1030 = vcmp.gt.f32.partialorder %v941, 0.0
          %vm1031 = vcmp.gt.f32.partialorder %v945, 0.0
          %vm1032 = vcmp.gt.f32.partialorder %v947, 0.0
          %vm1033 = vcmp.gt.f32.partialorder %v951, 0.0
          %vm1034 = vcmp.gt.f32.partialorder %v953, 0.0
          %vm1035 = vcmp.gt.f32.partialorder %v957, 0.0
          %vm1036 = vcmp.gt.f32.partialorder %v959, 0.0
          %vm1037 = vcmp.gt.f32.partialorder %v963, 0.0
          %vm1038 = vcmp.gt.f32.partialorder %v965, 0.0
          %vm1039 = vcmp.gt.f32.partialorder %v969, 0.0
          %vm1040 = vcmp.gt.f32.partialorder %v971, 0.0
          %vm1041 = vcmp.gt.f32.partialorder %v975, 0.0
          %vm1042 = vcmp.gt.f32.partialorder %v977, 0.0
          %vm1043 = vcmp.gt.f32.partialorder %v981, 0.0
          %vm1044 = vcmp.gt.f32.partialorder %v983, 0.0
          %vm1045 = vcmp.gt.f32.partialorder %v987, 0.0
          %vm1046 = vcmp.gt.f32.partialorder %v989, 0.0
          %vm1047 = vcmp.gt.f32.partialorder %v993, 0.0
          %vm1048 = vcmp.gt.f32.partialorder %v995, 0.0
          %vm1049 = vcmp.gt.f32.partialorder %v999, 0.0
          %vm1050 = vcmp.gt.f32.partialorder %v1001, 0.0
          %vm1051 = vcmp.gt.f32.partialorder %v1005, 0.0
          %vm1052 = vcmp.gt.f32.partialorder %v1007, 0.0
          %vm1053 = vcmp.gt.f32.partialorder %v1011, 0.0
          %vm1054 = vcmp.gt.f32.partialorder %v1013, 0.0
          %vm1055 = vcmp.gt.f32.partialorder %v1017, 0.0
          %vm1056 = vcmp.gt.f32.partialorder %v1019, 0.0
          %vm1057 = vcmp.gt.f32.partialorder %v1023, 0.0
          %vm1058 = vcmp.gt.f32.partialorder %v1025, 0.0
          %v1059 = vmul.f32 %v933, 0.1
          %v1060 = vmul.f32 %v935, 0.1
          %v1061 = vmul.f32 %v939, 0.1
          %v1062 = vmul.f32 %v941, 0.1
          %v1063 = vmul.f32 %v945, 0.1
          %v1064 = vmul.f32 %v947, 0.1
          %v1065 = vmul.f32 %v951, 0.1
          %v1066 = vmul.f32 %v953, 0.1
          %v1067 = vmul.f32 %v957, 0.1
          %v1068 = vmul.f32 %v959, 0.1
          %v1069 = vmul.f32 %v963, 0.1
          %v1070 = vmul.f32 %v965, 0.1
          %v1071 = vmul.f32 %v969, 0.1
          %v1072 = vmul.f32 %v971, 0.1
          %v1073 = vmul.f32 %v975, 0.1
          %v1074 = vmul.f32 %v977, 0.1
          %v1075 = vmul.f32 %v981, 0.1
          %v1076 = vmul.f32 %v983, 0.1
          %v1077 = vmul.f32 %v987, 0.1
          %v1078 = vmul.f32 %v989, 0.1
          %v1079 = vmul.f32 %v993, 0.1
          %v1080 = vmul.f32 %v995, 0.1
          %v1081 = vmul.f32 %v999, 0.1
          %v1082 = vmul.f32 %v1001, 0.1
          %v1083 = vmul.f32 %v1005, 0.1
          %v1084 = vmul.f32 %v1007, 0.1
          %v1085 = vmul.f32 %v1011, 0.1
          %v1086 = vmul.f32 %v1013, 0.1
          %v1087 = vmul.f32 %v1017, 0.1
          %v1088 = vmul.f32 %v1019, 0.1
          %v1089 = vmul.f32 %v1023, 0.1
          %v1090 = vmul.f32 %v1025, 0.1
          %v1091 = vsel %vm1027, %v933, %v1059
          %v1092 = vsel %vm1028, %v935, %v1060
          %v1093 = vsel %vm1029, %v939, %v1061
          %v1094 = vsel %vm1030, %v941, %v1062
          %v1095 = vsel %vm1031, %v945, %v1063
          %v1096 = vsel %vm1032, %v947, %v1064
          %v1097 = vsel %vm1033, %v951, %v1065
          %v1098 = vsel %vm1034, %v953, %v1066
          %v1099 = vsel %vm1035, %v957, %v1067
          %v1100 = vsel %vm1036, %v959, %v1068
          %v1101 = vsel %vm1037, %v963, %v1069
          %v1102 = vsel %vm1038, %v965, %v1070
          %v1103 = vsel %vm1039, %v969, %v1071
          %v1104 = vsel %vm1040, %v971, %v1072
          %v1105 = vsel %vm1041, %v975, %v1073
          %v1106 = vsel %vm1042, %v977, %v1074
          %v1107 = vsel %vm1043, %v981, %v1075
          %v1108 = vsel %vm1044, %v983, %v1076
          %v1109 = vsel %vm1045, %v987, %v1077
          %v1110 = vsel %vm1046, %v989, %v1078
          %v1111 = vsel %vm1047, %v993, %v1079
          %v1112 = vsel %vm1048, %v995, %v1080
          %v1113 = vsel %vm1049, %v999, %v1081
          %v1114 = vsel %vm1050, %v1001, %v1082
          %v1115 = vsel %vm1051, %v1005, %v1083
          %v1116 = vsel %vm1052, %v1007, %v1084
          %v1117 = vsel %vm1053, %v1011, %v1085
          %v1118 = vsel %vm1054, %v1013, %v1086
          %v1119 = vsel %vm1055, %v1017, %v1087
          %v1120 = vsel %vm1056, %v1019, %v1088
          %v1121 = vsel %vm1057, %v1023, %v1089
          %v1122 = vsel %vm1058, %v1025, %v1090
          %v1123 = vld [vmem:[%s6] sm:$0xff]
          %v1124 = vld [vmem:[%s6 + $0x8] sm:$0xff]
          %v1125 = vld [vmem:[%s6 + $0x10] sm:$0xff]
          %v1126 = vld [vmem:[%s6 + $0x18] sm:$0xff]
          %v1127 = vld [vmem:[%s6 + $0x20] sm:$0xff]
          %v1128 = vld [vmem:[%s6 + $0x28] sm:$0xff]
          %v1129 = vld [vmem:[%s6 + $0x30] sm:$0xff]
          %v1130 = vld [vmem:[%s6 + $0x38] sm:$0xff]
          %v1131 = vld [vmem:[%s6 + $0x40] sm:$0xff]
          %v1132 = vld [vmem:[%s6 + $0x48] sm:$0xff]
          %v1133 = vld [vmem:[%s6 + $0x50] sm:$0xff]
          %v1134 = vld [vmem:[%s6 + $0x58] sm:$0xff]
          %v1135 = vld [vmem:[%s6 + $0x60] sm:$0xff]
          %v1136 = vld [vmem:[%s6 + $0x68] sm:$0xff]
          %v1137 = vld [vmem:[%s6 + $0x70] sm:$0xff]
          %v1138 = vld [vmem:[%s6 + $0x78] sm:$0xff]
          %v1139 = vld [vmem:[%s6 + $0x80] sm:$0xff]
          %v1140 = vld [vmem:[%s6 + $0x88] sm:$0xff]
          %v1141 = vld [vmem:[%s6 + $0x90] sm:$0xff]
          %v1142 = vld [vmem:[%s6 + $0x98] sm:$0xff]
          %v1143 = vld [vmem:[%s6 + $0xa0] sm:$0xff]
          %v1144 = vld [vmem:[%s6 + $0xa8] sm:$0xff]
          %v1145 = vld [vmem:[%s6 + $0xb0] sm:$0xff]
          %v1146 = vld [vmem:[%s6 + $0xb8] sm:$0xff]
          %v1147 = vld [vmem:[%s6 + $0xc0] sm:$0xff]
          %v1148 = vld [vmem:[%s6 + $0xc8] sm:$0xff]
          %v1149 = vld [vmem:[%s6 + $0xd0] sm:$0xff]
          %v1150 = vld [vmem:[%s6 + $0xd8] sm:$0xff]
          %v1151 = vld [vmem:[%s6 + $0xe0] sm:$0xff]
          %v1152 = vld [vmem:[%s6 + $0xe8] sm:$0xff]
          %v1153 = vld [vmem:[%s6 + $0xf0] sm:$0xff]
          %v1154 = vld [vmem:[%s6 + $0xf8] sm:$0xff]
          %1155 = vmatprep.subr.mxu0 0.0
          %1156 = vmatpush1.msra.mxu0 %v1123
          %1157 = vmatprep.subr.mxu0 0.0
          %1158 = vmatpush1.msra.mxu0 %v1124
          %1159 = vmatprep.subr.mxu0 0.0
          %1160 = vmatpush1.msra.mxu0 %v1125
          %1161 = vmatprep.subr.mxu0 0.0
          %1162 = vmatpush1.msra.mxu0 %v1126
          %1163 = vmatprep.subr.mxu0 0.0
          %1164 = vmatpush1.msra.mxu0 %v1127
          %1165 = vmatprep.subr.mxu0 0.0
          %1166 = vmatpush1.msra.mxu0 %v1128
          %1167 = vmatprep.subr.mxu0 0.0
          %1168 = vmatpush1.msra.mxu0 %v1129
          %1169 = vmatprep.subr.mxu0 0.0
          %1170 = vmatpush1.msra.mxu0 %v1130
          %1171 = vmatprep.subr.mxu0 0.0
          %1172 = vmatpush1.msra.mxu0 %v1131
          %1173 = vmatprep.subr.mxu0 0.0
          %1174 = vmatpush1.msra.mxu0 %v1132
          %1175 = vmatprep.subr.mxu0 0.0
          %1176 = vmatpush1.msra.mxu0 %v1133
          %1177 = vmatprep.subr.mxu0 0.0
          %1178 = vmatpush1.msra.mxu0 %v1134
          %1179 = vmatprep.subr.mxu0 0.0
          %1180 = vmatpush1.msra.mxu0 %v1135
          %1181 = vmatprep.subr.mxu0 0.0
          %1182 = vmatpush1.msra.mxu0 %v1136
          %1183 = vmatprep.subr.mxu0 0.0
          %1184 = vmatpush1.msra.mxu0 %v1137
          %1185 = vmatprep.subr.mxu0 0.0
          %1186 = vmatpush1.msra.mxu0 %v1138
          %1187 = vmatprep.subr.mxu0 0.0
          %1188 = vmatpush1.msra.mxu0 %v1139
          %1189 = vmatprep.subr.mxu0 0.0
          %1190 = vmatpush1.msra.mxu0 %v1140
          %1191 = vmatprep.subr.mxu0 0.0
          %1192 = vmatpush1.msra.mxu0 %v1141
          %1193 = vmatprep.subr.mxu0 0.0
          %1194 = vmatpush1.msra.mxu0 %v1142
          %1195 = vmatprep.subr.mxu0 0.0
          %1196 = vmatpush1.msra.mxu0 %v1143
          %1197 = vmatprep.subr.mxu0 0.0
          %1198 = vmatpush1.msra.mxu0 %v1144
          %1199 = vmatprep.subr.mxu0 0.0
          %1200 = vmatpush1.msra.mxu0 %v1145
          %1201 = vmatprep.subr.mxu0 0.0
          %1202 = vmatpush1.msra.mxu0 %v1146
          %1203 = vmatprep.subr.mxu0 0.0
          %1204 = vmatpush1.msra.mxu0 %v1147
          %1205 = vmatprep.subr.mxu0 0.0
          %1206 = vmatpush1.msra.mxu0 %v1148
          %1207 = vmatprep.subr.mxu0 0.0
          %1208 = vmatpush1.msra.mxu0 %v1149
          %1209 = vmatprep.subr.mxu0 0.0
          %1210 = vmatpush1.msra.mxu0 %v1150
          %1211 = vmatprep.subr.mxu0 0.0
          %1212 = vmatpush1.msra.mxu0 %v1151
          %1213 = vmatprep.subr.mxu0 0.0
          %1214 = vmatpush1.msra.mxu0 %v1152
          %1215 = vmatprep.subr.mxu0 0.0
          %1216 = vmatpush1.msra.mxu0 %v1153
          %1217 = vmatprep.subr.mxu0 0.0
          %1218 = vmatpush1.msra.mxu0 %v1154
          %1219 = vmatprep.mubr.f32.mxu0 %v1092
          %1220 = vmatmul.mubr.f32.gmra.mrb[0].mxu0 %v1091
          %v1221 = vpop.f32.mrb[0].mxu0
          %v1222 = vadd.f32 0.0, %v1221
          %v1223 = vpop.f32.mrb[0].mxu0
          %1224 = vmatprep.mubr.f32.mxu0 %v1094
          %1225 = vmatmul.mubr.f32.gmra.mrb[0].mxu0 %v1093
          %v1226 = vpop.f32.mrb[0].mxu0
          %v1227 = vadd.f32 0.0, %v1226
          %v1228 = vpop.f32.mrb[0].mxu0
          %1229 = vmatprep.mubr.f32.mxu0 %v1096
          %1230 = vmatmul.mubr.f32.gmra.mrb[0].mxu0 %v1095
          %v1231 = vpop.f32.mrb[0].mxu0
          %v1232 = vadd.f32 0.0, %v1231
          %v1233 = vpop.f32.mrb[0].mxu0
          %1234 = vmatprep.mubr.f32.mxu0 %v1098
          %1235 = vmatmul.mubr.f32.gmra.mrb[0].mxu0 %v1097
          %v1236 = vpop.f32.mrb[0].mxu0
          %v1237 = vadd.f32 0.0, %v1236
          %v1238 = vpop.f32.mrb[0].mxu0
          %1239 = vmatprep.mubr.f32.mxu0 %v1100
          %1240 = vmatmul.mubr.f32.gmra.mrb[0].mxu0 %v1099
          %v1241 = vpop.f32.mrb[0].mxu0
          %v1242 = vadd.f32 0.0, %v1241
          %v1243 = vpop.f32.mrb[0].mxu0
          %1244 = vmatprep.mubr.f32.mxu0 %v1102
          %1245 = vmatmul.mubr.f32.gmra.mrb[0].mxu0 %v1101
          %v1246 = vpop.f32.mrb[0].mxu0
          %v1247 = vadd.f32 0.0, %v1246
          %v1248 = vpop.f32.mrb[0].mxu0
          %1249 = vmatprep.mubr.f32.mxu0 %v1104
          %1250 = vmatmul.mubr.f32.gmra.mrb[0].mxu0 %v1103
          %v1251 = vpop.f32.mrb[0].mxu0
          %v1252 = vadd.f32 0.0, %v1251
          %v1253 = vpop.f32.mrb[0].mxu0
          %1254 = vmatprep.mubr.f32.mxu0 %v1106
          %1255 = vmatmul.mubr.f32.gmra.mrb[0].mxu0 %v1105
          %v1256 = vpop.f32.mrb[0].mxu0
          %v1257 = vadd.f32 0.0, %v1256
          %v1258 = vpop.f32.mrb[0].mxu0
          %1259 = vmatprep.mubr.f32.mxu0 %v1108
          %1260 = vmatmul.mubr.f32.gmra.mrb[0].mxu0 %v1107
          %v1261 = vpop.f32.mrb[0].mxu0
          %v1262 = vadd.f32 0.0, %v1261
          %v1263 = vpop.f32.mrb[0].mxu0
          %1264 = vmatprep.mubr.f32.mxu0 %v1110
          %1265 = vmatmul.mubr.f32.gmra.mrb[0].mxu0 %v1109
          %v1266 = vpop.f32.mrb[0].mxu0
          %v1267 = vadd.f32 0.0, %v1266
          %v1268 = vpop.f32.mrb[0].mxu0
          %1269 = vmatprep.mubr.f32.mxu0 %v1112
          %1270 = vmatmul.mubr.f32.gmra.mrb[0].mxu0 %v1111
          %v1271 = vpop.f32.mrb[0].mxu0
          %v1272 = vadd.f32 0.0, %v1271
          %v1273 = vpop.f32.mrb[0].mxu0
          %1274 = vmatprep.mubr.f32.mxu0 %v1114
          %1275 = vmatmul.mubr.f32.gmra.mrb[0].mxu0 %v1113
          %v1276 = vpop.f32.mrb[0].mxu0
          %v1277 = vadd.f32 0.0, %v1276
          %v1278 = vpop.f32.mrb[0].mxu0
          %1279 = vmatprep.mubr.f32.mxu0 %v1116
          %1280 = vmatmul.mubr.f32.gmra.mrb[0].mxu0 %v1115
          %v1281 = vpop.f32.mrb[0].mxu0
          %v1282 = vadd.f32 0.0, %v1281
          %v1283 = vpop.f32.mrb[0].mxu0
          %1284 = vmatprep.mubr.f32.mxu0 %v1118
          %1285 = vmatmul.mubr.f32.gmra.mrb[0].mxu0 %v1117
          %v1286 = vpop.f32.mrb[0].mxu0
          %v1287 = vadd.f32 0.0, %v1286
          %v1288 = vpop.f32.mrb[0].mxu0
          %1289 = vmatprep.mubr.f32.mxu0 %v1120
          %1290 = vmatmul.mubr.f32.gmra.mrb[0].mxu0 %v1119
          %v1291 = vpop.f32.mrb[0].mxu0
          %v1292 = vadd.f32 0.0, %v1291
          %v1293 = vpop.f32.mrb[0].mxu0
          %1294 = vmatprep.mubr.f32.mxu0 %v1122
          %1295 = vmatmul.mubr.f32.gmra.mrb[0].mxu0 %v1121
          %v1296 = vpop.f32.mrb[0].mxu0
          %v1297 = vadd.f32 0.0, %v1296
          %v1298 = vpop.f32.mrb[0].mxu0
          %1299 = vdwg.mxu0
          %1300 = vst [vmem:[%s406] sm:$0xff] %v1222
          %1301 = vst [vmem:[%s406 + $0x8] sm:$0xff] %v1227
          %1302 = vst [vmem:[%s406 + $0x10] sm:$0xff] %v1232
          %1303 = vst [vmem:[%s406 + $0x18] sm:$0xff] %v1237
          %1304 = vst [vmem:[%s406 + $0x20] sm:$0xff] %v1242
          %1305 = vst [vmem:[%s406 + $0x28] sm:$0xff] %v1247
          %1306 = vst [vmem:[%s406 + $0x30] sm:$0xff] %v1252
          %1307 = vst [vmem:[%s406 + $0x38] sm:$0xff] %v1257
          %1308 = vst [vmem:[%s406 + $0x40] sm:$0xff] %v1262
          %1309 = vst [vmem:[%s406 + $0x48] sm:$0xff] %v1267
          %1310 = vst [vmem:[%s406 + $0x50] sm:$0xff] %v1272
          %1311 = vst [vmem:[%s406 + $0x58] sm:$0xff] %v1277
          %1312 = vst [vmem:[%s406 + $0x60] sm:$0xff] %v1282
          %1313 = vst [vmem:[%s406 + $0x68] sm:$0xff] %v1287
          %1314 = vst [vmem:[%s406 + $0x70] sm:$0xff] %v1292
          %1315 = vst [vmem:[%s406 + $0x78] sm:$0xff] %v1297
        $region90: #{gcn3_forward.4} parent=73 // pred_fallthru
          _
        %s1316 = smul.u32 16, %s32
        %p1317 = scmp.lt.s32.totalorder %s1316, 31
        %s1318 = scalar_select %p1317, %s1316, 31
        %s1319 = smul.addr %s1318, 8
        %s1320 = scalar_lea.vmem %s7, %s1319
        // Predicated region
        $region91: #{gcn3_forward.4} parent=73 // pred_check
          %p1321 = pneg %p187
        $region92: #{gcn3_forward.4} parent=73 // pred_check_branch
          %1323 = sbr.rel (%p1321) target = $region94
        $region93: #{gcn3_forward.4} parent=73 // pred_region
          %s1324 = smul.u32 16, %s32
        $region94: #{gcn3_forward.4} parent=73 // pred_fallthru
          _
      $region74: #{gcn3_forward.4} parent=5 // pred_fallthru
        _
      %p1325 = scmp.le.s32.totalorder 2, %s23
      // Predicated region
      $region95: #{gcn3_forward.4} parent=5 // pred_check
        %p1326 = pneg %p1325
      $region96: #{gcn3_forward.4} parent=5 // pred_check_branch
        %1328 = sbr.rel (%p1326) target = $region98
      $region97: #{gcn3_forward.4} parent=5 // pred_region
        %s1329 = ssub.s32 %s23, 2
        // Predicated region
        $region99: #{gcn3_forward.4} parent=97 // pred_check
          %p1330 = pneg %p193
        $region100: #{gcn3_forward.4} parent=97 // pred_check_branch
          %1332 = sbr.rel (%p1330) target = $region102
        $region101: #{gcn3_forward.4} parent=97 // pred_region
          %s1333 = smul.u32 16, %s34
          %p1334 = scmp.lt.s32.totalorder %s1333, 31
          %s1335 = scalar_select %p1334, %s1333, 31
          %s1336 = smul.addr %s1335, 8
          %s1337 = scalar_lea.vmem %s7, %s1336
        $region102: #{gcn3_forward.4} parent=97 // pred_fallthru
          _
      $region98: #{gcn3_forward.4} parent=5 // pred_fallthru
        _
    $region6: #{gcn3_forward.4} parent=1 // loop_footer
      %s27 = sadd.s32 1, %s23
    $region7: #{gcn3_forward.4} parent=1 // loop_footer_branch
      %22 = sbr.rel target = $region3
    $region8: #{gcn3_forward.4} parent=1 // loop_exit
      _

</llo_original>
